<compile_context>
chip_gen: v5e
topology: v5e:2x2
jax: 0.10.0
libtpu: 0.0.40
codegen_flags: <defaults>
</compile_context>

<pallas_src>
import functools

import jax
import jax.numpy as jnp
from jax import lax
from jax.experimental import pallas as pl
from jax.experimental.pallas import tpu as pltpu

HIGHEST = lax.Precision.HIGHEST
VMEM_SPEC = pl.BlockSpec(memory_space=pltpu.MemorySpace.VMEM)


# ---------------------------------------------------------------------------
# Fused Pallas kernel: feature stack + class_classifier
# ---------------------------------------------------------------------------
def _uda_fused_kernel(*refs, dims, batch, n_sel):
    """refs layout: inputs [x_ph, (w_i, b_i) x n_conv, sel_s x n_sel, (fw_j, fb_j) x 3],
    output [out], scratch [col, feat].

      x_ph  : (B, 4, Lph)        input split into its 4 length phases: x_ph[b,r,j] = x[b,0,4j+r]
      w_i   : (Cout, K*Cin)      conv weights, column order k*Cin + ci (matches im2col rows)
      b_i   : (Cout, 1)
      sel_s : (Mneed-2, Lpool)   0/1 decimate-by-4 matrices for layers >= 2 with Lpool > 1
      fw_j  : (out, in), fb_j : (out, 1)   class_classifier Linear params (native orientation)
      out   : (n_class, B)       transposed to (B, n_class) by the wrapper
      col   : VMEM im2col scratch
      feat  : VMEM (n_flattens, B) scratch collecting per-batch features for the batched head
    """
    n_conv = len(dims)
    n_in = 1 + 2 * n_conv + n_sel + 6
    x_ref = refs[0]
    conv_refs = refs[1:1 + 2 * n_conv]
    sel_refs = refs[1 + 2 * n_conv:1 + 2 * n_conv + n_sel]
    fc_refs = refs[1 + 2 * n_conv + n_sel:n_in]
    o_ref = refs[n_in]
    col_ref = refs[n_in + 1]
    feat_ref = refs[n_in + 2]

    # ------------------- feature extractor (B is tiny: unrolled batch loop) ----------------
    for b in range(batch):
        # ---- Layer 1 (Cin == 1): conv(stride=2) + ReLU + MaxPool(2,2) fully fused on the VPU.
        # Thanks to the wrapper-side phase split, the two pooled candidates
        #   c_even[p] = conv_s1[4p],  c_odd[p] = conv_s1[4p+2]
        # are shift-and-accumulate over contiguous phase slices: no over-compute, no
        # decimation matmul, exact f32 arithmetic.  Bias folded into the accumulator init.
        Cin, Cout, K, Lpool, Mneed, _ = dims[0]
        w1 = conv_refs[0][...]                       # (Cout, K)
        b1 = conv_refs[1][...]                       # (Cout, 1)
        xp = x_ref[b]                                # (4, Lph)
        acc_e = jnp.broadcast_to(b1, (Cout, Lpool))
        acc_o = jnp.broadcast_to(b1, (Cout, Lpool))
        for k in range(K):
            wk = w1[:, k:k + 1]                      # (Cout, 1) -> VPU outer product
            re, oe = k % 4, k // 4                   # phase / offset feeding conv[4p + k]
            ro, oo = (k + 2) % 4, (k + 2) // 4       # phase / offset feeding conv[4p + 2 + k]
            acc_e = acc_e + wk * xp[re:re + 1, oe:oe + Lpool]
            acc_o = acc_o + wk * xp[ro:ro + 1, oo:oo + Lpool]
        act = jnp.maximum(jnp.maximum(acc_e, acc_o), 0.0)   # ReLU + pool fused; (Cout, Lpool)
        # Dropout(0.2) is identity in eval mode.

        # ---- Layers 2..n (Cin > 1): im2col scratch + ONE full-depth MXU matmul per layer.
        for i in range(1, n_conv):
            Cin, Cout, K, Lpool, Mneed, sidx = dims[i]
            wmat = conv_refs[2 * i][...]             # (Cout, K*Cin)
            bvec = conv_refs[2 * i + 1][...]         # (Cout, 1)
            for k in range(K):                       # K contiguous slices -> scratch rows
                col_ref[k * Cin:(k + 1) * Cin, 0:Mneed] = act[:, k:k + Mneed]
            patch = col_ref[0:K * Cin, 0:Mneed]      # (K*Cin, Mneed), contraction 128/128/96
            y = jnp.dot(wmat, patch, preferred_element_type=jnp.float32) + bvec
            y = jnp.maximum(y, 0.0)                              # ReLU
            z = jnp.maximum(y[:, :Mneed - 2], y[:, 2:])          # pooling-pair max
            if Lpool == 1:
                act = z[:, 0:1]
            else:
                # Exact decimate-by-4: 0/1 matrix precomputed in the wrapper; HIGHEST so
                # this pure-data-movement step adds no bf16 rounding between conv layers.
                act = jnp.dot(z, sel_refs[sidx][...], precision=HIGHEST,
                              preferred_element_type=jnp.float32)      # (Cout, Lpool)
            # Dropout(0.2) is identity in eval mode.
            # TODO(synk): training-mode Dropout RNG masking is not implemented.

        # Final spatial length is 1 -> the channel column equals PyTorch's C-major flatten.
        feat_ref[:, b:b + 1] = act                   # (C_last, 1)

    # ------------------- class_classifier head, batched over B (N = B MXU passes) ----------
    fw1, fb1, fw2, fb2, fw3, fb3 = (r[...] for r in fc_refs)
    feats = feat_ref[...]                            # (n_flattens, B)
    h = jnp.maximum(jnp.dot(fw1, feats, preferred_element_type=jnp.float32) + fb1, 0.0)
    h = jnp.maximum(jnp.dot(fw2, h, preferred_element_type=jnp.float32) + fb2, 0.0)
    o_ref[...] = jnp.dot(fw3, h, preferred_element_type=jnp.float32) + fb3   # single store


# ---------------------------------------------------------------------------
# Wrapper
# ---------------------------------------------------------------------------
@jax.jit
def uda_forward(x, conv_params, fc_params):
    """x: (B, 1, L) NCL float32 -> class logits (B, n_class)."""
    B, Cin0, L0 = x.shape
    assert Cin0 == 1

    dims, sels = [], []
    Cin, L = Cin0, L0
    for idx, (w, _) in enumerate(conv_params):
        Cout, Cin_w, K = w.shape
        assert Cin_w == Cin, (Cin_w, Cin)
        Lout = (L - K) // 2 + 1              # Conv1d(stride=2), VALID
        Lpool = Lout // 2                    # MaxPool1d(kernel=2, stride=2)
        Mneed = 4 * Lpool - 1                # stride-1 conv positions the pool needs
        assert Lpool >= 1
        sidx = -1
        if idx > 0 and Lpool > 1:
            # Decimate-by-4 selection matrix, built in the wrapper (XLA constant, lives in
            # VMEM as a kernel input -- never constructed inside the kernel).
            cols = Mneed - 2
            sel = (jnp.arange(cols, dtype=jnp.int32)[:, None]
                   == 4 * jnp.arange(Lpool, dtype=jnp.int32)[None, :]).astype(jnp.float32)
            sidx = len(sels)
            sels.append(sel)
        dims.append((Cin, Cout, K, Lpool, Mneed, sidx))
        Cin, L = Cout, Lpool

    n_class = fc_params[-1][0].shape[0]
    n_flattens = fc_params[0][0].shape[1]
    assert Cin * L == n_flattens, (Cin, L, n_flattens)
    # PyTorch's channel-major flatten equals our channel column only when final L == 1.
    assert L == 1
    assert len(conv_params) >= 2 and dims[0][0] == 1

    # Layer-1 phase split: wrapper-side layout plumbing that absorbs both the conv stride-2
    # and the pool decimation of the first layer.
    assert L0 % 4 == 0
    Lph = L0 // 4
    K1, Lp1 = dims[0][2], dims[0][3]
    assert (K1 + 1) // 4 + Lp1 <= Lph, "layer-1 phase taps exceed phase length"
    x_ph = jnp.transpose(x.reshape(B, Lph, 4), (0, 2, 1))   # (B, 4, Lph), lane-dense

    args = [x_ph]
    for (w, b) in conv_params:
        Cout_w, Cin_w, K_w = w.shape
        # (Cout, Cin, K) -> (Cout, K*Cin), column order k*Cin + ci (matches im2col rows).
        args.append(jnp.transpose(w, (0, 2, 1)).reshape(Cout_w, K_w * Cin_w))
        args.append(b.reshape(Cout_w, 1))
    args.extend(sels)
    for (w, b) in fc_params:
        args.append(w)                        # native (out, in) orientation
        args.append(b.reshape(-1, 1))

    # im2col scratch sized for the largest Cin>1 layer (128 x 128 f32 = 64 KB here).
    max_kc = max(d[2] * d[0] for d in dims[1:])
    max_mn = max(d[4] for d in dims[1:])
    col_rows = -(-max_kc // 8) * 8
    col_cols = -(-max_mn // 128) * 128

    kernel = functools.partial(_uda_fused_kernel, dims=tuple(dims), batch=B,
                               n_sel=len(sels))
    out_t = pl.pallas_call(
        kernel,
        out_shape=jax.ShapeDtypeStruct((n_class, B), jnp.float32),
        in_specs=[VMEM_SPEC] * len(args),
        out_specs=VMEM_SPEC,
        scratch_shapes=[pltpu.VMEM((col_rows, col_cols), jnp.float32),   # im2col
                        pltpu.VMEM((n_flattens, B), jnp.float32)],       # batched features
    )(*args)
    # Logits are produced batched as (n_class, B) with a single in-kernel store; the tiny
    # (n_class, B) -> (B, n_class) flip is one trivial XLA transpose kept out of the kernel
    # to avoid a sub-tile in-kernel relayout.
    return out_t.T


# ---------------------------------------------------------------------------
# Deterministic parameter init (PyTorch-default-style uniform bounds)
# ---------------------------------------------------------------------------
def _init_params(key, n_flattens, n_hiddens, n_class):
    def lin(k, fan_in, shape_w, shape_b):
        k1, k2 = jax.random.split(k)
        bound = 1.0 / jnp.sqrt(fan_in)
        w = jax.random.uniform(k1, shape_w, jnp.float32, -bound, bound)
        b = jax.random.uniform(k2, shape_b, jnp.float32, -bound, bound)
        return w, b

    keys = jax.random.split(key, 7)
    conv_params = [
        lin(keys[0], 1 * 32, (8, 1, 32), (8,)),
        lin(keys[1], 8 * 16, (16, 8, 16), (16,)),
        lin(keys[2], 16 * 8, (32, 16, 8), (32,)),
        lin(keys[3], 32 * 3, (32, 32, 3), (32,)),
    ]
    fc_params = [
        lin(keys[4], n_flattens, (n_hiddens, n_flattens), (n_hiddens,)),
        lin(keys[5], n_hiddens, (n_hiddens, n_hiddens), (n_hiddens,)),
        lin(keys[6], n_hiddens, (n_class, n_hiddens), (n_class,)),
    ]
    return conv_params, fc_params


# ---------------------------------------------------------------------------
# Pure-JAX reference (accurate oracle, HIGHEST precision)
# ---------------------------------------------------------------------------
def _ref_forward(x, conv_params, fc_params):
    h = x
    for (w, b) in conv_params:
        y = lax.conv_general_dilated(h, w, window_strides=(2,), padding="VALID",
                                     dimension_numbers=("NCH", "OIH", "NCH"),
                                     precision=HIGHEST)
        y = jnp.maximum(y + b[None, :, None], 0.0)
        Bn, C, Ln = y.shape
        Lp = Ln // 2
        h = y[:, :, :2 * Lp].reshape(Bn, C, Lp, 2).max(axis=3)
    feat = h.reshape(h.shape[0], -1)
    (w1, b1), (w2, b2), (w3, b3) = fc_params
    z = jnp.maximum(jnp.dot(feat, w1.T, precision=HIGHEST) + b1, 0.0)
    z = jnp.maximum(jnp.dot(z, w2.T, precision=HIGHEST) + b2, 0.0)
    return jnp.dot(z, w3.T, precision=HIGHEST) + b3


# ---------------------------------------------------------------------------
if __name__ == "__main__":
    B, Cin, L = 2, 1, 512
    # feature stack on L=512: conv/pool lengths 241 -> 120 -> 53 -> 26 -> 10 -> 5 -> 2 -> 1
    n_flattens, n_hiddens, n_class = 32 * 1, 32, 4

    key = jax.random.PRNGKey(0)
    kx, kp = jax.random.split(key)
    x = jax.random.normal(kx, (B, Cin, L), jnp.float32)
    conv_params, fc_params = _init_params(kp, n_flattens, n_hiddens, n_class)

    out = jax.block_until_ready(uda_forward(x, conv_params, fc_params))
    ref = _ref_forward(x, conv_params, fc_params)
    assert out.shape == (B, n_class)
    # Layer-1 and the decimation steps are now exact f32; the remaining conv/FC matmuls run
    # at default (fast) MXU precision per the perf guidance while the oracle uses HIGHEST,
    # hence the loose-but-safe tolerance.  Real logic bugs would be off by far more.
    assert jnp.allclose(out, ref, rtol=5e-2, atol=5e-2), (out, ref)

    print("KERNEL_OK")
</pallas_src>

<mosaic_0001>
module attributes {stable_mosaic.version = 11 : i64} {
  func.func @_uda_fused_kernel(%arg0: memref<2x4x128xf32, #tpu.memory_space<vmem>>, %arg1: memref<8x32xf32, #tpu.memory_space<vmem>>, %arg2: memref<8x1xf32, #tpu.memory_space<vmem>>, %arg3: memref<16x128xf32, #tpu.memory_space<vmem>>, %arg4: memref<16x1xf32, #tpu.memory_space<vmem>>, %arg5: memref<32x128xf32, #tpu.memory_space<vmem>>, %arg6: memref<32x1xf32, #tpu.memory_space<vmem>>, %arg7: memref<32x96xf32, #tpu.memory_space<vmem>>, %arg8: memref<32x1xf32, #tpu.memory_space<vmem>>, %arg9: memref<101x26xf32, #tpu.memory_space<vmem>>, %arg10: memref<17x5xf32, #tpu.memory_space<vmem>>, %arg11: memref<32x32xf32, #tpu.memory_space<vmem>>, %arg12: memref<32x1xf32, #tpu.memory_space<vmem>>, %arg13: memref<32x32xf32, #tpu.memory_space<vmem>>, %arg14: memref<32x1xf32, #tpu.memory_space<vmem>>, %arg15: memref<4x32xf32, #tpu.memory_space<vmem>>, %arg16: memref<4x1xf32, #tpu.memory_space<vmem>>, %arg17: memref<4x2xf32, #tpu.memory_space<vmem>>, %arg18: memref<128x128xf32, #tpu.memory_space<vmem>>, %arg19: memref<32x2xf32, #tpu.memory_space<vmem>>) attributes {dimension_semantics = [], scalar_prefetch = 0 : i64, scratch_operands = 2 : i64, tpu.core_type = #tpu.core_type<tc>} {
    %c0 = arith.constant 0 : index
    %c0_0 = arith.constant 0 : index
    %0 = vector.load %arg1[%c0, %c0_0] : memref<8x32xf32, #tpu.memory_space<vmem>>, vector<8x32xf32>
    %c0_1 = arith.constant 0 : index
    %c0_2 = arith.constant 0 : index
    %1 = vector.load %arg2[%c0_1, %c0_2] : memref<8x1xf32, #tpu.memory_space<vmem>>, vector<8x1xf32>
    %c0_3 = arith.constant 0 : index
    %c0_4 = arith.constant 0 : index
    %c0_5 = arith.constant 0 : index
    %2 = vector.load %arg0[%c0_3, %c0_4, %c0_5] : memref<2x4x128xf32, #tpu.memory_space<vmem>>, vector<1x4x128xf32>
    %3 = vector.shape_cast %2 : vector<1x4x128xf32> to vector<4x128xf32>
    %4 = vector.shape_cast %1 : vector<8x1xf32> to vector<8x1xf32>
    %5 = vector.broadcast %4 : vector<8x1xf32> to vector<8x120xf32>
    %6 = vector.shape_cast %1 : vector<8x1xf32> to vector<8x1xf32>
    %7 = vector.broadcast %6 : vector<8x1xf32> to vector<8x120xf32>
    %8 = vector.extract_strided_slice %0 {offsets = [0, 0], sizes = [8, 1], strides = [1, 1]} : vector<8x32xf32> to vector<8x1xf32>
    %9 = vector.extract_strided_slice %3 {offsets = [0, 0], sizes = [1, 120], strides = [1, 1]} : vector<4x128xf32> to vector<1x120xf32>
    %10 = vector.broadcast %8 : vector<8x1xf32> to vector<8x120xf32>
    %11 = vector.broadcast %9 : vector<1x120xf32> to vector<8x120xf32>
    %12 = arith.mulf %10, %11 : vector<8x120xf32>
    %13 = arith.addf %5, %12 : vector<8x120xf32>
    %14 = vector.extract_strided_slice %3 {offsets = [2, 0], sizes = [1, 120], strides = [1, 1]} : vector<4x128xf32> to vector<1x120xf32>
    %15 = vector.broadcast %8 : vector<8x1xf32> to vector<8x120xf32>
    %16 = vector.broadcast %14 : vector<1x120xf32> to vector<8x120xf32>
    %17 = arith.mulf %15, %16 : vector<8x120xf32>
    %18 = arith.addf %7, %17 : vector<8x120xf32>
    %19 = vector.extract_strided_slice %0 {offsets = [0, 1], sizes = [8, 1], strides = [1, 1]} : vector<8x32xf32> to vector<8x1xf32>
    %20 = vector.extract_strided_slice %3 {offsets = [1, 0], sizes = [1, 120], strides = [1, 1]} : vector<4x128xf32> to vector<1x120xf32>
    %21 = vector.broadcast %19 : vector<8x1xf32> to vector<8x120xf32>
    %22 = vector.broadcast %20 : vector<1x120xf32> to vector<8x120xf32>
    %23 = arith.mulf %21, %22 : vector<8x120xf32>
    %24 = arith.addf %13, %23 : vector<8x120xf32>
    %25 = vector.extract_strided_slice %3 {offsets = [3, 0], sizes = [1, 120], strides = [1, 1]} : vector<4x128xf32> to vector<1x120xf32>
    %26 = vector.broadcast %19 : vector<8x1xf32> to vector<8x120xf32>
    %27 = vector.broadcast %25 : vector<1x120xf32> to vector<8x120xf32>
    %28 = arith.mulf %26, %27 : vector<8x120xf32>
    %29 = arith.addf %18, %28 : vector<8x120xf32>
    %30 = vector.extract_strided_slice %0 {offsets = [0, 2], sizes = [8, 1], strides = [1, 1]} : vector<8x32xf32> to vector<8x1xf32>
    %31 = vector.extract_strided_slice %3 {offsets = [2, 0], sizes = [1, 120], strides = [1, 1]} : vector<4x128xf32> to vector<1x120xf32>
    %32 = vector.broadcast %30 : vector<8x1xf32> to vector<8x120xf32>
    %33 = vector.broadcast %31 : vector<1x120xf32> to vector<8x120xf32>
    %34 = arith.mulf %32, %33 : vector<8x120xf32>
    %35 = arith.addf %24, %34 : vector<8x120xf32>
    %36 = vector.extract_strided_slice %3 {offsets = [0, 1], sizes = [1, 120], strides = [1, 1]} : vector<4x128xf32> to vector<1x120xf32>
    %37 = vector.broadcast %30 : vector<8x1xf32> to vector<8x120xf32>
    %38 = vector.broadcast %36 : vector<1x120xf32> to vector<8x120xf32>
    %39 = arith.mulf %37, %38 : vector<8x120xf32>
    %40 = arith.addf %29, %39 : vector<8x120xf32>
    %41 = vector.extract_strided_slice %0 {offsets = [0, 3], sizes = [8, 1], strides = [1, 1]} : vector<8x32xf32> to vector<8x1xf32>
    %42 = vector.extract_strided_slice %3 {offsets = [3, 0], sizes = [1, 120], strides = [1, 1]} : vector<4x128xf32> to vector<1x120xf32>
    %43 = vector.broadcast %41 : vector<8x1xf32> to vector<8x120xf32>
    %44 = vector.broadcast %42 : vector<1x120xf32> to vector<8x120xf32>
    %45 = arith.mulf %43, %44 : vector<8x120xf32>
    %46 = arith.addf %35, %45 : vector<8x120xf32>
    %47 = vector.extract_strided_slice %3 {offsets = [1, 1], sizes = [1, 120], strides = [1, 1]} : vector<4x128xf32> to vector<1x120xf32>
    %48 = vector.broadcast %41 : vector<8x1xf32> to vector<8x120xf32>
    %49 = vector.broadcast %47 : vector<1x120xf32> to vector<8x120xf32>
    %50 = arith.mulf %48, %49 : vector<8x120xf32>
    %51 = arith.addf %40, %50 : vector<8x120xf32>
    %52 = vector.extract_strided_slice %0 {offsets = [0, 4], sizes = [8, 1], strides = [1, 1]} : vector<8x32xf32> to vector<8x1xf32>
    %53 = vector.extract_strided_slice %3 {offsets = [0, 1], sizes = [1, 120], strides = [1, 1]} : vector<4x128xf32> to vector<1x120xf32>
    %54 = vector.broadcast %52 : vector<8x1xf32> to vector<8x120xf32>
    %55 = vector.broadcast %53 : vector<1x120xf32> to vector<8x120xf32>
    %56 = arith.mulf %54, %55 : vector<8x120xf32>
    %57 = arith.addf %46, %56 : vector<8x120xf32>
    %58 = vector.extract_strided_slice %3 {offsets = [2, 1], sizes = [1, 120], strides = [1, 1]} : vector<4x128xf32> to vector<1x120xf32>
    %59 = vector.broadcast %52 : vector<8x1xf32> to vector<8x120xf32>
    %60 = vector.broadcast %58 : vector<1x120xf32> to vector<8x120xf32>
    %61 = arith.mulf %59, %60 : vector<8x120xf32>
    %62 = arith.addf %51, %61 : vector<8x120xf32>
    %63 = vector.extract_strided_slice %0 {offsets = [0, 5], sizes = [8, 1], strides = [1, 1]} : vector<8x32xf32> to vector<8x1xf32>
    %64 = vector.extract_strided_slice %3 {offsets = [1, 1], sizes = [1, 120], strides = [1, 1]} : vector<4x128xf32> to vector<1x120xf32>
    %65 = vector.broadcast %63 : vector<8x1xf32> to vector<8x120xf32>
    %66 = vector.broadcast %64 : vector<1x120xf32> to vector<8x120xf32>
    %67 = arith.mulf %65, %66 : vector<8x120xf32>
    %68 = arith.addf %57, %67 : vector<8x120xf32>
    %69 = vector.extract_strided_slice %3 {offsets = [3, 1], sizes = [1, 120], strides = [1, 1]} : vector<4x128xf32> to vector<1x120xf32>
    %70 = vector.broadcast %63 : vector<8x1xf32> to vector<8x120xf32>
    %71 = vector.broadcast %69 : vector<1x120xf32> to vector<8x120xf32>
    %72 = arith.mulf %70, %71 : vector<8x120xf32>
    %73 = arith.addf %62, %72 : vector<8x120xf32>
    %74 = vector.extract_strided_slice %0 {offsets = [0, 6], sizes = [8, 1], strides = [1, 1]} : vector<8x32xf32> to vector<8x1xf32>
    %75 = vector.extract_strided_slice %3 {offsets = [2, 1], sizes = [1, 120], strides = [1, 1]} : vector<4x128xf32> to vector<1x120xf32>
    %76 = vector.broadcast %74 : vector<8x1xf32> to vector<8x120xf32>
    %77 = vector.broadcast %75 : vector<1x120xf32> to vector<8x120xf32>
    %78 = arith.mulf %76, %77 : vector<8x120xf32>
    %79 = arith.addf %68, %78 : vector<8x120xf32>
    %80 = vector.extract_strided_slice %3 {offsets = [0, 2], sizes = [1, 120], strides = [1, 1]} : vector<4x128xf32> to vector<1x120xf32>
    %81 = vector.broadcast %74 : vector<8x1xf32> to vector<8x120xf32>
    %82 = vector.broadcast %80 : vector<1x120xf32> to vector<8x120xf32>
    %83 = arith.mulf %81, %82 : vector<8x120xf32>
    %84 = arith.addf %73, %83 : vector<8x120xf32>
    %85 = vector.extract_strided_slice %0 {offsets = [0, 7], sizes = [8, 1], strides = [1, 1]} : vector<8x32xf32> to vector<8x1xf32>
    %86 = vector.extract_strided_slice %3 {offsets = [3, 1], sizes = [1, 120], strides = [1, 1]} : vector<4x128xf32> to vector<1x120xf32>
    %87 = vector.broadcast %85 : vector<8x1xf32> to vector<8x120xf32>
    %88 = vector.broadcast %86 : vector<1x120xf32> to vector<8x120xf32>
    %89 = arith.mulf %87, %88 : vector<8x120xf32>
    %90 = arith.addf %79, %89 : vector<8x120xf32>
    %91 = vector.extract_strided_slice %3 {offsets = [1, 2], sizes = [1, 120], strides = [1, 1]} : vector<4x128xf32> to vector<1x120xf32>
    %92 = vector.broadcast %85 : vector<8x1xf32> to vector<8x120xf32>
    %93 = vector.broadcast %91 : vector<1x120xf32> to vector<8x120xf32>
    %94 = arith.mulf %92, %93 : vector<8x120xf32>
    %95 = arith.addf %84, %94 : vector<8x120xf32>
    %96 = vector.extract_strided_slice %0 {offsets = [0, 8], sizes = [8, 1], strides = [1, 1]} : vector<8x32xf32> to vector<8x1xf32>
    %97 = vector.extract_strided_slice %3 {offsets = [0, 2], sizes = [1, 120], strides = [1, 1]} : vector<4x128xf32> to vector<1x120xf32>
    %98 = vector.broadcast %96 : vector<8x1xf32> to vector<8x120xf32>
    %99 = vector.broadcast %97 : vector<1x120xf32> to vector<8x120xf32>
    %100 = arith.mulf %98, %99 : vector<8x120xf32>
    %101 = arith.addf %90, %100 : vector<8x120xf32>
    %102 = vector.extract_strided_slice %3 {offsets = [2, 2], sizes = [1, 120], strides = [1, 1]} : vector<4x128xf32> to vector<1x120xf32>
    %103 = vector.broadcast %96 : vector<8x1xf32> to vector<8x120xf32>
    %104 = vector.broadcast %102 : vector<1x120xf32> to vector<8x120xf32>
    %105 = arith.mulf %103, %104 : vector<8x120xf32>
    %106 = arith.addf %95, %105 : vector<8x120xf32>
    %107 = vector.extract_strided_slice %0 {offsets = [0, 9], sizes = [8, 1], strides = [1, 1]} : vector<8x32xf32> to vector<8x1xf32>
    %108 = vector.extract_strided_slice %3 {offsets = [1, 2], sizes = [1, 120], strides = [1, 1]} : vector<4x128xf32> to vector<1x120xf32>
    %109 = vector.broadcast %107 : vector<8x1xf32> to vector<8x120xf32>
    %110 = vector.broadcast %108 : vector<1x120xf32> to vector<8x120xf32>
    %111 = arith.mulf %109, %110 : vector<8x120xf32>
    %112 = arith.addf %101, %111 : vector<8x120xf32>
    %113 = vector.extract_strided_slice %3 {offsets = [3, 2], sizes = [1, 120], strides = [1, 1]} : vector<4x128xf32> to vector<1x120xf32>
    %114 = vector.broadcast %107 : vector<8x1xf32> to vector<8x120xf32>
    %115 = vector.broadcast %113 : vector<1x120xf32> to vector<8x120xf32>
    %116 = arith.mulf %114, %115 : vector<8x120xf32>
    %117 = arith.addf %106, %116 : vector<8x120xf32>
    %118 = vector.extract_strided_slice %0 {offsets = [0, 10], sizes = [8, 1], strides = [1, 1]} : vector<8x32xf32> to vector<8x1xf32>
    %119 = vector.extract_strided_slice %3 {offsets = [2, 2], sizes = [1, 120], strides = [1, 1]} : vector<4x128xf32> to vector<1x120xf32>
    %120 = vector.broadcast %118 : vector<8x1xf32> to vector<8x120xf32>
    %121 = vector.broadcast %119 : vector<1x120xf32> to vector<8x120xf32>
    %122 = arith.mulf %120, %121 : vector<8x120xf32>
    %123 = arith.addf %112, %122 : vector<8x120xf32>
    %124 = vector.extract_strided_slice %3 {offsets = [0, 3], sizes = [1, 120], strides = [1, 1]} : vector<4x128xf32> to vector<1x120xf32>
    %125 = vector.broadcast %118 : vector<8x1xf32> to vector<8x120xf32>
    %126 = vector.broadcast %124 : vector<1x120xf32> to vector<8x120xf32>
    %127 = arith.mulf %125, %126 : vector<8x120xf32>
    %128 = arith.addf %117, %127 : vector<8x120xf32>
    %129 = vector.extract_strided_slice %0 {offsets = [0, 11], sizes = [8, 1], strides = [1, 1]} : vector<8x32xf32> to vector<8x1xf32>
    %130 = vector.extract_strided_slice %3 {offsets = [3, 2], sizes = [1, 120], strides = [1, 1]} : vector<4x128xf32> to vector<1x120xf32>
    %131 = vector.broadcast %129 : vector<8x1xf32> to vector<8x120xf32>
    %132 = vector.broadcast %130 : vector<1x120xf32> to vector<8x120xf32>
    %133 = arith.mulf %131, %132 : vector<8x120xf32>
    %134 = arith.addf %123, %133 : vector<8x120xf32>
    %135 = vector.extract_strided_slice %3 {offsets = [1, 3], sizes = [1, 120], strides = [1, 1]} : vector<4x128xf32> to vector<1x120xf32>
    %136 = vector.broadcast %129 : vector<8x1xf32> to vector<8x120xf32>
    %137 = vector.broadcast %135 : vector<1x120xf32> to vector<8x120xf32>
    %138 = arith.mulf %136, %137 : vector<8x120xf32>
    %139 = arith.addf %128, %138 : vector<8x120xf32>
    %140 = vector.extract_strided_slice %0 {offsets = [0, 12], sizes = [8, 1], strides = [1, 1]} : vector<8x32xf32> to vector<8x1xf32>
    %141 = vector.extract_strided_slice %3 {offsets = [0, 3], sizes = [1, 120], strides = [1, 1]} : vector<4x128xf32> to vector<1x120xf32>
    %142 = vector.broadcast %140 : vector<8x1xf32> to vector<8x120xf32>
    %143 = vector.broadcast %141 : vector<1x120xf32> to vector<8x120xf32>
    %144 = arith.mulf %142, %143 : vector<8x120xf32>
    %145 = arith.addf %134, %144 : vector<8x120xf32>
    %146 = vector.extract_strided_slice %3 {offsets = [2, 3], sizes = [1, 120], strides = [1, 1]} : vector<4x128xf32> to vector<1x120xf32>
    %147 = vector.broadcast %140 : vector<8x1xf32> to vector<8x120xf32>
    %148 = vector.broadcast %146 : vector<1x120xf32> to vector<8x120xf32>
    %149 = arith.mulf %147, %148 : vector<8x120xf32>
    %150 = arith.addf %139, %149 : vector<8x120xf32>
    %151 = vector.extract_strided_slice %0 {offsets = [0, 13], sizes = [8, 1], strides = [1, 1]} : vector<8x32xf32> to vector<8x1xf32>
    %152 = vector.extract_strided_slice %3 {offsets = [1, 3], sizes = [1, 120], strides = [1, 1]} : vector<4x128xf32> to vector<1x120xf32>
    %153 = vector.broadcast %151 : vector<8x1xf32> to vector<8x120xf32>
    %154 = vector.broadcast %152 : vector<1x120xf32> to vector<8x120xf32>
    %155 = arith.mulf %153, %154 : vector<8x120xf32>
    %156 = arith.addf %145, %155 : vector<8x120xf32>
    %157 = vector.extract_strided_slice %3 {offsets = [3, 3], sizes = [1, 120], strides = [1, 1]} : vector<4x128xf32> to vector<1x120xf32>
    %158 = vector.broadcast %151 : vector<8x1xf32> to vector<8x120xf32>
    %159 = vector.broadcast %157 : vector<1x120xf32> to vector<8x120xf32>
    %160 = arith.mulf %158, %159 : vector<8x120xf32>
    %161 = arith.addf %150, %160 : vector<8x120xf32>
    %162 = vector.extract_strided_slice %0 {offsets = [0, 14], sizes = [8, 1], strides = [1, 1]} : vector<8x32xf32> to vector<8x1xf32>
    %163 = vector.extract_strided_slice %3 {offsets = [2, 3], sizes = [1, 120], strides = [1, 1]} : vector<4x128xf32> to vector<1x120xf32>
    %164 = vector.broadcast %162 : vector<8x1xf32> to vector<8x120xf32>
    %165 = vector.broadcast %163 : vector<1x120xf32> to vector<8x120xf32>
    %166 = arith.mulf %164, %165 : vector<8x120xf32>
    %167 = arith.addf %156, %166 : vector<8x120xf32>
    %168 = vector.extract_strided_slice %3 {offsets = [0, 4], sizes = [1, 120], strides = [1, 1]} : vector<4x128xf32> to vector<1x120xf32>
    %169 = vector.broadcast %162 : vector<8x1xf32> to vector<8x120xf32>
    %170 = vector.broadcast %168 : vector<1x120xf32> to vector<8x120xf32>
    %171 = arith.mulf %169, %170 : vector<8x120xf32>
    %172 = arith.addf %161, %171 : vector<8x120xf32>
    %173 = vector.extract_strided_slice %0 {offsets = [0, 15], sizes = [8, 1], strides = [1, 1]} : vector<8x32xf32> to vector<8x1xf32>
    %174 = vector.extract_strided_slice %3 {offsets = [3, 3], sizes = [1, 120], strides = [1, 1]} : vector<4x128xf32> to vector<1x120xf32>
    %175 = vector.broadcast %173 : vector<8x1xf32> to vector<8x120xf32>
    %176 = vector.broadcast %174 : vector<1x120xf32> to vector<8x120xf32>
    %177 = arith.mulf %175, %176 : vector<8x120xf32>
    %178 = arith.addf %167, %177 : vector<8x120xf32>
    %179 = vector.extract_strided_slice %3 {offsets = [1, 4], sizes = [1, 120], strides = [1, 1]} : vector<4x128xf32> to vector<1x120xf32>
    %180 = vector.broadcast %173 : vector<8x1xf32> to vector<8x120xf32>
    %181 = vector.broadcast %179 : vector<1x120xf32> to vector<8x120xf32>
    %182 = arith.mulf %180, %181 : vector<8x120xf32>
    %183 = arith.addf %172, %182 : vector<8x120xf32>
    %184 = vector.extract_strided_slice %0 {offsets = [0, 16], sizes = [8, 1], strides = [1, 1]} : vector<8x32xf32> to vector<8x1xf32>
    %185 = vector.extract_strided_slice %3 {offsets = [0, 4], sizes = [1, 120], strides = [1, 1]} : vector<4x128xf32> to vector<1x120xf32>
    %186 = vector.broadcast %184 : vector<8x1xf32> to vector<8x120xf32>
    %187 = vector.broadcast %185 : vector<1x120xf32> to vector<8x120xf32>
    %188 = arith.mulf %186, %187 : vector<8x120xf32>
    %189 = arith.addf %178, %188 : vector<8x120xf32>
    %190 = vector.extract_strided_slice %3 {offsets = [2, 4], sizes = [1, 120], strides = [1, 1]} : vector<4x128xf32> to vector<1x120xf32>
    %191 = vector.broadcast %184 : vector<8x1xf32> to vector<8x120xf32>
    %192 = vector.broadcast %190 : vector<1x120xf32> to vector<8x120xf32>
    %193 = arith.mulf %191, %192 : vector<8x120xf32>
    %194 = arith.addf %183, %193 : vector<8x120xf32>
    %195 = vector.extract_strided_slice %0 {offsets = [0, 17], sizes = [8, 1], strides = [1, 1]} : vector<8x32xf32> to vector<8x1xf32>
    %196 = vector.extract_strided_slice %3 {offsets = [1, 4], sizes = [1, 120], strides = [1, 1]} : vector<4x128xf32> to vector<1x120xf32>
    %197 = vector.broadcast %195 : vector<8x1xf32> to vector<8x120xf32>
    %198 = vector.broadcast %196 : vector<1x120xf32> to vector<8x120xf32>
    %199 = arith.mulf %197, %198 : vector<8x120xf32>
    %200 = arith.addf %189, %199 : vector<8x120xf32>
    %201 = vector.extract_strided_slice %3 {offsets = [3, 4], sizes = [1, 120], strides = [1, 1]} : vector<4x128xf32> to vector<1x120xf32>
    %202 = vector.broadcast %195 : vector<8x1xf32> to vector<8x120xf32>
    %203 = vector.broadcast %201 : vector<1x120xf32> to vector<8x120xf32>
    %204 = arith.mulf %202, %203 : vector<8x120xf32>
    %205 = arith.addf %194, %204 : vector<8x120xf32>
    %206 = vector.extract_strided_slice %0 {offsets = [0, 18], sizes = [8, 1], strides = [1, 1]} : vector<8x32xf32> to vector<8x1xf32>
    %207 = vector.extract_strided_slice %3 {offsets = [2, 4], sizes = [1, 120], strides = [1, 1]} : vector<4x128xf32> to vector<1x120xf32>
    %208 = vector.broadcast %206 : vector<8x1xf32> to vector<8x120xf32>
    %209 = vector.broadcast %207 : vector<1x120xf32> to vector<8x120xf32>
    %210 = arith.mulf %208, %209 : vector<8x120xf32>
    %211 = arith.addf %200, %210 : vector<8x120xf32>
    %212 = vector.extract_strided_slice %3 {offsets = [0, 5], sizes = [1, 120], strides = [1, 1]} : vector<4x128xf32> to vector<1x120xf32>
    %213 = vector.broadcast %206 : vector<8x1xf32> to vector<8x120xf32>
    %214 = vector.broadcast %212 : vector<1x120xf32> to vector<8x120xf32>
    %215 = arith.mulf %213, %214 : vector<8x120xf32>
    %216 = arith.addf %205, %215 : vector<8x120xf32>
    %217 = vector.extract_strided_slice %0 {offsets = [0, 19], sizes = [8, 1], strides = [1, 1]} : vector<8x32xf32> to vector<8x1xf32>
    %218 = vector.extract_strided_slice %3 {offsets = [3, 4], sizes = [1, 120], strides = [1, 1]} : vector<4x128xf32> to vector<1x120xf32>
    %219 = vector.broadcast %217 : vector<8x1xf32> to vector<8x120xf32>
    %220 = vector.broadcast %218 : vector<1x120xf32> to vector<8x120xf32>
    %221 = arith.mulf %219, %220 : vector<8x120xf32>
    %222 = arith.addf %211, %221 : vector<8x120xf32>
    %223 = vector.extract_strided_slice %3 {offsets = [1, 5], sizes = [1, 120], strides = [1, 1]} : vector<4x128xf32> to vector<1x120xf32>
    %224 = vector.broadcast %217 : vector<8x1xf32> to vector<8x120xf32>
    %225 = vector.broadcast %223 : vector<1x120xf32> to vector<8x120xf32>
    %226 = arith.mulf %224, %225 : vector<8x120xf32>
    %227 = arith.addf %216, %226 : vector<8x120xf32>
    %228 = vector.extract_strided_slice %0 {offsets = [0, 20], sizes = [8, 1], strides = [1, 1]} : vector<8x32xf32> to vector<8x1xf32>
    %229 = vector.extract_strided_slice %3 {offsets = [0, 5], sizes = [1, 120], strides = [1, 1]} : vector<4x128xf32> to vector<1x120xf32>
    %230 = vector.broadcast %228 : vector<8x1xf32> to vector<8x120xf32>
    %231 = vector.broadcast %229 : vector<1x120xf32> to vector<8x120xf32>
    %232 = arith.mulf %230, %231 : vector<8x120xf32>
    %233 = arith.addf %222, %232 : vector<8x120xf32>
    %234 = vector.extract_strided_slice %3 {offsets = [2, 5], sizes = [1, 120], strides = [1, 1]} : vector<4x128xf32> to vector<1x120xf32>
    %235 = vector.broadcast %228 : vector<8x1xf32> to vector<8x120xf32>
    %236 = vector.broadcast %234 : vector<1x120xf32> to vector<8x120xf32>
    %237 = arith.mulf %235, %236 : vector<8x120xf32>
    %238 = arith.addf %227, %237 : vector<8x120xf32>
    %239 = vector.extract_strided_slice %0 {offsets = [0, 21], sizes = [8, 1], strides = [1, 1]} : vector<8x32xf32> to vector<8x1xf32>
    %240 = vector.extract_strided_slice %3 {offsets = [1, 5], sizes = [1, 120], strides = [1, 1]} : vector<4x128xf32> to vector<1x120xf32>
    %241 = vector.broadcast %239 : vector<8x1xf32> to vector<8x120xf32>
    %242 = vector.broadcast %240 : vector<1x120xf32> to vector<8x120xf32>
    %243 = arith.mulf %241, %242 : vector<8x120xf32>
    %244 = arith.addf %233, %243 : vector<8x120xf32>
    %245 = vector.extract_strided_slice %3 {offsets = [3, 5], sizes = [1, 120], strides = [1, 1]} : vector<4x128xf32> to vector<1x120xf32>
    %246 = vector.broadcast %239 : vector<8x1xf32> to vector<8x120xf32>
    %247 = vector.broadcast %245 : vector<1x120xf32> to vector<8x120xf32>
    %248 = arith.mulf %246, %247 : vector<8x120xf32>
    %249 = arith.addf %238, %248 : vector<8x120xf32>
    %250 = vector.extract_strided_slice %0 {offsets = [0, 22], sizes = [8, 1], strides = [1, 1]} : vector<8x32xf32> to vector<8x1xf32>
    %251 = vector.extract_strided_slice %3 {offsets = [2, 5], sizes = [1, 120], strides = [1, 1]} : vector<4x128xf32> to vector<1x120xf32>
    %252 = vector.broadcast %250 : vector<8x1xf32> to vector<8x120xf32>
    %253 = vector.broadcast %251 : vector<1x120xf32> to vector<8x120xf32>
    %254 = arith.mulf %252, %253 : vector<8x120xf32>
    %255 = arith.addf %244, %254 : vector<8x120xf32>
    %256 = vector.extract_strided_slice %3 {offsets = [0, 6], sizes = [1, 120], strides = [1, 1]} : vector<4x128xf32> to vector<1x120xf32>
    %257 = vector.broadcast %250 : vector<8x1xf32> to vector<8x120xf32>
    %258 = vector.broadcast %256 : vector<1x120xf32> to vector<8x120xf32>
    %259 = arith.mulf %257, %258 : vector<8x120xf32>
    %260 = arith.addf %249, %259 : vector<8x120xf32>
    %261 = vector.extract_strided_slice %0 {offsets = [0, 23], sizes = [8, 1], strides = [1, 1]} : vector<8x32xf32> to vector<8x1xf32>
    %262 = vector.extract_strided_slice %3 {offsets = [3, 5], sizes = [1, 120], strides = [1, 1]} : vector<4x128xf32> to vector<1x120xf32>
    %263 = vector.broadcast %261 : vector<8x1xf32> to vector<8x120xf32>
    %264 = vector.broadcast %262 : vector<1x120xf32> to vector<8x120xf32>
    %265 = arith.mulf %263, %264 : vector<8x120xf32>
    %266 = arith.addf %255, %265 : vector<8x120xf32>
    %267 = vector.extract_strided_slice %3 {offsets = [1, 6], sizes = [1, 120], strides = [1, 1]} : vector<4x128xf32> to vector<1x120xf32>
    %268 = vector.broadcast %261 : vector<8x1xf32> to vector<8x120xf32>
    %269 = vector.broadcast %267 : vector<1x120xf32> to vector<8x120xf32>
    %270 = arith.mulf %268, %269 : vector<8x120xf32>
    %271 = arith.addf %260, %270 : vector<8x120xf32>
    %272 = vector.extract_strided_slice %0 {offsets = [0, 24], sizes = [8, 1], strides = [1, 1]} : vector<8x32xf32> to vector<8x1xf32>
    %273 = vector.extract_strided_slice %3 {offsets = [0, 6], sizes = [1, 120], strides = [1, 1]} : vector<4x128xf32> to vector<1x120xf32>
    %274 = vector.broadcast %272 : vector<8x1xf32> to vector<8x120xf32>
    %275 = vector.broadcast %273 : vector<1x120xf32> to vector<8x120xf32>
    %276 = arith.mulf %274, %275 : vector<8x120xf32>
    %277 = arith.addf %266, %276 : vector<8x120xf32>
    %278 = vector.extract_strided_slice %3 {offsets = [2, 6], sizes = [1, 120], strides = [1, 1]} : vector<4x128xf32> to vector<1x120xf32>
    %279 = vector.broadcast %272 : vector<8x1xf32> to vector<8x120xf32>
    %280 = vector.broadcast %278 : vector<1x120xf32> to vector<8x120xf32>
    %281 = arith.mulf %279, %280 : vector<8x120xf32>
    %282 = arith.addf %271, %281 : vector<8x120xf32>
    %283 = vector.extract_strided_slice %0 {offsets = [0, 25], sizes = [8, 1], strides = [1, 1]} : vector<8x32xf32> to vector<8x1xf32>
    %284 = vector.extract_strided_slice %3 {offsets = [1, 6], sizes = [1, 120], strides = [1, 1]} : vector<4x128xf32> to vector<1x120xf32>
    %285 = vector.broadcast %283 : vector<8x1xf32> to vector<8x120xf32>
    %286 = vector.broadcast %284 : vector<1x120xf32> to vector<8x120xf32>
    %287 = arith.mulf %285, %286 : vector<8x120xf32>
    %288 = arith.addf %277, %287 : vector<8x120xf32>
    %289 = vector.extract_strided_slice %3 {offsets = [3, 6], sizes = [1, 120], strides = [1, 1]} : vector<4x128xf32> to vector<1x120xf32>
    %290 = vector.broadcast %283 : vector<8x1xf32> to vector<8x120xf32>
    %291 = vector.broadcast %289 : vector<1x120xf32> to vector<8x120xf32>
    %292 = arith.mulf %290, %291 : vector<8x120xf32>
    %293 = arith.addf %282, %292 : vector<8x120xf32>
    %294 = vector.extract_strided_slice %0 {offsets = [0, 26], sizes = [8, 1], strides = [1, 1]} : vector<8x32xf32> to vector<8x1xf32>
    %295 = vector.extract_strided_slice %3 {offsets = [2, 6], sizes = [1, 120], strides = [1, 1]} : vector<4x128xf32> to vector<1x120xf32>
    %296 = vector.broadcast %294 : vector<8x1xf32> to vector<8x120xf32>
    %297 = vector.broadcast %295 : vector<1x120xf32> to vector<8x120xf32>
    %298 = arith.mulf %296, %297 : vector<8x120xf32>
    %299 = arith.addf %288, %298 : vector<8x120xf32>
    %300 = vector.extract_strided_slice %3 {offsets = [0, 7], sizes = [1, 120], strides = [1, 1]} : vector<4x128xf32> to vector<1x120xf32>
    %301 = vector.broadcast %294 : vector<8x1xf32> to vector<8x120xf32>
    %302 = vector.broadcast %300 : vector<1x120xf32> to vector<8x120xf32>
    %303 = arith.mulf %301, %302 : vector<8x120xf32>
    %304 = arith.addf %293, %303 : vector<8x120xf32>
    %305 = vector.extract_strided_slice %0 {offsets = [0, 27], sizes = [8, 1], strides = [1, 1]} : vector<8x32xf32> to vector<8x1xf32>
    %306 = vector.extract_strided_slice %3 {offsets = [3, 6], sizes = [1, 120], strides = [1, 1]} : vector<4x128xf32> to vector<1x120xf32>
    %307 = vector.broadcast %305 : vector<8x1xf32> to vector<8x120xf32>
    %308 = vector.broadcast %306 : vector<1x120xf32> to vector<8x120xf32>
    %309 = arith.mulf %307, %308 : vector<8x120xf32>
    %310 = arith.addf %299, %309 : vector<8x120xf32>
    %311 = vector.extract_strided_slice %3 {offsets = [1, 7], sizes = [1, 120], strides = [1, 1]} : vector<4x128xf32> to vector<1x120xf32>
    %312 = vector.broadcast %305 : vector<8x1xf32> to vector<8x120xf32>
    %313 = vector.broadcast %311 : vector<1x120xf32> to vector<8x120xf32>
    %314 = arith.mulf %312, %313 : vector<8x120xf32>
    %315 = arith.addf %304, %314 : vector<8x120xf32>
    %316 = vector.extract_strided_slice %0 {offsets = [0, 28], sizes = [8, 1], strides = [1, 1]} : vector<8x32xf32> to vector<8x1xf32>
    %317 = vector.extract_strided_slice %3 {offsets = [0, 7], sizes = [1, 120], strides = [1, 1]} : vector<4x128xf32> to vector<1x120xf32>
    %318 = vector.broadcast %316 : vector<8x1xf32> to vector<8x120xf32>
    %319 = vector.broadcast %317 : vector<1x120xf32> to vector<8x120xf32>
    %320 = arith.mulf %318, %319 : vector<8x120xf32>
    %321 = arith.addf %310, %320 : vector<8x120xf32>
    %322 = vector.extract_strided_slice %3 {offsets = [2, 7], sizes = [1, 120], strides = [1, 1]} : vector<4x128xf32> to vector<1x120xf32>
    %323 = vector.broadcast %316 : vector<8x1xf32> to vector<8x120xf32>
    %324 = vector.broadcast %322 : vector<1x120xf32> to vector<8x120xf32>
    %325 = arith.mulf %323, %324 : vector<8x120xf32>
    %326 = arith.addf %315, %325 : vector<8x120xf32>
    %327 = vector.extract_strided_slice %0 {offsets = [0, 29], sizes = [8, 1], strides = [1, 1]} : vector<8x32xf32> to vector<8x1xf32>
    %328 = vector.extract_strided_slice %3 {offsets = [1, 7], sizes = [1, 120], strides = [1, 1]} : vector<4x128xf32> to vector<1x120xf32>
    %329 = vector.broadcast %327 : vector<8x1xf32> to vector<8x120xf32>
    %330 = vector.broadcast %328 : vector<1x120xf32> to vector<8x120xf32>
    %331 = arith.mulf %329, %330 : vector<8x120xf32>
    %332 = arith.addf %321, %331 : vector<8x120xf32>
    %333 = vector.extract_strided_slice %3 {offsets = [3, 7], sizes = [1, 120], strides = [1, 1]} : vector<4x128xf32> to vector<1x120xf32>
    %334 = vector.broadcast %327 : vector<8x1xf32> to vector<8x120xf32>
    %335 = vector.broadcast %333 : vector<1x120xf32> to vector<8x120xf32>
    %336 = arith.mulf %334, %335 : vector<8x120xf32>
    %337 = arith.addf %326, %336 : vector<8x120xf32>
    %338 = vector.extract_strided_slice %0 {offsets = [0, 30], sizes = [8, 1], strides = [1, 1]} : vector<8x32xf32> to vector<8x1xf32>
    %339 = vector.extract_strided_slice %3 {offsets = [2, 7], sizes = [1, 120], strides = [1, 1]} : vector<4x128xf32> to vector<1x120xf32>
    %340 = vector.broadcast %338 : vector<8x1xf32> to vector<8x120xf32>
    %341 = vector.broadcast %339 : vector<1x120xf32> to vector<8x120xf32>
    %342 = arith.mulf %340, %341 : vector<8x120xf32>
    %343 = arith.addf %332, %342 : vector<8x120xf32>
    %344 = vector.extract_strided_slice %3 {offsets = [0, 8], sizes = [1, 120], strides = [1, 1]} : vector<4x128xf32> to vector<1x120xf32>
    %345 = vector.broadcast %338 : vector<8x1xf32> to vector<8x120xf32>
    %346 = vector.broadcast %344 : vector<1x120xf32> to vector<8x120xf32>
    %347 = arith.mulf %345, %346 : vector<8x120xf32>
    %348 = arith.addf %337, %347 : vector<8x120xf32>
    %349 = vector.extract_strided_slice %0 {offsets = [0, 31], sizes = [8, 1], strides = [1, 1]} : vector<8x32xf32> to vector<8x1xf32>
    %350 = vector.extract_strided_slice %3 {offsets = [3, 7], sizes = [1, 120], strides = [1, 1]} : vector<4x128xf32> to vector<1x120xf32>
    %351 = vector.broadcast %349 : vector<8x1xf32> to vector<8x120xf32>
    %352 = vector.broadcast %350 : vector<1x120xf32> to vector<8x120xf32>
    %353 = arith.mulf %351, %352 : vector<8x120xf32>
    %354 = arith.addf %343, %353 : vector<8x120xf32>
    %355 = vector.extract_strided_slice %3 {offsets = [1, 8], sizes = [1, 120], strides = [1, 1]} : vector<4x128xf32> to vector<1x120xf32>
    %356 = vector.broadcast %349 : vector<8x1xf32> to vector<8x120xf32>
    %357 = vector.broadcast %355 : vector<1x120xf32> to vector<8x120xf32>
    %358 = arith.mulf %356, %357 : vector<8x120xf32>
    %359 = arith.addf %348, %358 : vector<8x120xf32>
    %360 = arith.maximumf %354, %359 : vector<8x120xf32>
    %cst = arith.constant 0.000000e+00 : f32
    %361 = vector.broadcast %cst : f32 to vector<8x120xf32>
    %362 = arith.maximumf %360, %361 : vector<8x120xf32>
    %c0_6 = arith.constant 0 : index
    %c0_7 = arith.constant 0 : index
    %363 = vector.load %arg3[%c0_6, %c0_7] : memref<16x128xf32, #tpu.memory_space<vmem>>, vector<16x128xf32>
    %c0_8 = arith.constant 0 : index
    %c0_9 = arith.constant 0 : index
    %364 = vector.load %arg4[%c0_8, %c0_9] : memref<16x1xf32, #tpu.memory_space<vmem>>, vector<16x1xf32>
    %365 = vector.extract_strided_slice %362 {offsets = [0, 0], sizes = [8, 103], strides = [1, 1]} : vector<8x120xf32> to vector<8x103xf32>
    %c0_10 = arith.constant 0 : index
    %c0_11 = arith.constant 0 : index
    %366 = vector.load %arg18[%c0_10, %c0_11] : memref<128x128xf32, #tpu.memory_space<vmem>>, vector<8x103xf32>
    tpu.vector_store %arg18[%c0_10, %c0_11], %365 {strides = array<i32>} : memref<128x128xf32, #tpu.memory_space<vmem>>, vector<8x103xf32>,
    %367 = vector.extract_strided_slice %362 {offsets = [0, 1], sizes = [8, 103], strides = [1, 1]} : vector<8x120xf32> to vector<8x103xf32>
    %c8 = arith.constant 8 : index
    %c0_12 = arith.constant 0 : index
    %368 = vector.load %arg18[%c8, %c0_12] : memref<128x128xf32, #tpu.memory_space<vmem>>, vector<8x103xf32>
    tpu.vector_store %arg18[%c8, %c0_12], %367 {strides = array<i32>} : memref<128x128xf32, #tpu.memory_space<vmem>>, vector<8x103xf32>,
    %369 = vector.extract_strided_slice %362 {offsets = [0, 2], sizes = [8, 103], strides = [1, 1]} : vector<8x120xf32> to vector<8x103xf32>
    %c16 = arith.constant 16 : index
    %c0_13 = arith.constant 0 : index
    %370 = vector.load %arg18[%c16, %c0_13] : memref<128x128xf32, #tpu.memory_space<vmem>>, vector<8x103xf32>
    tpu.vector_store %arg18[%c16, %c0_13], %369 {strides = array<i32>} : memref<128x128xf32, #tpu.memory_space<vmem>>, vector<8x103xf32>,
    %371 = vector.extract_strided_slice %362 {offsets = [0, 3], sizes = [8, 103], strides = [1, 1]} : vector<8x120xf32> to vector<8x103xf32>
    %c24 = arith.constant 24 : index
    %c0_14 = arith.constant 0 : index
    %372 = vector.load %arg18[%c24, %c0_14] : memref<128x128xf32, #tpu.memory_space<vmem>>, vector<8x103xf32>
    tpu.vector_store %arg18[%c24, %c0_14], %371 {strides = array<i32>} : memref<128x128xf32, #tpu.memory_space<vmem>>, vector<8x103xf32>,
    %373 = vector.extract_strided_slice %362 {offsets = [0, 4], sizes = [8, 103], strides = [1, 1]} : vector<8x120xf32> to vector<8x103xf32>
    %c32 = arith.constant 32 : index
    %c0_15 = arith.constant 0 : index
    %374 = vector.load %arg18[%c32, %c0_15] : memref<128x128xf32, #tpu.memory_space<vmem>>, vector<8x103xf32>
    tpu.vector_store %arg18[%c32, %c0_15], %373 {strides = array<i32>} : memref<128x128xf32, #tpu.memory_space<vmem>>, vector<8x103xf32>,
    %375 = vector.extract_strided_slice %362 {offsets = [0, 5], sizes = [8, 103], strides = [1, 1]} : vector<8x120xf32> to vector<8x103xf32>
    %c40 = arith.constant 40 : index
    %c0_16 = arith.constant 0 : index
    %376 = vector.load %arg18[%c40, %c0_16] : memref<128x128xf32, #tpu.memory_space<vmem>>, vector<8x103xf32>
    tpu.vector_store %arg18[%c40, %c0_16], %375 {strides = array<i32>} : memref<128x128xf32, #tpu.memory_space<vmem>>, vector<8x103xf32>,
    %377 = vector.extract_strided_slice %362 {offsets = [0, 6], sizes = [8, 103], strides = [1, 1]} : vector<8x120xf32> to vector<8x103xf32>
    %c48 = arith.constant 48 : index
    %c0_17 = arith.constant 0 : index
    %378 = vector.load %arg18[%c48, %c0_17] : memref<128x128xf32, #tpu.memory_space<vmem>>, vector<8x103xf32>
    tpu.vector_store %arg18[%c48, %c0_17], %377 {strides = array<i32>} : memref<128x128xf32, #tpu.memory_space<vmem>>, vector<8x103xf32>,
    %379 = vector.extract_strided_slice %362 {offsets = [0, 7], sizes = [8, 103], strides = [1, 1]} : vector<8x120xf32> to vector<8x103xf32>
    %c56 = arith.constant 56 : index
    %c0_18 = arith.constant 0 : index
    %380 = vector.load %arg18[%c56, %c0_18] : memref<128x128xf32, #tpu.memory_space<vmem>>, vector<8x103xf32>
    tpu.vector_store %arg18[%c56, %c0_18], %379 {strides = array<i32>} : memref<128x128xf32, #tpu.memory_space<vmem>>, vector<8x103xf32>,
    %381 = vector.extract_strided_slice %362 {offsets = [0, 8], sizes = [8, 103], strides = [1, 1]} : vector<8x120xf32> to vector<8x103xf32>
    %c64 = arith.constant 64 : index
    %c0_19 = arith.constant 0 : index
    %382 = vector.load %arg18[%c64, %c0_19] : memref<128x128xf32, #tpu.memory_space<vmem>>, vector<8x103xf32>
    tpu.vector_store %arg18[%c64, %c0_19], %381 {strides = array<i32>} : memref<128x128xf32, #tpu.memory_space<vmem>>, vector<8x103xf32>,
    %383 = vector.extract_strided_slice %362 {offsets = [0, 9], sizes = [8, 103], strides = [1, 1]} : vector<8x120xf32> to vector<8x103xf32>
    %c72 = arith.constant 72 : index
    %c0_20 = arith.constant 0 : index
    %384 = vector.load %arg18[%c72, %c0_20] : memref<128x128xf32, #tpu.memory_space<vmem>>, vector<8x103xf32>
    tpu.vector_store %arg18[%c72, %c0_20], %383 {strides = array<i32>} : memref<128x128xf32, #tpu.memory_space<vmem>>, vector<8x103xf32>,
    %385 = vector.extract_strided_slice %362 {offsets = [0, 10], sizes = [8, 103], strides = [1, 1]} : vector<8x120xf32> to vector<8x103xf32>
    %c80 = arith.constant 80 : index
    %c0_21 = arith.constant 0 : index
    %386 = vector.load %arg18[%c80, %c0_21] : memref<128x128xf32, #tpu.memory_space<vmem>>, vector<8x103xf32>
    tpu.vector_store %arg18[%c80, %c0_21], %385 {strides = array<i32>} : memref<128x128xf32, #tpu.memory_space<vmem>>, vector<8x103xf32>,
    %387 = vector.extract_strided_slice %362 {offsets = [0, 11], sizes = [8, 103], strides = [1, 1]} : vector<8x120xf32> to vector<8x103xf32>
    %c88 = arith.constant 88 : index
    %c0_22 = arith.constant 0 : index
    %388 = vector.load %arg18[%c88, %c0_22] : memref<128x128xf32, #tpu.memory_space<vmem>>, vector<8x103xf32>
    tpu.vector_store %arg18[%c88, %c0_22], %387 {strides = array<i32>} : memref<128x128xf32, #tpu.memory_space<vmem>>, vector<8x103xf32>,
    %389 = vector.extract_strided_slice %362 {offsets = [0, 12], sizes = [8, 103], strides = [1, 1]} : vector<8x120xf32> to vector<8x103xf32>
    %c96 = arith.constant 96 : index
    %c0_23 = arith.constant 0 : index
    %390 = vector.load %arg18[%c96, %c0_23] : memref<128x128xf32, #tpu.memory_space<vmem>>, vector<8x103xf32>
    tpu.vector_store %arg18[%c96, %c0_23], %389 {strides = array<i32>} : memref<128x128xf32, #tpu.memory_space<vmem>>, vector<8x103xf32>,
    %391 = vector.extract_strided_slice %362 {offsets = [0, 13], sizes = [8, 103], strides = [1, 1]} : vector<8x120xf32> to vector<8x103xf32>
    %c104 = arith.constant 104 : index
    %c0_24 = arith.constant 0 : index
    %392 = vector.load %arg18[%c104, %c0_24] : memref<128x128xf32, #tpu.memory_space<vmem>>, vector<8x103xf32>
    tpu.vector_store %arg18[%c104, %c0_24], %391 {strides = array<i32>} : memref<128x128xf32, #tpu.memory_space<vmem>>, vector<8x103xf32>,
    %393 = vector.extract_strided_slice %362 {offsets = [0, 14], sizes = [8, 103], strides = [1, 1]} : vector<8x120xf32> to vector<8x103xf32>
    %c112 = arith.constant 112 : index
    %c0_25 = arith.constant 0 : index
    %394 = vector.load %arg18[%c112, %c0_25] : memref<128x128xf32, #tpu.memory_space<vmem>>, vector<8x103xf32>
    tpu.vector_store %arg18[%c112, %c0_25], %393 {strides = array<i32>} : memref<128x128xf32, #tpu.memory_space<vmem>>, vector<8x103xf32>,
    %395 = vector.extract_strided_slice %362 {offsets = [0, 15], sizes = [8, 103], strides = [1, 1]} : vector<8x120xf32> to vector<8x103xf32>
    %c120 = arith.constant 120 : index
    %c0_26 = arith.constant 0 : index
    %396 = vector.load %arg18[%c120, %c0_26] : memref<128x128xf32, #tpu.memory_space<vmem>>, vector<8x103xf32>
    tpu.vector_store %arg18[%c120, %c0_26], %395 {strides = array<i32>} : memref<128x128xf32, #tpu.memory_space<vmem>>, vector<8x103xf32>,
    %c0_27 = arith.constant 0 : index
    %c0_28 = arith.constant 0 : index
    %397 = vector.load %arg18[%c0_27, %c0_28] : memref<128x128xf32, #tpu.memory_space<vmem>>, vector<128x103xf32>
    %cst_29 = arith.constant dense<0.000000e+00> : vector<16x103xf32>
    %398 = tpu.matmul %363, %397, %cst_29 {dimension_numbers = #tpu.dot_dimension_numbers<[1], [0], [0], [1], [0, 0, 1, 1], [], []>} : vector<16x128xf32>, vector<128x103xf32>, vector<16x103xf32> -> vector<16x103xf32>
    %399 = vector.broadcast %364 : vector<16x1xf32> to vector<16x103xf32>
    %400 = arith.addf %398, %399 : vector<16x103xf32>
    %cst_30 = arith.constant 0.000000e+00 : f32
    %401 = vector.broadcast %cst_30 : f32 to vector<16x103xf32>
    %402 = arith.maximumf %400, %401 : vector<16x103xf32>
    %403 = vector.extract_strided_slice %402 {offsets = [0, 0], sizes = [16, 101], strides = [1, 1]} : vector<16x103xf32> to vector<16x101xf32>
    %404 = vector.extract_strided_slice %402 {offsets = [0, 2], sizes = [16, 101], strides = [1, 1]} : vector<16x103xf32> to vector<16x101xf32>
    %405 = arith.maximumf %403, %404 : vector<16x101xf32>
    %c0_31 = arith.constant 0 : index
    %c0_32 = arith.constant 0 : index
    %406 = vector.load %arg9[%c0_31, %c0_32] : memref<101x26xf32, #tpu.memory_space<vmem>>, vector<101x26xf32>
    %cst_33 = arith.constant dense<0.000000e+00> : vector<16x26xf32>
    %407 = tpu.matmul %405, %406, %cst_33 {dimension_numbers = #tpu.dot_dimension_numbers<[1], [0], [0], [1], [0, 0, 1, 1], [], []>, precision = #tpu.contract_precision<fp32>} : vector<16x101xf32>, vector<101x26xf32>, vector<16x26xf32> -> vector<16x26xf32>
    %c0_34 = arith.constant 0 : index
    %c0_35 = arith.constant 0 : index
    %408 = vector.load %arg5[%c0_34, %c0_35] : memref<32x128xf32, #tpu.memory_space<vmem>>, vector<32x128xf32>
    %c0_36 = arith.constant 0 : index
    %c0_37 = arith.constant 0 : index
    %409 = vector.load %arg6[%c0_36, %c0_37] : memref<32x1xf32, #tpu.memory_space<vmem>>, vector<32x1xf32>
    %410 = vector.extract_strided_slice %407 {offsets = [0, 0], sizes = [16, 19], strides = [1, 1]} : vector<16x26xf32> to vector<16x19xf32>
    %c0_38 = arith.constant 0 : index
    %c0_39 = arith.constant 0 : index
    %411 = vector.load %arg18[%c0_38, %c0_39] : memref<128x128xf32, #tpu.memory_space<vmem>>, vector<16x19xf32>
    tpu.vector_store %arg18[%c0_38, %c0_39], %410 {strides = array<i32>} : memref<128x128xf32, #tpu.memory_space<vmem>>, vector<16x19xf32>,
    %412 = vector.extract_strided_slice %407 {offsets = [0, 1], sizes = [16, 19], strides = [1, 1]} : vector<16x26xf32> to vector<16x19xf32>
    %c16_40 = arith.constant 16 : index
    %c0_41 = arith.constant 0 : index
    %413 = vector.load %arg18[%c16_40, %c0_41] : memref<128x128xf32, #tpu.memory_space<vmem>>, vector<16x19xf32>
    tpu.vector_store %arg18[%c16_40, %c0_41], %412 {strides = array<i32>} : memref<128x128xf32, #tpu.memory_space<vmem>>, vector<16x19xf32>,
    %414 = vector.extract_strided_slice %407 {offsets = [0, 2], sizes = [16, 19], strides = [1, 1]} : vector<16x26xf32> to vector<16x19xf32>
    %c32_42 = arith.constant 32 : index
    %c0_43 = arith.constant 0 : index
    %415 = vector.load %arg18[%c32_42, %c0_43] : memref<128x128xf32, #tpu.memory_space<vmem>>, vector<16x19xf32>
    tpu.vector_store %arg18[%c32_42, %c0_43], %414 {strides = array<i32>} : memref<128x128xf32, #tpu.memory_space<vmem>>, vector<16x19xf32>,
    %416 = vector.extract_strided_slice %407 {offsets = [0, 3], sizes = [16, 19], strides = [1, 1]} : vector<16x26xf32> to vector<16x19xf32>
    %c48_44 = arith.constant 48 : index
    %c0_45 = arith.constant 0 : index
    %417 = vector.load %arg18[%c48_44, %c0_45] : memref<128x128xf32, #tpu.memory_space<vmem>>, vector<16x19xf32>
    tpu.vector_store %arg18[%c48_44, %c0_45], %416 {strides = array<i32>} : memref<128x128xf32, #tpu.memory_space<vmem>>, vector<16x19xf32>,
    %418 = vector.extract_strided_slice %407 {offsets = [0, 4], sizes = [16, 19], strides = [1, 1]} : vector<16x26xf32> to vector<16x19xf32>
    %c64_46 = arith.constant 64 : index
    %c0_47 = arith.constant 0 : index
    %419 = vector.load %arg18[%c64_46, %c0_47] : memref<128x128xf32, #tpu.memory_space<vmem>>, vector<16x19xf32>
    tpu.vector_store %arg18[%c64_46, %c0_47], %418 {strides = array<i32>} : memref<128x128xf32, #tpu.memory_space<vmem>>, vector<16x19xf32>,
    %420 = vector.extract_strided_slice %407 {offsets = [0, 5], sizes = [16, 19], strides = [1, 1]} : vector<16x26xf32> to vector<16x19xf32>
    %c80_48 = arith.constant 80 : index
    %c0_49 = arith.constant 0 : index
    %421 = vector.load %arg18[%c80_48, %c0_49] : memref<128x128xf32, #tpu.memory_space<vmem>>, vector<16x19xf32>
    tpu.vector_store %arg18[%c80_48, %c0_49], %420 {strides = array<i32>} : memref<128x128xf32, #tpu.memory_space<vmem>>, vector<16x19xf32>,
    %422 = vector.extract_strided_slice %407 {offsets = [0, 6], sizes = [16, 19], strides = [1, 1]} : vector<16x26xf32> to vector<16x19xf32>
    %c96_50 = arith.constant 96 : index
    %c0_51 = arith.constant 0 : index
    %423 = vector.load %arg18[%c96_50, %c0_51] : memref<128x128xf32, #tpu.memory_space<vmem>>, vector<16x19xf32>
    tpu.vector_store %arg18[%c96_50, %c0_51], %422 {strides = array<i32>} : memref<128x128xf32, #tpu.memory_space<vmem>>, vector<16x19xf32>,
    %424 = vector.extract_strided_slice %407 {offsets = [0, 7], sizes = [16, 19], strides = [1, 1]} : vector<16x26xf32> to vector<16x19xf32>
    %c112_52 = arith.constant 112 : index
    %c0_53 = arith.constant 0 : index
    %425 = vector.load %arg18[%c112_52, %c0_53] : memref<128x128xf32, #tpu.memory_space<vmem>>, vector<16x19xf32>
    tpu.vector_store %arg18[%c112_52, %c0_53], %424 {strides = array<i32>} : memref<128x128xf32, #tpu.memory_space<vmem>>, vector<16x19xf32>,
    %c0_54 = arith.constant 0 : index
    %c0_55 = arith.constant 0 : index
    %426 = vector.load %arg18[%c0_54, %c0_55] : memref<128x128xf32, #tpu.memory_space<vmem>>, vector<128x19xf32>
    %cst_56 = arith.constant dense<0.000000e+00> : vector<32x19xf32>
    %427 = tpu.matmul %408, %426, %cst_56 {dimension_numbers = #tpu.dot_dimension_numbers<[1], [0], [0], [1], [0, 0, 1, 1], [], []>} : vector<32x128xf32>, vector<128x19xf32>, vector<32x19xf32> -> vector<32x19xf32>
    %428 = vector.broadcast %409 : vector<32x1xf32> to vector<32x19xf32>
    %429 = arith.addf %427, %428 : vector<32x19xf32>
    %cst_57 = arith.constant 0.000000e+00 : f32
    %430 = vector.broadcast %cst_57 : f32 to vector<32x19xf32>
    %431 = arith.maximumf %429, %430 : vector<32x19xf32>
    %432 = vector.extract_strided_slice %431 {offsets = [0, 0], sizes = [32, 17], strides = [1, 1]} : vector<32x19xf32> to vector<32x17xf32>
    %433 = vector.extract_strided_slice %431 {offsets = [0, 2], sizes = [32, 17], strides = [1, 1]} : vector<32x19xf32> to vector<32x17xf32>
    %434 = arith.maximumf %432, %433 : vector<32x17xf32>
    %c0_58 = arith.constant 0 : index
    %c0_59 = arith.constant 0 : index
    %435 = vector.load %arg10[%c0_58, %c0_59] : memref<17x5xf32, #tpu.memory_space<vmem>>, vector<17x5xf32>
    %cst_60 = arith.constant dense<0.000000e+00> : vector<32x5xf32>
    %436 = tpu.matmul %434, %435, %cst_60 {dimension_numbers = #tpu.dot_dimension_numbers<[1], [0], [0], [1], [0, 0, 1, 1], [], []>, precision = #tpu.contract_precision<fp32>} : vector<32x17xf32>, vector<17x5xf32>, vector<32x5xf32> -> vector<32x5xf32>
    %c0_61 = arith.constant 0 : index
    %c0_62 = arith.constant 0 : index
    %437 = vector.load %arg7[%c0_61, %c0_62] : memref<32x96xf32, #tpu.memory_space<vmem>>, vector<32x96xf32>
    %c0_63 = arith.constant 0 : index
    %c0_64 = arith.constant 0 : index
    %438 = vector.load %arg8[%c0_63, %c0_64] : memref<32x1xf32, #tpu.memory_space<vmem>>, vector<32x1xf32>
    %439 = vector.extract_strided_slice %436 {offsets = [0, 0], sizes = [32, 3], strides = [1, 1]} : vector<32x5xf32> to vector<32x3xf32>
    %c0_65 = arith.constant 0 : index
    %c0_66 = arith.constant 0 : index
    %440 = vector.load %arg18[%c0_65, %c0_66] : memref<128x128xf32, #tpu.memory_space<vmem>>, vector<32x3xf32>
    tpu.vector_store %arg18[%c0_65, %c0_66], %439 {strides = array<i32>} : memref<128x128xf32, #tpu.memory_space<vmem>>, vector<32x3xf32>,
    %441 = vector.extract_strided_slice %436 {offsets = [0, 1], sizes = [32, 3], strides = [1, 1]} : vector<32x5xf32> to vector<32x3xf32>
    %c32_67 = arith.constant 32 : index
    %c0_68 = arith.constant 0 : index
    %442 = vector.load %arg18[%c32_67, %c0_68] : memref<128x128xf32, #tpu.memory_space<vmem>>, vector<32x3xf32>
    tpu.vector_store %arg18[%c32_67, %c0_68], %441 {strides = array<i32>} : memref<128x128xf32, #tpu.memory_space<vmem>>, vector<32x3xf32>,
    %443 = vector.extract_strided_slice %436 {offsets = [0, 2], sizes = [32, 3], strides = [1, 1]} : vector<32x5xf32> to vector<32x3xf32>
    %c64_69 = arith.constant 64 : index
    %c0_70 = arith.constant 0 : index
    %444 = vector.load %arg18[%c64_69, %c0_70] : memref<128x128xf32, #tpu.memory_space<vmem>>, vector<32x3xf32>
    tpu.vector_store %arg18[%c64_69, %c0_70], %443 {strides = array<i32>} : memref<128x128xf32, #tpu.memory_space<vmem>>, vector<32x3xf32>,
    %c0_71 = arith.constant 0 : index
    %c0_72 = arith.constant 0 : index
    %445 = vector.load %arg18[%c0_71, %c0_72] : memref<128x128xf32, #tpu.memory_space<vmem>>, vector<96x3xf32>
    %cst_73 = arith.constant dense<0.000000e+00> : vector<32x3xf32>
    %446 = tpu.matmul %437, %445, %cst_73 {dimension_numbers = #tpu.dot_dimension_numbers<[1], [0], [0], [1], [0, 0, 1, 1], [], []>} : vector<32x96xf32>, vector<96x3xf32>, vector<32x3xf32> -> vector<32x3xf32>
    %447 = vector.broadcast %438 : vector<32x1xf32> to vector<32x3xf32>
    %448 = arith.addf %446, %447 : vector<32x3xf32>
    %cst_74 = arith.constant 0.000000e+00 : f32
    %449 = vector.broadcast %cst_74 : f32 to vector<32x3xf32>
    %450 = arith.maximumf %448, %449 : vector<32x3xf32>
    %451 = vector.extract_strided_slice %450 {offsets = [0, 0], sizes = [32, 1], strides = [1, 1]} : vector<32x3xf32> to vector<32x1xf32>
    %452 = vector.extract_strided_slice %450 {offsets = [0, 2], sizes = [32, 1], strides = [1, 1]} : vector<32x3xf32> to vector<32x1xf32>
    %453 = arith.maximumf %451, %452 : vector<32x1xf32>
    %c0_75 = arith.constant 0 : index
    %c0_76 = arith.constant 0 : index
    %454 = vector.load %arg19[%c0_75, %c0_76] : memref<32x2xf32, #tpu.memory_space<vmem>>, vector<32x1xf32>
    tpu.vector_store %arg19[%c0_75, %c0_76], %453 {strides = array<i32>} : memref<32x2xf32, #tpu.memory_space<vmem>>, vector<32x1xf32>,
    %c0_77 = arith.constant 0 : index
    %c0_78 = arith.constant 0 : index
    %455 = vector.load %arg1[%c0_77, %c0_78] : memref<8x32xf32, #tpu.memory_space<vmem>>, vector<8x32xf32>
    %c0_79 = arith.constant 0 : index
    %c0_80 = arith.constant 0 : index
    %456 = vector.load %arg2[%c0_79, %c0_80] : memref<8x1xf32, #tpu.memory_space<vmem>>, vector<8x1xf32>
    %c1 = arith.constant 1 : index
    %c0_81 = arith.constant 0 : index
    %c0_82 = arith.constant 0 : index
    %457 = vector.load %arg0[%c1, %c0_81, %c0_82] : memref<2x4x128xf32, #tpu.memory_space<vmem>>, vector<1x4x128xf32>
    %458 = vector.shape_cast %457 : vector<1x4x128xf32> to vector<4x128xf32>
    %459 = vector.shape_cast %456 : vector<8x1xf32> to vector<8x1xf32>
    %460 = vector.broadcast %459 : vector<8x1xf32> to vector<8x120xf32>
    %461 = vector.shape_cast %456 : vector<8x1xf32> to vector<8x1xf32>
    %462 = vector.broadcast %461 : vector<8x1xf32> to vector<8x120xf32>
    %463 = vector.extract_strided_slice %455 {offsets = [0, 0], sizes = [8, 1], strides = [1, 1]} : vector<8x32xf32> to vector<8x1xf32>
    %464 = vector.extract_strided_slice %458 {offsets = [0, 0], sizes = [1, 120], strides = [1, 1]} : vector<4x128xf32> to vector<1x120xf32>
    %465 = vector.broadcast %463 : vector<8x1xf32> to vector<8x120xf32>
    %466 = vector.broadcast %464 : vector<1x120xf32> to vector<8x120xf32>
    %467 = arith.mulf %465, %466 : vector<8x120xf32>
    %468 = arith.addf %460, %467 : vector<8x120xf32>
    %469 = vector.extract_strided_slice %458 {offsets = [2, 0], sizes = [1, 120], strides = [1, 1]} : vector<4x128xf32> to vector<1x120xf32>
    %470 = vector.broadcast %463 : vector<8x1xf32> to vector<8x120xf32>
    %471 = vector.broadcast %469 : vector<1x120xf32> to vector<8x120xf32>
    %472 = arith.mulf %470, %471 : vector<8x120xf32>
    %473 = arith.addf %462, %472 : vector<8x120xf32>
    %474 = vector.extract_strided_slice %455 {offsets = [0, 1], sizes = [8, 1], strides = [1, 1]} : vector<8x32xf32> to vector<8x1xf32>
    %475 = vector.extract_strided_slice %458 {offsets = [1, 0], sizes = [1, 120], strides = [1, 1]} : vector<4x128xf32> to vector<1x120xf32>
    %476 = vector.broadcast %474 : vector<8x1xf32> to vector<8x120xf32>
    %477 = vector.broadcast %475 : vector<1x120xf32> to vector<8x120xf32>
    %478 = arith.mulf %476, %477 : vector<8x120xf32>
    %479 = arith.addf %468, %478 : vector<8x120xf32>
    %480 = vector.extract_strided_slice %458 {offsets = [3, 0], sizes = [1, 120], strides = [1, 1]} : vector<4x128xf32> to vector<1x120xf32>
    %481 = vector.broadcast %474 : vector<8x1xf32> to vector<8x120xf32>
    %482 = vector.broadcast %480 : vector<1x120xf32> to vector<8x120xf32>
    %483 = arith.mulf %481, %482 : vector<8x120xf32>
    %484 = arith.addf %473, %483 : vector<8x120xf32>
    %485 = vector.extract_strided_slice %455 {offsets = [0, 2], sizes = [8, 1], strides = [1, 1]} : vector<8x32xf32> to vector<8x1xf32>
    %486 = vector.extract_strided_slice %458 {offsets = [2, 0], sizes = [1, 120], strides = [1, 1]} : vector<4x128xf32> to vector<1x120xf32>
    %487 = vector.broadcast %485 : vector<8x1xf32> to vector<8x120xf32>
    %488 = vector.broadcast %486 : vector<1x120xf32> to vector<8x120xf32>
    %489 = arith.mulf %487, %488 : vector<8x120xf32>
    %490 = arith.addf %479, %489 : vector<8x120xf32>
    %491 = vector.extract_strided_slice %458 {offsets = [0, 1], sizes = [1, 120], strides = [1, 1]} : vector<4x128xf32> to vector<1x120xf32>
    %492 = vector.broadcast %485 : vector<8x1xf32> to vector<8x120xf32>
    %493 = vector.broadcast %491 : vector<1x120xf32> to vector<8x120xf32>
    %494 = arith.mulf %492, %493 : vector<8x120xf32>
    %495 = arith.addf %484, %494 : vector<8x120xf32>
    %496 = vector.extract_strided_slice %455 {offsets = [0, 3], sizes = [8, 1], strides = [1, 1]} : vector<8x32xf32> to vector<8x1xf32>
    %497 = vector.extract_strided_slice %458 {offsets = [3, 0], sizes = [1, 120], strides = [1, 1]} : vector<4x128xf32> to vector<1x120xf32>
    %498 = vector.broadcast %496 : vector<8x1xf32> to vector<8x120xf32>
    %499 = vector.broadcast %497 : vector<1x120xf32> to vector<8x120xf32>
    %500 = arith.mulf %498, %499 : vector<8x120xf32>
    %501 = arith.addf %490, %500 : vector<8x120xf32>
    %502 = vector.extract_strided_slice %458 {offsets = [1, 1], sizes = [1, 120], strides = [1, 1]} : vector<4x128xf32> to vector<1x120xf32>
    %503 = vector.broadcast %496 : vector<8x1xf32> to vector<8x120xf32>
    %504 = vector.broadcast %502 : vector<1x120xf32> to vector<8x120xf32>
    %505 = arith.mulf %503, %504 : vector<8x120xf32>
    %506 = arith.addf %495, %505 : vector<8x120xf32>
    %507 = vector.extract_strided_slice %455 {offsets = [0, 4], sizes = [8, 1], strides = [1, 1]} : vector<8x32xf32> to vector<8x1xf32>
    %508 = vector.extract_strided_slice %458 {offsets = [0, 1], sizes = [1, 120], strides = [1, 1]} : vector<4x128xf32> to vector<1x120xf32>
    %509 = vector.broadcast %507 : vector<8x1xf32> to vector<8x120xf32>
    %510 = vector.broadcast %508 : vector<1x120xf32> to vector<8x120xf32>
    %511 = arith.mulf %509, %510 : vector<8x120xf32>
    %512 = arith.addf %501, %511 : vector<8x120xf32>
    %513 = vector.extract_strided_slice %458 {offsets = [2, 1], sizes = [1, 120], strides = [1, 1]} : vector<4x128xf32> to vector<1x120xf32>
    %514 = vector.broadcast %507 : vector<8x1xf32> to vector<8x120xf32>
    %515 = vector.broadcast %513 : vector<1x120xf32> to vector<8x120xf32>
    %516 = arith.mulf %514, %515 : vector<8x120xf32>
    %517 = arith.addf %506, %516 : vector<8x120xf32>
    %518 = vector.extract_strided_slice %455 {offsets = [0, 5], sizes = [8, 1], strides = [1, 1]} : vector<8x32xf32> to vector<8x1xf32>
    %519 = vector.extract_strided_slice %458 {offsets = [1, 1], sizes = [1, 120], strides = [1, 1]} : vector<4x128xf32> to vector<1x120xf32>
    %520 = vector.broadcast %518 : vector<8x1xf32> to vector<8x120xf32>
    %521 = vector.broadcast %519 : vector<1x120xf32> to vector<8x120xf32>
    %522 = arith.mulf %520, %521 : vector<8x120xf32>
    %523 = arith.addf %512, %522 : vector<8x120xf32>
    %524 = vector.extract_strided_slice %458 {offsets = [3, 1], sizes = [1, 120], strides = [1, 1]} : vector<4x128xf32> to vector<1x120xf32>
    %525 = vector.broadcast %518 : vector<8x1xf32> to vector<8x120xf32>
    %526 = vector.broadcast %524 : vector<1x120xf32> to vector<8x120xf32>
    %527 = arith.mulf %525, %526 : vector<8x120xf32>
    %528 = arith.addf %517, %527 : vector<8x120xf32>
    %529 = vector.extract_strided_slice %455 {offsets = [0, 6], sizes = [8, 1], strides = [1, 1]} : vector<8x32xf32> to vector<8x1xf32>
    %530 = vector.extract_strided_slice %458 {offsets = [2, 1], sizes = [1, 120], strides = [1, 1]} : vector<4x128xf32> to vector<1x120xf32>
    %531 = vector.broadcast %529 : vector<8x1xf32> to vector<8x120xf32>
    %532 = vector.broadcast %530 : vector<1x120xf32> to vector<8x120xf32>
    %533 = arith.mulf %531, %532 : vector<8x120xf32>
    %534 = arith.addf %523, %533 : vector<8x120xf32>
    %535 = vector.extract_strided_slice %458 {offsets = [0, 2], sizes = [1, 120], strides = [1, 1]} : vector<4x128xf32> to vector<1x120xf32>
    %536 = vector.broadcast %529 : vector<8x1xf32> to vector<8x120xf32>
    %537 = vector.broadcast %535 : vector<1x120xf32> to vector<8x120xf32>
    %538 = arith.mulf %536, %537 : vector<8x120xf32>
    %539 = arith.addf %528, %538 : vector<8x120xf32>
    %540 = vector.extract_strided_slice %455 {offsets = [0, 7], sizes = [8, 1], strides = [1, 1]} : vector<8x32xf32> to vector<8x1xf32>
    %541 = vector.extract_strided_slice %458 {offsets = [3, 1], sizes = [1, 120], strides = [1, 1]} : vector<4x128xf32> to vector<1x120xf32>
    %542 = vector.broadcast %540 : vector<8x1xf32> to vector<8x120xf32>
    %543 = vector.broadcast %541 : vector<1x120xf32> to vector<8x120xf32>
    %544 = arith.mulf %542, %543 : vector<8x120xf32>
    %545 = arith.addf %534, %544 : vector<8x120xf32>
    %546 = vector.extract_strided_slice %458 {offsets = [1, 2], sizes = [1, 120], strides = [1, 1]} : vector<4x128xf32> to vector<1x120xf32>
    %547 = vector.broadcast %540 : vector<8x1xf32> to vector<8x120xf32>
    %548 = vector.broadcast %546 : vector<1x120xf32> to vector<8x120xf32>
    %549 = arith.mulf %547, %548 : vector<8x120xf32>
    %550 = arith.addf %539, %549 : vector<8x120xf32>
    %551 = vector.extract_strided_slice %455 {offsets = [0, 8], sizes = [8, 1], strides = [1, 1]} : vector<8x32xf32> to vector<8x1xf32>
    %552 = vector.extract_strided_slice %458 {offsets = [0, 2], sizes = [1, 120], strides = [1, 1]} : vector<4x128xf32> to vector<1x120xf32>
    %553 = vector.broadcast %551 : vector<8x1xf32> to vector<8x120xf32>
    %554 = vector.broadcast %552 : vector<1x120xf32> to vector<8x120xf32>
    %555 = arith.mulf %553, %554 : vector<8x120xf32>
    %556 = arith.addf %545, %555 : vector<8x120xf32>
    %557 = vector.extract_strided_slice %458 {offsets = [2, 2], sizes = [1, 120], strides = [1, 1]} : vector<4x128xf32> to vector<1x120xf32>
    %558 = vector.broadcast %551 : vector<8x1xf32> to vector<8x120xf32>
    %559 = vector.broadcast %557 : vector<1x120xf32> to vector<8x120xf32>
    %560 = arith.mulf %558, %559 : vector<8x120xf32>
    %561 = arith.addf %550, %560 : vector<8x120xf32>
    %562 = vector.extract_strided_slice %455 {offsets = [0, 9], sizes = [8, 1], strides = [1, 1]} : vector<8x32xf32> to vector<8x1xf32>
    %563 = vector.extract_strided_slice %458 {offsets = [1, 2], sizes = [1, 120], strides = [1, 1]} : vector<4x128xf32> to vector<1x120xf32>
    %564 = vector.broadcast %562 : vector<8x1xf32> to vector<8x120xf32>
    %565 = vector.broadcast %563 : vector<1x120xf32> to vector<8x120xf32>
    %566 = arith.mulf %564, %565 : vector<8x120xf32>
    %567 = arith.addf %556, %566 : vector<8x120xf32>
    %568 = vector.extract_strided_slice %458 {offsets = [3, 2], sizes = [1, 120], strides = [1, 1]} : vector<4x128xf32> to vector<1x120xf32>
    %569 = vector.broadcast %562 : vector<8x1xf32> to vector<8x120xf32>
    %570 = vector.broadcast %568 : vector<1x120xf32> to vector<8x120xf32>
    %571 = arith.mulf %569, %570 : vector<8x120xf32>
    %572 = arith.addf %561, %571 : vector<8x120xf32>
    %573 = vector.extract_strided_slice %455 {offsets = [0, 10], sizes = [8, 1], strides = [1, 1]} : vector<8x32xf32> to vector<8x1xf32>
    %574 = vector.extract_strided_slice %458 {offsets = [2, 2], sizes = [1, 120], strides = [1, 1]} : vector<4x128xf32> to vector<1x120xf32>
    %575 = vector.broadcast %573 : vector<8x1xf32> to vector<8x120xf32>
    %576 = vector.broadcast %574 : vector<1x120xf32> to vector<8x120xf32>
    %577 = arith.mulf %575, %576 : vector<8x120xf32>
    %578 = arith.addf %567, %577 : vector<8x120xf32>
    %579 = vector.extract_strided_slice %458 {offsets = [0, 3], sizes = [1, 120], strides = [1, 1]} : vector<4x128xf32> to vector<1x120xf32>
    %580 = vector.broadcast %573 : vector<8x1xf32> to vector<8x120xf32>
    %581 = vector.broadcast %579 : vector<1x120xf32> to vector<8x120xf32>
    %582 = arith.mulf %580, %581 : vector<8x120xf32>
    %583 = arith.addf %572, %582 : vector<8x120xf32>
    %584 = vector.extract_strided_slice %455 {offsets = [0, 11], sizes = [8, 1], strides = [1, 1]} : vector<8x32xf32> to vector<8x1xf32>
    %585 = vector.extract_strided_slice %458 {offsets = [3, 2], sizes = [1, 120], strides = [1, 1]} : vector<4x128xf32> to vector<1x120xf32>
    %586 = vector.broadcast %584 : vector<8x1xf32> to vector<8x120xf32>
    %587 = vector.broadcast %585 : vector<1x120xf32> to vector<8x120xf32>
    %588 = arith.mulf %586, %587 : vector<8x120xf32>
    %589 = arith.addf %578, %588 : vector<8x120xf32>
    %590 = vector.extract_strided_slice %458 {offsets = [1, 3], sizes = [1, 120], strides = [1, 1]} : vector<4x128xf32> to vector<1x120xf32>
    %591 = vector.broadcast %584 : vector<8x1xf32> to vector<8x120xf32>
    %592 = vector.broadcast %590 : vector<1x120xf32> to vector<8x120xf32>
    %593 = arith.mulf %591, %592 : vector<8x120xf32>
    %594 = arith.addf %583, %593 : vector<8x120xf32>
    %595 = vector.extract_strided_slice %455 {offsets = [0, 12], sizes = [8, 1], strides = [1, 1]} : vector<8x32xf32> to vector<8x1xf32>
    %596 = vector.extract_strided_slice %458 {offsets = [0, 3], sizes = [1, 120], strides = [1, 1]} : vector<4x128xf32> to vector<1x120xf32>
    %597 = vector.broadcast %595 : vector<8x1xf32> to vector<8x120xf32>
    %598 = vector.broadcast %596 : vector<1x120xf32> to vector<8x120xf32>
    %599 = arith.mulf %597, %598 : vector<8x120xf32>
    %600 = arith.addf %589, %599 : vector<8x120xf32>
    %601 = vector.extract_strided_slice %458 {offsets = [2, 3], sizes = [1, 120], strides = [1, 1]} : vector<4x128xf32> to vector<1x120xf32>
    %602 = vector.broadcast %595 : vector<8x1xf32> to vector<8x120xf32>
    %603 = vector.broadcast %601 : vector<1x120xf32> to vector<8x120xf32>
    %604 = arith.mulf %602, %603 : vector<8x120xf32>
    %605 = arith.addf %594, %604 : vector<8x120xf32>
    %606 = vector.extract_strided_slice %455 {offsets = [0, 13], sizes = [8, 1], strides = [1, 1]} : vector<8x32xf32> to vector<8x1xf32>
    %607 = vector.extract_strided_slice %458 {offsets = [1, 3], sizes = [1, 120], strides = [1, 1]} : vector<4x128xf32> to vector<1x120xf32>
    %608 = vector.broadcast %606 : vector<8x1xf32> to vector<8x120xf32>
    %609 = vector.broadcast %607 : vector<1x120xf32> to vector<8x120xf32>
    %610 = arith.mulf %608, %609 : vector<8x120xf32>
    %611 = arith.addf %600, %610 : vector<8x120xf32>
    %612 = vector.extract_strided_slice %458 {offsets = [3, 3], sizes = [1, 120], strides = [1, 1]} : vector<4x128xf32> to vector<1x120xf32>
    %613 = vector.broadcast %606 : vector<8x1xf32> to vector<8x120xf32>
    %614 = vector.broadcast %612 : vector<1x120xf32> to vector<8x120xf32>
    %615 = arith.mulf %613, %614 : vector<8x120xf32>
    %616 = arith.addf %605, %615 : vector<8x120xf32>
    %617 = vector.extract_strided_slice %455 {offsets = [0, 14], sizes = [8, 1], strides = [1, 1]} : vector<8x32xf32> to vector<8x1xf32>
    %618 = vector.extract_strided_slice %458 {offsets = [2, 3], sizes = [1, 120], strides = [1, 1]} : vector<4x128xf32> to vector<1x120xf32>
    %619 = vector.broadcast %617 : vector<8x1xf32> to vector<8x120xf32>
    %620 = vector.broadcast %618 : vector<1x120xf32> to vector<8x120xf32>
    %621 = arith.mulf %619, %620 : vector<8x120xf32>
    %622 = arith.addf %611, %621 : vector<8x120xf32>
    %623 = vector.extract_strided_slice %458 {offsets = [0, 4], sizes = [1, 120], strides = [1, 1]} : vector<4x128xf32> to vector<1x120xf32>
    %624 = vector.broadcast %617 : vector<8x1xf32> to vector<8x120xf32>
    %625 = vector.broadcast %623 : vector<1x120xf32> to vector<8x120xf32>
    %626 = arith.mulf %624, %625 : vector<8x120xf32>
    %627 = arith.addf %616, %626 : vector<8x120xf32>
    %628 = vector.extract_strided_slice %455 {offsets = [0, 15], sizes = [8, 1], strides = [1, 1]} : vector<8x32xf32> to vector<8x1xf32>
    %629 = vector.extract_strided_slice %458 {offsets = [3, 3], sizes = [1, 120], strides = [1, 1]} : vector<4x128xf32> to vector<1x120xf32>
    %630 = vector.broadcast %628 : vector<8x1xf32> to vector<8x120xf32>
    %631 = vector.broadcast %629 : vector<1x120xf32> to vector<8x120xf32>
    %632 = arith.mulf %630, %631 : vector<8x120xf32>
    %633 = arith.addf %622, %632 : vector<8x120xf32>
    %634 = vector.extract_strided_slice %458 {offsets = [1, 4], sizes = [1, 120], strides = [1, 1]} : vector<4x128xf32> to vector<1x120xf32>
    %635 = vector.broadcast %628 : vector<8x1xf32> to vector<8x120xf32>
    %636 = vector.broadcast %634 : vector<1x120xf32> to vector<8x120xf32>
    %637 = arith.mulf %635, %636 : vector<8x120xf32>
    %638 = arith.addf %627, %637 : vector<8x120xf32>
    %639 = vector.extract_strided_slice %455 {offsets = [0, 16], sizes = [8, 1], strides = [1, 1]} : vector<8x32xf32> to vector<8x1xf32>
    %640 = vector.extract_strided_slice %458 {offsets = [0, 4], sizes = [1, 120], strides = [1, 1]} : vector<4x128xf32> to vector<1x120xf32>
    %641 = vector.broadcast %639 : vector<8x1xf32> to vector<8x120xf32>
    %642 = vector.broadcast %640 : vector<1x120xf32> to vector<8x120xf32>
    %643 = arith.mulf %641, %642 : vector<8x120xf32>
    %644 = arith.addf %633, %643 : vector<8x120xf32>
    %645 = vector.extract_strided_slice %458 {offsets = [2, 4], sizes = [1, 120], strides = [1, 1]} : vector<4x128xf32> to vector<1x120xf32>
    %646 = vector.broadcast %639 : vector<8x1xf32> to vector<8x120xf32>
    %647 = vector.broadcast %645 : vector<1x120xf32> to vector<8x120xf32>
    %648 = arith.mulf %646, %647 : vector<8x120xf32>
    %649 = arith.addf %638, %648 : vector<8x120xf32>
    %650 = vector.extract_strided_slice %455 {offsets = [0, 17], sizes = [8, 1], strides = [1, 1]} : vector<8x32xf32> to vector<8x1xf32>
    %651 = vector.extract_strided_slice %458 {offsets = [1, 4], sizes = [1, 120], strides = [1, 1]} : vector<4x128xf32> to vector<1x120xf32>
    %652 = vector.broadcast %650 : vector<8x1xf32> to vector<8x120xf32>
    %653 = vector.broadcast %651 : vector<1x120xf32> to vector<8x120xf32>
    %654 = arith.mulf %652, %653 : vector<8x120xf32>
    %655 = arith.addf %644, %654 : vector<8x120xf32>
    %656 = vector.extract_strided_slice %458 {offsets = [3, 4], sizes = [1, 120], strides = [1, 1]} : vector<4x128xf32> to vector<1x120xf32>
    %657 = vector.broadcast %650 : vector<8x1xf32> to vector<8x120xf32>
    %658 = vector.broadcast %656 : vector<1x120xf32> to vector<8x120xf32>
    %659 = arith.mulf %657, %658 : vector<8x120xf32>
    %660 = arith.addf %649, %659 : vector<8x120xf32>
    %661 = vector.extract_strided_slice %455 {offsets = [0, 18], sizes = [8, 1], strides = [1, 1]} : vector<8x32xf32> to vector<8x1xf32>
    %662 = vector.extract_strided_slice %458 {offsets = [2, 4], sizes = [1, 120], strides = [1, 1]} : vector<4x128xf32> to vector<1x120xf32>
    %663 = vector.broadcast %661 : vector<8x1xf32> to vector<8x120xf32>
    %664 = vector.broadcast %662 : vector<1x120xf32> to vector<8x120xf32>
    %665 = arith.mulf %663, %664 : vector<8x120xf32>
    %666 = arith.addf %655, %665 : vector<8x120xf32>
    %667 = vector.extract_strided_slice %458 {offsets = [0, 5], sizes = [1, 120], strides = [1, 1]} : vector<4x128xf32> to vector<1x120xf32>
    %668 = vector.broadcast %661 : vector<8x1xf32> to vector<8x120xf32>
    %669 = vector.broadcast %667 : vector<1x120xf32> to vector<8x120xf32>
    %670 = arith.mulf %668, %669 : vector<8x120xf32>
    %671 = arith.addf %660, %670 : vector<8x120xf32>
    %672 = vector.extract_strided_slice %455 {offsets = [0, 19], sizes = [8, 1], strides = [1, 1]} : vector<8x32xf32> to vector<8x1xf32>
    %673 = vector.extract_strided_slice %458 {offsets = [3, 4], sizes = [1, 120], strides = [1, 1]} : vector<4x128xf32> to vector<1x120xf32>
    %674 = vector.broadcast %672 : vector<8x1xf32> to vector<8x120xf32>
    %675 = vector.broadcast %673 : vector<1x120xf32> to vector<8x120xf32>
    %676 = arith.mulf %674, %675 : vector<8x120xf32>
    %677 = arith.addf %666, %676 : vector<8x120xf32>
    %678 = vector.extract_strided_slice %458 {offsets = [1, 5], sizes = [1, 120], strides = [1, 1]} : vector<4x128xf32> to vector<1x120xf32>
    %679 = vector.broadcast %672 : vector<8x1xf32> to vector<8x120xf32>
    %680 = vector.broadcast %678 : vector<1x120xf32> to vector<8x120xf32>
    %681 = arith.mulf %679, %680 : vector<8x120xf32>
    %682 = arith.addf %671, %681 : vector<8x120xf32>
    %683 = vector.extract_strided_slice %455 {offsets = [0, 20], sizes = [8, 1], strides = [1, 1]} : vector<8x32xf32> to vector<8x1xf32>
    %684 = vector.extract_strided_slice %458 {offsets = [0, 5], sizes = [1, 120], strides = [1, 1]} : vector<4x128xf32> to vector<1x120xf32>
    %685 = vector.broadcast %683 : vector<8x1xf32> to vector<8x120xf32>
    %686 = vector.broadcast %684 : vector<1x120xf32> to vector<8x120xf32>
    %687 = arith.mulf %685, %686 : vector<8x120xf32>
    %688 = arith.addf %677, %687 : vector<8x120xf32>
    %689 = vector.extract_strided_slice %458 {offsets = [2, 5], sizes = [1, 120], strides = [1, 1]} : vector<4x128xf32> to vector<1x120xf32>
    %690 = vector.broadcast %683 : vector<8x1xf32> to vector<8x120xf32>
    %691 = vector.broadcast %689 : vector<1x120xf32> to vector<8x120xf32>
    %692 = arith.mulf %690, %691 : vector<8x120xf32>
    %693 = arith.addf %682, %692 : vector<8x120xf32>
    %694 = vector.extract_strided_slice %455 {offsets = [0, 21], sizes = [8, 1], strides = [1, 1]} : vector<8x32xf32> to vector<8x1xf32>
    %695 = vector.extract_strided_slice %458 {offsets = [1, 5], sizes = [1, 120], strides = [1, 1]} : vector<4x128xf32> to vector<1x120xf32>
    %696 = vector.broadcast %694 : vector<8x1xf32> to vector<8x120xf32>
    %697 = vector.broadcast %695 : vector<1x120xf32> to vector<8x120xf32>
    %698 = arith.mulf %696, %697 : vector<8x120xf32>
    %699 = arith.addf %688, %698 : vector<8x120xf32>
    %700 = vector.extract_strided_slice %458 {offsets = [3, 5], sizes = [1, 120], strides = [1, 1]} : vector<4x128xf32> to vector<1x120xf32>
    %701 = vector.broadcast %694 : vector<8x1xf32> to vector<8x120xf32>
    %702 = vector.broadcast %700 : vector<1x120xf32> to vector<8x120xf32>
    %703 = arith.mulf %701, %702 : vector<8x120xf32>
    %704 = arith.addf %693, %703 : vector<8x120xf32>
    %705 = vector.extract_strided_slice %455 {offsets = [0, 22], sizes = [8, 1], strides = [1, 1]} : vector<8x32xf32> to vector<8x1xf32>
    %706 = vector.extract_strided_slice %458 {offsets = [2, 5], sizes = [1, 120], strides = [1, 1]} : vector<4x128xf32> to vector<1x120xf32>
    %707 = vector.broadcast %705 : vector<8x1xf32> to vector<8x120xf32>
    %708 = vector.broadcast %706 : vector<1x120xf32> to vector<8x120xf32>
    %709 = arith.mulf %707, %708 : vector<8x120xf32>
    %710 = arith.addf %699, %709 : vector<8x120xf32>
    %711 = vector.extract_strided_slice %458 {offsets = [0, 6], sizes = [1, 120], strides = [1, 1]} : vector<4x128xf32> to vector<1x120xf32>
    %712 = vector.broadcast %705 : vector<8x1xf32> to vector<8x120xf32>
    %713 = vector.broadcast %711 : vector<1x120xf32> to vector<8x120xf32>
    %714 = arith.mulf %712, %713 : vector<8x120xf32>
    %715 = arith.addf %704, %714 : vector<8x120xf32>
    %716 = vector.extract_strided_slice %455 {offsets = [0, 23], sizes = [8, 1], strides = [1, 1]} : vector<8x32xf32> to vector<8x1xf32>
    %717 = vector.extract_strided_slice %458 {offsets = [3, 5], sizes = [1, 120], strides = [1, 1]} : vector<4x128xf32> to vector<1x120xf32>
    %718 = vector.broadcast %716 : vector<8x1xf32> to vector<8x120xf32>
    %719 = vector.broadcast %717 : vector<1x120xf32> to vector<8x120xf32>
    %720 = arith.mulf %718, %719 : vector<8x120xf32>
    %721 = arith.addf %710, %720 : vector<8x120xf32>
    %722 = vector.extract_strided_slice %458 {offsets = [1, 6], sizes = [1, 120], strides = [1, 1]} : vector<4x128xf32> to vector<1x120xf32>
    %723 = vector.broadcast %716 : vector<8x1xf32> to vector<8x120xf32>
    %724 = vector.broadcast %722 : vector<1x120xf32> to vector<8x120xf32>
    %725 = arith.mulf %723, %724 : vector<8x120xf32>
    %726 = arith.addf %715, %725 : vector<8x120xf32>
    %727 = vector.extract_strided_slice %455 {offsets = [0, 24], sizes = [8, 1], strides = [1, 1]} : vector<8x32xf32> to vector<8x1xf32>
    %728 = vector.extract_strided_slice %458 {offsets = [0, 6], sizes = [1, 120], strides = [1, 1]} : vector<4x128xf32> to vector<1x120xf32>
    %729 = vector.broadcast %727 : vector<8x1xf32> to vector<8x120xf32>
    %730 = vector.broadcast %728 : vector<1x120xf32> to vector<8x120xf32>
    %731 = arith.mulf %729, %730 : vector<8x120xf32>
    %732 = arith.addf %721, %731 : vector<8x120xf32>
    %733 = vector.extract_strided_slice %458 {offsets = [2, 6], sizes = [1, 120], strides = [1, 1]} : vector<4x128xf32> to vector<1x120xf32>
    %734 = vector.broadcast %727 : vector<8x1xf32> to vector<8x120xf32>
    %735 = vector.broadcast %733 : vector<1x120xf32> to vector<8x120xf32>
    %736 = arith.mulf %734, %735 : vector<8x120xf32>
    %737 = arith.addf %726, %736 : vector<8x120xf32>
    %738 = vector.extract_strided_slice %455 {offsets = [0, 25], sizes = [8, 1], strides = [1, 1]} : vector<8x32xf32> to vector<8x1xf32>
    %739 = vector.extract_strided_slice %458 {offsets = [1, 6], sizes = [1, 120], strides = [1, 1]} : vector<4x128xf32> to vector<1x120xf32>
    %740 = vector.broadcast %738 : vector<8x1xf32> to vector<8x120xf32>
    %741 = vector.broadcast %739 : vector<1x120xf32> to vector<8x120xf32>
    %742 = arith.mulf %740, %741 : vector<8x120xf32>
    %743 = arith.addf %732, %742 : vector<8x120xf32>
    %744 = vector.extract_strided_slice %458 {offsets = [3, 6], sizes = [1, 120], strides = [1, 1]} : vector<4x128xf32> to vector<1x120xf32>
    %745 = vector.broadcast %738 : vector<8x1xf32> to vector<8x120xf32>
    %746 = vector.broadcast %744 : vector<1x120xf32> to vector<8x120xf32>
    %747 = arith.mulf %745, %746 : vector<8x120xf32>
    %748 = arith.addf %737, %747 : vector<8x120xf32>
    %749 = vector.extract_strided_slice %455 {offsets = [0, 26], sizes = [8, 1], strides = [1, 1]} : vector<8x32xf32> to vector<8x1xf32>
    %750 = vector.extract_strided_slice %458 {offsets = [2, 6], sizes = [1, 120], strides = [1, 1]} : vector<4x128xf32> to vector<1x120xf32>
    %751 = vector.broadcast %749 : vector<8x1xf32> to vector<8x120xf32>
    %752 = vector.broadcast %750 : vector<1x120xf32> to vector<8x120xf32>
    %753 = arith.mulf %751, %752 : vector<8x120xf32>
    %754 = arith.addf %743, %753 : vector<8x120xf32>
    %755 = vector.extract_strided_slice %458 {offsets = [0, 7], sizes = [1, 120], strides = [1, 1]} : vector<4x128xf32> to vector<1x120xf32>
    %756 = vector.broadcast %749 : vector<8x1xf32> to vector<8x120xf32>
    %757 = vector.broadcast %755 : vector<1x120xf32> to vector<8x120xf32>
    %758 = arith.mulf %756, %757 : vector<8x120xf32>
    %759 = arith.addf %748, %758 : vector<8x120xf32>
    %760 = vector.extract_strided_slice %455 {offsets = [0, 27], sizes = [8, 1], strides = [1, 1]} : vector<8x32xf32> to vector<8x1xf32>
    %761 = vector.extract_strided_slice %458 {offsets = [3, 6], sizes = [1, 120], strides = [1, 1]} : vector<4x128xf32> to vector<1x120xf32>
    %762 = vector.broadcast %760 : vector<8x1xf32> to vector<8x120xf32>
    %763 = vector.broadcast %761 : vector<1x120xf32> to vector<8x120xf32>
    %764 = arith.mulf %762, %763 : vector<8x120xf32>
    %765 = arith.addf %754, %764 : vector<8x120xf32>
    %766 = vector.extract_strided_slice %458 {offsets = [1, 7], sizes = [1, 120], strides = [1, 1]} : vector<4x128xf32> to vector<1x120xf32>
    %767 = vector.broadcast %760 : vector<8x1xf32> to vector<8x120xf32>
    %768 = vector.broadcast %766 : vector<1x120xf32> to vector<8x120xf32>
    %769 = arith.mulf %767, %768 : vector<8x120xf32>
    %770 = arith.addf %759, %769 : vector<8x120xf32>
    %771 = vector.extract_strided_slice %455 {offsets = [0, 28], sizes = [8, 1], strides = [1, 1]} : vector<8x32xf32> to vector<8x1xf32>
    %772 = vector.extract_strided_slice %458 {offsets = [0, 7], sizes = [1, 120], strides = [1, 1]} : vector<4x128xf32> to vector<1x120xf32>
    %773 = vector.broadcast %771 : vector<8x1xf32> to vector<8x120xf32>
    %774 = vector.broadcast %772 : vector<1x120xf32> to vector<8x120xf32>
    %775 = arith.mulf %773, %774 : vector<8x120xf32>
    %776 = arith.addf %765, %775 : vector<8x120xf32>
    %777 = vector.extract_strided_slice %458 {offsets = [2, 7], sizes = [1, 120], strides = [1, 1]} : vector<4x128xf32> to vector<1x120xf32>
    %778 = vector.broadcast %771 : vector<8x1xf32> to vector<8x120xf32>
    %779 = vector.broadcast %777 : vector<1x120xf32> to vector<8x120xf32>
    %780 = arith.mulf %778, %779 : vector<8x120xf32>
    %781 = arith.addf %770, %780 : vector<8x120xf32>
    %782 = vector.extract_strided_slice %455 {offsets = [0, 29], sizes = [8, 1], strides = [1, 1]} : vector<8x32xf32> to vector<8x1xf32>
    %783 = vector.extract_strided_slice %458 {offsets = [1, 7], sizes = [1, 120], strides = [1, 1]} : vector<4x128xf32> to vector<1x120xf32>
    %784 = vector.broadcast %782 : vector<8x1xf32> to vector<8x120xf32>
    %785 = vector.broadcast %783 : vector<1x120xf32> to vector<8x120xf32>
    %786 = arith.mulf %784, %785 : vector<8x120xf32>
    %787 = arith.addf %776, %786 : vector<8x120xf32>
    %788 = vector.extract_strided_slice %458 {offsets = [3, 7], sizes = [1, 120], strides = [1, 1]} : vector<4x128xf32> to vector<1x120xf32>
    %789 = vector.broadcast %782 : vector<8x1xf32> to vector<8x120xf32>
    %790 = vector.broadcast %788 : vector<1x120xf32> to vector<8x120xf32>
    %791 = arith.mulf %789, %790 : vector<8x120xf32>
    %792 = arith.addf %781, %791 : vector<8x120xf32>
    %793 = vector.extract_strided_slice %455 {offsets = [0, 30], sizes = [8, 1], strides = [1, 1]} : vector<8x32xf32> to vector<8x1xf32>
    %794 = vector.extract_strided_slice %458 {offsets = [2, 7], sizes = [1, 120], strides = [1, 1]} : vector<4x128xf32> to vector<1x120xf32>
    %795 = vector.broadcast %793 : vector<8x1xf32> to vector<8x120xf32>
    %796 = vector.broadcast %794 : vector<1x120xf32> to vector<8x120xf32>
    %797 = arith.mulf %795, %796 : vector<8x120xf32>
    %798 = arith.addf %787, %797 : vector<8x120xf32>
    %799 = vector.extract_strided_slice %458 {offsets = [0, 8], sizes = [1, 120], strides = [1, 1]} : vector<4x128xf32> to vector<1x120xf32>
    %800 = vector.broadcast %793 : vector<8x1xf32> to vector<8x120xf32>
    %801 = vector.broadcast %799 : vector<1x120xf32> to vector<8x120xf32>
    %802 = arith.mulf %800, %801 : vector<8x120xf32>
    %803 = arith.addf %792, %802 : vector<8x120xf32>
    %804 = vector.extract_strided_slice %455 {offsets = [0, 31], sizes = [8, 1], strides = [1, 1]} : vector<8x32xf32> to vector<8x1xf32>
    %805 = vector.extract_strided_slice %458 {offsets = [3, 7], sizes = [1, 120], strides = [1, 1]} : vector<4x128xf32> to vector<1x120xf32>
    %806 = vector.broadcast %804 : vector<8x1xf32> to vector<8x120xf32>
    %807 = vector.broadcast %805 : vector<1x120xf32> to vector<8x120xf32>
    %808 = arith.mulf %806, %807 : vector<8x120xf32>
    %809 = arith.addf %798, %808 : vector<8x120xf32>
    %810 = vector.extract_strided_slice %458 {offsets = [1, 8], sizes = [1, 120], strides = [1, 1]} : vector<4x128xf32> to vector<1x120xf32>
    %811 = vector.broadcast %804 : vector<8x1xf32> to vector<8x120xf32>
    %812 = vector.broadcast %810 : vector<1x120xf32> to vector<8x120xf32>
    %813 = arith.mulf %811, %812 : vector<8x120xf32>
    %814 = arith.addf %803, %813 : vector<8x120xf32>
    %815 = arith.maximumf %809, %814 : vector<8x120xf32>
    %cst_83 = arith.constant 0.000000e+00 : f32
    %816 = vector.broadcast %cst_83 : f32 to vector<8x120xf32>
    %817 = arith.maximumf %815, %816 : vector<8x120xf32>
    %c0_84 = arith.constant 0 : index
    %c0_85 = arith.constant 0 : index
    %818 = vector.load %arg3[%c0_84, %c0_85] : memref<16x128xf32, #tpu.memory_space<vmem>>, vector<16x128xf32>
    %c0_86 = arith.constant 0 : index
    %c0_87 = arith.constant 0 : index
    %819 = vector.load %arg4[%c0_86, %c0_87] : memref<16x1xf32, #tpu.memory_space<vmem>>, vector<16x1xf32>
    %820 = vector.extract_strided_slice %817 {offsets = [0, 0], sizes = [8, 103], strides = [1, 1]} : vector<8x120xf32> to vector<8x103xf32>
    %c0_88 = arith.constant 0 : index
    %c0_89 = arith.constant 0 : index
    %821 = vector.load %arg18[%c0_88, %c0_89] : memref<128x128xf32, #tpu.memory_space<vmem>>, vector<8x103xf32>
    tpu.vector_store %arg18[%c0_88, %c0_89], %820 {strides = array<i32>} : memref<128x128xf32, #tpu.memory_space<vmem>>, vector<8x103xf32>,
    %822 = vector.extract_strided_slice %817 {offsets = [0, 1], sizes = [8, 103], strides = [1, 1]} : vector<8x120xf32> to vector<8x103xf32>
    %c8_90 = arith.constant 8 : index
    %c0_91 = arith.constant 0 : index
    %823 = vector.load %arg18[%c8_90, %c0_91] : memref<128x128xf32, #tpu.memory_space<vmem>>, vector<8x103xf32>
    tpu.vector_store %arg18[%c8_90, %c0_91], %822 {strides = array<i32>} : memref<128x128xf32, #tpu.memory_space<vmem>>, vector<8x103xf32>,
    %824 = vector.extract_strided_slice %817 {offsets = [0, 2], sizes = [8, 103], strides = [1, 1]} : vector<8x120xf32> to vector<8x103xf32>
    %c16_92 = arith.constant 16 : index
    %c0_93 = arith.constant 0 : index
    %825 = vector.load %arg18[%c16_92, %c0_93] : memref<128x128xf32, #tpu.memory_space<vmem>>, vector<8x103xf32>
    tpu.vector_store %arg18[%c16_92, %c0_93], %824 {strides = array<i32>} : memref<128x128xf32, #tpu.memory_space<vmem>>, vector<8x103xf32>,
    %826 = vector.extract_strided_slice %817 {offsets = [0, 3], sizes = [8, 103], strides = [1, 1]} : vector<8x120xf32> to vector<8x103xf32>
    %c24_94 = arith.constant 24 : index
    %c0_95 = arith.constant 0 : index
    %827 = vector.load %arg18[%c24_94, %c0_95] : memref<128x128xf32, #tpu.memory_space<vmem>>, vector<8x103xf32>
    tpu.vector_store %arg18[%c24_94, %c0_95], %826 {strides = array<i32>} : memref<128x128xf32, #tpu.memory_space<vmem>>, vector<8x103xf32>,
    %828 = vector.extract_strided_slice %817 {offsets = [0, 4], sizes = [8, 103], strides = [1, 1]} : vector<8x120xf32> to vector<8x103xf32>
    %c32_96 = arith.constant 32 : index
    %c0_97 = arith.constant 0 : index
    %829 = vector.load %arg18[%c32_96, %c0_97] : memref<128x128xf32, #tpu.memory_space<vmem>>, vector<8x103xf32>
    tpu.vector_store %arg18[%c32_96, %c0_97], %828 {strides = array<i32>} : memref<128x128xf32, #tpu.memory_space<vmem>>, vector<8x103xf32>,
    %830 = vector.extract_strided_slice %817 {offsets = [0, 5], sizes = [8, 103], strides = [1, 1]} : vector<8x120xf32> to vector<8x103xf32>
    %c40_98 = arith.constant 40 : index
    %c0_99 = arith.constant 0 : index
    %831 = vector.load %arg18[%c40_98, %c0_99] : memref<128x128xf32, #tpu.memory_space<vmem>>, vector<8x103xf32>
    tpu.vector_store %arg18[%c40_98, %c0_99], %830 {strides = array<i32>} : memref<128x128xf32, #tpu.memory_space<vmem>>, vector<8x103xf32>,
    %832 = vector.extract_strided_slice %817 {offsets = [0, 6], sizes = [8, 103], strides = [1, 1]} : vector<8x120xf32> to vector<8x103xf32>
    %c48_100 = arith.constant 48 : index
    %c0_101 = arith.constant 0 : index
    %833 = vector.load %arg18[%c48_100, %c0_101] : memref<128x128xf32, #tpu.memory_space<vmem>>, vector<8x103xf32>
    tpu.vector_store %arg18[%c48_100, %c0_101], %832 {strides = array<i32>} : memref<128x128xf32, #tpu.memory_space<vmem>>, vector<8x103xf32>,
    %834 = vector.extract_strided_slice %817 {offsets = [0, 7], sizes = [8, 103], strides = [1, 1]} : vector<8x120xf32> to vector<8x103xf32>
    %c56_102 = arith.constant 56 : index
    %c0_103 = arith.constant 0 : index
    %835 = vector.load %arg18[%c56_102, %c0_103] : memref<128x128xf32, #tpu.memory_space<vmem>>, vector<8x103xf32>
    tpu.vector_store %arg18[%c56_102, %c0_103], %834 {strides = array<i32>} : memref<128x128xf32, #tpu.memory_space<vmem>>, vector<8x103xf32>,
    %836 = vector.extract_strided_slice %817 {offsets = [0, 8], sizes = [8, 103], strides = [1, 1]} : vector<8x120xf32> to vector<8x103xf32>
    %c64_104 = arith.constant 64 : index
    %c0_105 = arith.constant 0 : index
    %837 = vector.load %arg18[%c64_104, %c0_105] : memref<128x128xf32, #tpu.memory_space<vmem>>, vector<8x103xf32>
    tpu.vector_store %arg18[%c64_104, %c0_105], %836 {strides = array<i32>} : memref<128x128xf32, #tpu.memory_space<vmem>>, vector<8x103xf32>,
    %838 = vector.extract_strided_slice %817 {offsets = [0, 9], sizes = [8, 103], strides = [1, 1]} : vector<8x120xf32> to vector<8x103xf32>
    %c72_106 = arith.constant 72 : index
    %c0_107 = arith.constant 0 : index
    %839 = vector.load %arg18[%c72_106, %c0_107] : memref<128x128xf32, #tpu.memory_space<vmem>>, vector<8x103xf32>
    tpu.vector_store %arg18[%c72_106, %c0_107], %838 {strides = array<i32>} : memref<128x128xf32, #tpu.memory_space<vmem>>, vector<8x103xf32>,
    %840 = vector.extract_strided_slice %817 {offsets = [0, 10], sizes = [8, 103], strides = [1, 1]} : vector<8x120xf32> to vector<8x103xf32>
    %c80_108 = arith.constant 80 : index
    %c0_109 = arith.constant 0 : index
    %841 = vector.load %arg18[%c80_108, %c0_109] : memref<128x128xf32, #tpu.memory_space<vmem>>, vector<8x103xf32>
    tpu.vector_store %arg18[%c80_108, %c0_109], %840 {strides = array<i32>} : memref<128x128xf32, #tpu.memory_space<vmem>>, vector<8x103xf32>,
    %842 = vector.extract_strided_slice %817 {offsets = [0, 11], sizes = [8, 103], strides = [1, 1]} : vector<8x120xf32> to vector<8x103xf32>
    %c88_110 = arith.constant 88 : index
    %c0_111 = arith.constant 0 : index
    %843 = vector.load %arg18[%c88_110, %c0_111] : memref<128x128xf32, #tpu.memory_space<vmem>>, vector<8x103xf32>
    tpu.vector_store %arg18[%c88_110, %c0_111], %842 {strides = array<i32>} : memref<128x128xf32, #tpu.memory_space<vmem>>, vector<8x103xf32>,
    %844 = vector.extract_strided_slice %817 {offsets = [0, 12], sizes = [8, 103], strides = [1, 1]} : vector<8x120xf32> to vector<8x103xf32>
    %c96_112 = arith.constant 96 : index
    %c0_113 = arith.constant 0 : index
    %845 = vector.load %arg18[%c96_112, %c0_113] : memref<128x128xf32, #tpu.memory_space<vmem>>, vector<8x103xf32>
    tpu.vector_store %arg18[%c96_112, %c0_113], %844 {strides = array<i32>} : memref<128x128xf32, #tpu.memory_space<vmem>>, vector<8x103xf32>,
    %846 = vector.extract_strided_slice %817 {offsets = [0, 13], sizes = [8, 103], strides = [1, 1]} : vector<8x120xf32> to vector<8x103xf32>
    %c104_114 = arith.constant 104 : index
    %c0_115 = arith.constant 0 : index
    %847 = vector.load %arg18[%c104_114, %c0_115] : memref<128x128xf32, #tpu.memory_space<vmem>>, vector<8x103xf32>
    tpu.vector_store %arg18[%c104_114, %c0_115], %846 {strides = array<i32>} : memref<128x128xf32, #tpu.memory_space<vmem>>, vector<8x103xf32>,
    %848 = vector.extract_strided_slice %817 {offsets = [0, 14], sizes = [8, 103], strides = [1, 1]} : vector<8x120xf32> to vector<8x103xf32>
    %c112_116 = arith.constant 112 : index
    %c0_117 = arith.constant 0 : index
    %849 = vector.load %arg18[%c112_116, %c0_117] : memref<128x128xf32, #tpu.memory_space<vmem>>, vector<8x103xf32>
    tpu.vector_store %arg18[%c112_116, %c0_117], %848 {strides = array<i32>} : memref<128x128xf32, #tpu.memory_space<vmem>>, vector<8x103xf32>,
    %850 = vector.extract_strided_slice %817 {offsets = [0, 15], sizes = [8, 103], strides = [1, 1]} : vector<8x120xf32> to vector<8x103xf32>
    %c120_118 = arith.constant 120 : index
    %c0_119 = arith.constant 0 : index
    %851 = vector.load %arg18[%c120_118, %c0_119] : memref<128x128xf32, #tpu.memory_space<vmem>>, vector<8x103xf32>
    tpu.vector_store %arg18[%c120_118, %c0_119], %850 {strides = array<i32>} : memref<128x128xf32, #tpu.memory_space<vmem>>, vector<8x103xf32>,
    %c0_120 = arith.constant 0 : index
    %c0_121 = arith.constant 0 : index
    %852 = vector.load %arg18[%c0_120, %c0_121] : memref<128x128xf32, #tpu.memory_space<vmem>>, vector<128x103xf32>
    %cst_122 = arith.constant dense<0.000000e+00> : vector<16x103xf32>
    %853 = tpu.matmul %818, %852, %cst_122 {dimension_numbers = #tpu.dot_dimension_numbers<[1], [0], [0], [1], [0, 0, 1, 1], [], []>} : vector<16x128xf32>, vector<128x103xf32>, vector<16x103xf32> -> vector<16x103xf32>
    %854 = vector.broadcast %819 : vector<16x1xf32> to vector<16x103xf32>
    %855 = arith.addf %853, %854 : vector<16x103xf32>
    %cst_123 = arith.constant 0.000000e+00 : f32
    %856 = vector.broadcast %cst_123 : f32 to vector<16x103xf32>
    %857 = arith.maximumf %855, %856 : vector<16x103xf32>
    %858 = vector.extract_strided_slice %857 {offsets = [0, 0], sizes = [16, 101], strides = [1, 1]} : vector<16x103xf32> to vector<16x101xf32>
    %859 = vector.extract_strided_slice %857 {offsets = [0, 2], sizes = [16, 101], strides = [1, 1]} : vector<16x103xf32> to vector<16x101xf32>
    %860 = arith.maximumf %858, %859 : vector<16x101xf32>
    %c0_124 = arith.constant 0 : index
    %c0_125 = arith.constant 0 : index
    %861 = vector.load %arg9[%c0_124, %c0_125] : memref<101x26xf32, #tpu.memory_space<vmem>>, vector<101x26xf32>
    %cst_126 = arith.constant dense<0.000000e+00> : vector<16x26xf32>
    %862 = tpu.matmul %860, %861, %cst_126 {dimension_numbers = #tpu.dot_dimension_numbers<[1], [0], [0], [1], [0, 0, 1, 1], [], []>, precision = #tpu.contract_precision<fp32>} : vector<16x101xf32>, vector<101x26xf32>, vector<16x26xf32> -> vector<16x26xf32>
    %c0_127 = arith.constant 0 : index
    %c0_128 = arith.constant 0 : index
    %863 = vector.load %arg5[%c0_127, %c0_128] : memref<32x128xf32, #tpu.memory_space<vmem>>, vector<32x128xf32>
    %c0_129 = arith.constant 0 : index
    %c0_130 = arith.constant 0 : index
    %864 = vector.load %arg6[%c0_129, %c0_130] : memref<32x1xf32, #tpu.memory_space<vmem>>, vector<32x1xf32>
    %865 = vector.extract_strided_slice %862 {offsets = [0, 0], sizes = [16, 19], strides = [1, 1]} : vector<16x26xf32> to vector<16x19xf32>
    %c0_131 = arith.constant 0 : index
    %c0_132 = arith.constant 0 : index
    %866 = vector.load %arg18[%c0_131, %c0_132] : memref<128x128xf32, #tpu.memory_space<vmem>>, vector<16x19xf32>
    tpu.vector_store %arg18[%c0_131, %c0_132], %865 {strides = array<i32>} : memref<128x128xf32, #tpu.memory_space<vmem>>, vector<16x19xf32>,
    %867 = vector.extract_strided_slice %862 {offsets = [0, 1], sizes = [16, 19], strides = [1, 1]} : vector<16x26xf32> to vector<16x19xf32>
    %c16_133 = arith.constant 16 : index
    %c0_134 = arith.constant 0 : index
    %868 = vector.load %arg18[%c16_133, %c0_134] : memref<128x128xf32, #tpu.memory_space<vmem>>, vector<16x19xf32>
    tpu.vector_store %arg18[%c16_133, %c0_134], %867 {strides = array<i32>} : memref<128x128xf32, #tpu.memory_space<vmem>>, vector<16x19xf32>,
    %869 = vector.extract_strided_slice %862 {offsets = [0, 2], sizes = [16, 19], strides = [1, 1]} : vector<16x26xf32> to vector<16x19xf32>
    %c32_135 = arith.constant 32 : index
    %c0_136 = arith.constant 0 : index
    %870 = vector.load %arg18[%c32_135, %c0_136] : memref<128x128xf32, #tpu.memory_space<vmem>>, vector<16x19xf32>
    tpu.vector_store %arg18[%c32_135, %c0_136], %869 {strides = array<i32>} : memref<128x128xf32, #tpu.memory_space<vmem>>, vector<16x19xf32>,
    %871 = vector.extract_strided_slice %862 {offsets = [0, 3], sizes = [16, 19], strides = [1, 1]} : vector<16x26xf32> to vector<16x19xf32>
    %c48_137 = arith.constant 48 : index
    %c0_138 = arith.constant 0 : index
    %872 = vector.load %arg18[%c48_137, %c0_138] : memref<128x128xf32, #tpu.memory_space<vmem>>, vector<16x19xf32>
    tpu.vector_store %arg18[%c48_137, %c0_138], %871 {strides = array<i32>} : memref<128x128xf32, #tpu.memory_space<vmem>>, vector<16x19xf32>,
    %873 = vector.extract_strided_slice %862 {offsets = [0, 4], sizes = [16, 19], strides = [1, 1]} : vector<16x26xf32> to vector<16x19xf32>
    %c64_139 = arith.constant 64 : index
    %c0_140 = arith.constant 0 : index
    %874 = vector.load %arg18[%c64_139, %c0_140] : memref<128x128xf32, #tpu.memory_space<vmem>>, vector<16x19xf32>
    tpu.vector_store %arg18[%c64_139, %c0_140], %873 {strides = array<i32>} : memref<128x128xf32, #tpu.memory_space<vmem>>, vector<16x19xf32>,
    %875 = vector.extract_strided_slice %862 {offsets = [0, 5], sizes = [16, 19], strides = [1, 1]} : vector<16x26xf32> to vector<16x19xf32>
    %c80_141 = arith.constant 80 : index
    %c0_142 = arith.constant 0 : index
    %876 = vector.load %arg18[%c80_141, %c0_142] : memref<128x128xf32, #tpu.memory_space<vmem>>, vector<16x19xf32>
    tpu.vector_store %arg18[%c80_141, %c0_142], %875 {strides = array<i32>} : memref<128x128xf32, #tpu.memory_space<vmem>>, vector<16x19xf32>,
    %877 = vector.extract_strided_slice %862 {offsets = [0, 6], sizes = [16, 19], strides = [1, 1]} : vector<16x26xf32> to vector<16x19xf32>
    %c96_143 = arith.constant 96 : index
    %c0_144 = arith.constant 0 : index
    %878 = vector.load %arg18[%c96_143, %c0_144] : memref<128x128xf32, #tpu.memory_space<vmem>>, vector<16x19xf32>
    tpu.vector_store %arg18[%c96_143, %c0_144], %877 {strides = array<i32>} : memref<128x128xf32, #tpu.memory_space<vmem>>, vector<16x19xf32>,
    %879 = vector.extract_strided_slice %862 {offsets = [0, 7], sizes = [16, 19], strides = [1, 1]} : vector<16x26xf32> to vector<16x19xf32>
    %c112_145 = arith.constant 112 : index
    %c0_146 = arith.constant 0 : index
    %880 = vector.load %arg18[%c112_145, %c0_146] : memref<128x128xf32, #tpu.memory_space<vmem>>, vector<16x19xf32>
    tpu.vector_store %arg18[%c112_145, %c0_146], %879 {strides = array<i32>} : memref<128x128xf32, #tpu.memory_space<vmem>>, vector<16x19xf32>,
    %c0_147 = arith.constant 0 : index
    %c0_148 = arith.constant 0 : index
    %881 = vector.load %arg18[%c0_147, %c0_148] : memref<128x128xf32, #tpu.memory_space<vmem>>, vector<128x19xf32>
    %cst_149 = arith.constant dense<0.000000e+00> : vector<32x19xf32>
    %882 = tpu.matmul %863, %881, %cst_149 {dimension_numbers = #tpu.dot_dimension_numbers<[1], [0], [0], [1], [0, 0, 1, 1], [], []>} : vector<32x128xf32>, vector<128x19xf32>, vector<32x19xf32> -> vector<32x19xf32>
    %883 = vector.broadcast %864 : vector<32x1xf32> to vector<32x19xf32>
    %884 = arith.addf %882, %883 : vector<32x19xf32>
    %cst_150 = arith.constant 0.000000e+00 : f32
    %885 = vector.broadcast %cst_150 : f32 to vector<32x19xf32>
    %886 = arith.maximumf %884, %885 : vector<32x19xf32>
    %887 = vector.extract_strided_slice %886 {offsets = [0, 0], sizes = [32, 17], strides = [1, 1]} : vector<32x19xf32> to vector<32x17xf32>
    %888 = vector.extract_strided_slice %886 {offsets = [0, 2], sizes = [32, 17], strides = [1, 1]} : vector<32x19xf32> to vector<32x17xf32>
    %889 = arith.maximumf %887, %888 : vector<32x17xf32>
    %c0_151 = arith.constant 0 : index
    %c0_152 = arith.constant 0 : index
    %890 = vector.load %arg10[%c0_151, %c0_152] : memref<17x5xf32, #tpu.memory_space<vmem>>, vector<17x5xf32>
    %cst_153 = arith.constant dense<0.000000e+00> : vector<32x5xf32>
    %891 = tpu.matmul %889, %890, %cst_153 {dimension_numbers = #tpu.dot_dimension_numbers<[1], [0], [0], [1], [0, 0, 1, 1], [], []>, precision = #tpu.contract_precision<fp32>} : vector<32x17xf32>, vector<17x5xf32>, vector<32x5xf32> -> vector<32x5xf32>
    %c0_154 = arith.constant 0 : index
    %c0_155 = arith.constant 0 : index
    %892 = vector.load %arg7[%c0_154, %c0_155] : memref<32x96xf32, #tpu.memory_space<vmem>>, vector<32x96xf32>
    %c0_156 = arith.constant 0 : index
    %c0_157 = arith.constant 0 : index
    %893 = vector.load %arg8[%c0_156, %c0_157] : memref<32x1xf32, #tpu.memory_space<vmem>>, vector<32x1xf32>
    %894 = vector.extract_strided_slice %891 {offsets = [0, 0], sizes = [32, 3], strides = [1, 1]} : vector<32x5xf32> to vector<32x3xf32>
    %c0_158 = arith.constant 0 : index
    %c0_159 = arith.constant 0 : index
    %895 = vector.load %arg18[%c0_158, %c0_159] : memref<128x128xf32, #tpu.memory_space<vmem>>, vector<32x3xf32>
    tpu.vector_store %arg18[%c0_158, %c0_159], %894 {strides = array<i32>} : memref<128x128xf32, #tpu.memory_space<vmem>>, vector<32x3xf32>,
    %896 = vector.extract_strided_slice %891 {offsets = [0, 1], sizes = [32, 3], strides = [1, 1]} : vector<32x5xf32> to vector<32x3xf32>
    %c32_160 = arith.constant 32 : index
    %c0_161 = arith.constant 0 : index
    %897 = vector.load %arg18[%c32_160, %c0_161] : memref<128x128xf32, #tpu.memory_space<vmem>>, vector<32x3xf32>
    tpu.vector_store %arg18[%c32_160, %c0_161], %896 {strides = array<i32>} : memref<128x128xf32, #tpu.memory_space<vmem>>, vector<32x3xf32>,
    %898 = vector.extract_strided_slice %891 {offsets = [0, 2], sizes = [32, 3], strides = [1, 1]} : vector<32x5xf32> to vector<32x3xf32>
    %c64_162 = arith.constant 64 : index
    %c0_163 = arith.constant 0 : index
    %899 = vector.load %arg18[%c64_162, %c0_163] : memref<128x128xf32, #tpu.memory_space<vmem>>, vector<32x3xf32>
    tpu.vector_store %arg18[%c64_162, %c0_163], %898 {strides = array<i32>} : memref<128x128xf32, #tpu.memory_space<vmem>>, vector<32x3xf32>,
    %c0_164 = arith.constant 0 : index
    %c0_165 = arith.constant 0 : index
    %900 = vector.load %arg18[%c0_164, %c0_165] : memref<128x128xf32, #tpu.memory_space<vmem>>, vector<96x3xf32>
    %cst_166 = arith.constant dense<0.000000e+00> : vector<32x3xf32>
    %901 = tpu.matmul %892, %900, %cst_166 {dimension_numbers = #tpu.dot_dimension_numbers<[1], [0], [0], [1], [0, 0, 1, 1], [], []>} : vector<32x96xf32>, vector<96x3xf32>, vector<32x3xf32> -> vector<32x3xf32>
    %902 = vector.broadcast %893 : vector<32x1xf32> to vector<32x3xf32>
    %903 = arith.addf %901, %902 : vector<32x3xf32>
    %cst_167 = arith.constant 0.000000e+00 : f32
    %904 = vector.broadcast %cst_167 : f32 to vector<32x3xf32>
    %905 = arith.maximumf %903, %904 : vector<32x3xf32>
    %906 = vector.extract_strided_slice %905 {offsets = [0, 0], sizes = [32, 1], strides = [1, 1]} : vector<32x3xf32> to vector<32x1xf32>
    %907 = vector.extract_strided_slice %905 {offsets = [0, 2], sizes = [32, 1], strides = [1, 1]} : vector<32x3xf32> to vector<32x1xf32>
    %908 = arith.maximumf %906, %907 : vector<32x1xf32>
    %c0_168 = arith.constant 0 : index
    %c1_169 = arith.constant 1 : index
    %909 = vector.load %arg19[%c0_168, %c1_169] : memref<32x2xf32, #tpu.memory_space<vmem>>, vector<32x1xf32>
    tpu.vector_store %arg19[%c0_168, %c1_169], %908 {strides = array<i32>} : memref<32x2xf32, #tpu.memory_space<vmem>>, vector<32x1xf32>,
    %c0_170 = arith.constant 0 : index
    %c0_171 = arith.constant 0 : index
    %910 = vector.load %arg11[%c0_170, %c0_171] : memref<32x32xf32, #tpu.memory_space<vmem>>, vector<32x32xf32>
    %c0_172 = arith.constant 0 : index
    %c0_173 = arith.constant 0 : index
    %911 = vector.load %arg12[%c0_172, %c0_173] : memref<32x1xf32, #tpu.memory_space<vmem>>, vector<32x1xf32>
    %c0_174 = arith.constant 0 : index
    %c0_175 = arith.constant 0 : index
    %912 = vector.load %arg13[%c0_174, %c0_175] : memref<32x32xf32, #tpu.memory_space<vmem>>, vector<32x32xf32>
    %c0_176 = arith.constant 0 : index
    %c0_177 = arith.constant 0 : index
    %913 = vector.load %arg14[%c0_176, %c0_177] : memref<32x1xf32, #tpu.memory_space<vmem>>, vector<32x1xf32>
    %c0_178 = arith.constant 0 : index
    %c0_179 = arith.constant 0 : index
    %914 = vector.load %arg15[%c0_178, %c0_179] : memref<4x32xf32, #tpu.memory_space<vmem>>, vector<4x32xf32>
    %c0_180 = arith.constant 0 : index
    %c0_181 = arith.constant 0 : index
    %915 = vector.load %arg16[%c0_180, %c0_181] : memref<4x1xf32, #tpu.memory_space<vmem>>, vector<4x1xf32>
    %c0_182 = arith.constant 0 : index
    %c0_183 = arith.constant 0 : index
    %916 = vector.load %arg19[%c0_182, %c0_183] : memref<32x2xf32, #tpu.memory_space<vmem>>, vector<32x2xf32>
    %cst_184 = arith.constant dense<0.000000e+00> : vector<32x2xf32>
    %917 = tpu.matmul %910, %916, %cst_184 {dimension_numbers = #tpu.dot_dimension_numbers<[1], [0], [0], [1], [0, 0, 1, 1], [], []>} : vector<32x32xf32>, vector<32x2xf32>, vector<32x2xf32> -> vector<32x2xf32>
    %918 = vector.broadcast %911 : vector<32x1xf32> to vector<32x2xf32>
    %919 = arith.addf %917, %918 : vector<32x2xf32>
    %cst_185 = arith.constant 0.000000e+00 : f32
    %920 = vector.broadcast %cst_185 : f32 to vector<32x2xf32>
    %921 = arith.maximumf %919, %920 : vector<32x2xf32>
    %cst_186 = arith.constant dense<0.000000e+00> : vector<32x2xf32>
    %922 = tpu.matmul %912, %921, %cst_186 {dimension_numbers = #tpu.dot_dimension_numbers<[1], [0], [0], [1], [0, 0, 1, 1], [], []>} : vector<32x32xf32>, vector<32x2xf32>, vector<32x2xf32> -> vector<32x2xf32>
    %923 = vector.broadcast %913 : vector<32x1xf32> to vector<32x2xf32>
    %924 = arith.addf %922, %923 : vector<32x2xf32>
    %cst_187 = arith.constant 0.000000e+00 : f32
    %925 = vector.broadcast %cst_187 : f32 to vector<32x2xf32>
    %926 = arith.maximumf %924, %925 : vector<32x2xf32>
    %cst_188 = arith.constant dense<0.000000e+00> : vector<4x2xf32>
    %927 = tpu.matmul %914, %926, %cst_188 {dimension_numbers = #tpu.dot_dimension_numbers<[1], [0], [0], [1], [0, 0, 1, 1], [], []>} : vector<4x32xf32>, vector<32x2xf32>, vector<4x2xf32> -> vector<4x2xf32>
    %928 = vector.broadcast %915 : vector<4x1xf32> to vector<4x2xf32>
    %929 = arith.addf %927, %928 : vector<4x2xf32>
    %c0_189 = arith.constant 0 : index
    %c0_190 = arith.constant 0 : index
    %930 = vector.load %arg17[%c0_189, %c0_190] : memref<4x2xf32, #tpu.memory_space<vmem>>, vector<4x2xf32>
    tpu.vector_store %arg17[%c0_189, %c0_190], %929 {strides = array<i32>} : memref<4x2xf32, #tpu.memory_space<vmem>>, vector<4x2xf32>,
    return
  }
}

</mosaic_0001>

<llo_original>
// kernel: uda_forward.1
$region0: #{uda_forward.1}
  #allocation0 [shape = 'u32[]', space=smem, size = 0x4, offset = 0x4, fixed_abs, tag = 'smem constant byte address 0x4 - core index']
  #allocation1 [shape = 'u32[72,128]{1,0:T(1,128)}', space=vmem, size = 0x9000, scoped, tag = 'internal scratch']
  #allocation2 [shape = 'f32[128,128]{1,0:T(8,128)}', space=vmem, size = 0x10000, scoped, tag = 'scratch operand']
  #allocation3 [shape = 'f32[32,2]{1,0:T(8,128)}', space=vmem, size = 0x4000, scoped, tag = 'scratch operand']
  %s0 = inlined_call_operand.vmem [shape: f32[2,4,128], index: 0, kind: input, shape index: {}]
  %s1 = inlined_call_operand.vmem [shape: f32[8,32], index: 1, kind: input, shape index: {}]
  %s2 = inlined_call_operand.vmem [shape: f32[8,1], index: 2, kind: input, shape index: {}]
  %s3 = inlined_call_operand.vmem [shape: f32[16,128], index: 3, kind: input, shape index: {}]
  %s4 = inlined_call_operand.vmem [shape: f32[16,1], index: 4, kind: input, shape index: {}]
  %s5 = inlined_call_operand.vmem [shape: f32[32,128], index: 5, kind: input, shape index: {}]
  %s6 = inlined_call_operand.vmem [shape: f32[32,1], index: 6, kind: input, shape index: {}]
  %s7 = inlined_call_operand.vmem [shape: f32[32,96], index: 7, kind: input, shape index: {}]
  %s8 = inlined_call_operand.vmem [shape: f32[32,1], index: 8, kind: input, shape index: {}]
  %s9 = inlined_call_operand.vmem [shape: f32[101,26], index: 9, kind: input, shape index: {}]
  %s10 = inlined_call_operand.vmem [shape: f32[17,5], index: 10, kind: input, shape index: {}]
  %s11 = inlined_call_operand.vmem [shape: f32[32,32], index: 11, kind: input, shape index: {}]
  %s12 = inlined_call_operand.vmem [shape: f32[32,1], index: 12, kind: input, shape index: {}]
  %s13 = inlined_call_operand.vmem [shape: f32[32,32], index: 13, kind: input, shape index: {}]
  %s14 = inlined_call_operand.vmem [shape: f32[32,1], index: 14, kind: input, shape index: {}]
  %s15 = inlined_call_operand.vmem [shape: f32[4,32], index: 15, kind: input, shape index: {}]
  %s16 = inlined_call_operand.vmem [shape: f32[4,1], index: 16, kind: input, shape index: {}]
  %s17 = inlined_call_operand.vmem [shape: f32[4,2], index: 17, kind: output, shape index: {}]
  %s18 = sld [smem:[#allocation0]]
  $region78: #{uda_forward.1} parent=0
    _
  %s20 = ssub.s32 1, %s18
  %s21 = scalar_select 0, %s20, %s18
  // Predicated region
  $region2: #{uda_forward.1} parent=0 // pred_check
    _
  $region3: #{uda_forward.1} parent=0 // pred_check_branch
    %23 = sbr.rel (0) target = $region5
  $region4: #{uda_forward.1} parent=0 // pred_region
    _
  $region5: #{uda_forward.1} parent=0 // pred_fallthru
    _
  // Predicated region
  $region6: #{uda_forward.1} parent=0 // pred_check
    _
  $region7: #{uda_forward.1} parent=0 // pred_check_branch
    %25 = sbr.rel (0) target = $region9
  $region8: #{uda_forward.1} parent=0 // pred_region
    _
  $region9: #{uda_forward.1} parent=0 // pred_fallthru
    _
  // Predicated region
  $region10: #{uda_forward.1} parent=0 // pred_check
    _
  $region11: #{uda_forward.1} parent=0 // pred_check_branch
    %27 = sbr.rel (0) target = $region13
  $region12: #{uda_forward.1} parent=0 // pred_region
    _
  $region13: #{uda_forward.1} parent=0 // pred_fallthru
    _
  // Predicated region
  $region14: #{uda_forward.1} parent=0 // pred_check
    _
  $region15: #{uda_forward.1} parent=0 // pred_check_branch
    %29 = sbr.rel (0) target = $region17
  $region16: #{uda_forward.1} parent=0 // pred_region
    _
  $region17: #{uda_forward.1} parent=0 // pred_fallthru
    _
  // Predicated region
  $region18: #{uda_forward.1} parent=0 // pred_check
    _
  $region19: #{uda_forward.1} parent=0 // pred_check_branch
    %31 = sbr.rel (0) target = $region21
  $region20: #{uda_forward.1} parent=0 // pred_region
    _
  $region21: #{uda_forward.1} parent=0 // pred_fallthru
    _
  // Predicated region
  $region22: #{uda_forward.1} parent=0 // pred_check
    _
  $region23: #{uda_forward.1} parent=0 // pred_check_branch
    %33 = sbr.rel (0) target = $region25
  $region24: #{uda_forward.1} parent=0 // pred_region
    _
  $region25: #{uda_forward.1} parent=0 // pred_fallthru
    _
  // Predicated region
  $region26: #{uda_forward.1} parent=0 // pred_check
    _
  $region27: #{uda_forward.1} parent=0 // pred_check_branch
    %35 = sbr.rel (0) target = $region29
  $region28: #{uda_forward.1} parent=0 // pred_region
    _
  $region29: #{uda_forward.1} parent=0 // pred_fallthru
    _
  // Predicated region
  $region30: #{uda_forward.1} parent=0 // pred_check
    _
  $region31: #{uda_forward.1} parent=0 // pred_check_branch
    %37 = sbr.rel (0) target = $region33
  $region32: #{uda_forward.1} parent=0 // pred_region
    _
  $region33: #{uda_forward.1} parent=0 // pred_fallthru
    _
  // Predicated region
  $region34: #{uda_forward.1} parent=0 // pred_check
    _
  $region35: #{uda_forward.1} parent=0 // pred_check_branch
    %39 = sbr.rel (0) target = $region37
  $region36: #{uda_forward.1} parent=0 // pred_region
    _
  $region37: #{uda_forward.1} parent=0 // pred_fallthru
    _
  // Predicated region
  $region38: #{uda_forward.1} parent=0 // pred_check
    _
  $region39: #{uda_forward.1} parent=0 // pred_check_branch
    %41 = sbr.rel (0) target = $region41
  $region40: #{uda_forward.1} parent=0 // pred_region
    _
  $region41: #{uda_forward.1} parent=0 // pred_fallthru
    _
  // Predicated region
  $region42: #{uda_forward.1} parent=0 // pred_check
    _
  $region43: #{uda_forward.1} parent=0 // pred_check_branch
    %43 = sbr.rel (0) target = $region45
  $region44: #{uda_forward.1} parent=0 // pred_region
    _
  $region45: #{uda_forward.1} parent=0 // pred_fallthru
    _
  // Predicated region
  $region46: #{uda_forward.1} parent=0 // pred_check
    _
  $region47: #{uda_forward.1} parent=0 // pred_check_branch
    %45 = sbr.rel (0) target = $region49
  $region48: #{uda_forward.1} parent=0 // pred_region
    _
  $region49: #{uda_forward.1} parent=0 // pred_fallthru
    _
  // Predicated region
  $region50: #{uda_forward.1} parent=0 // pred_check
    _
  $region51: #{uda_forward.1} parent=0 // pred_check_branch
    %47 = sbr.rel (0) target = $region53
  $region52: #{uda_forward.1} parent=0 // pred_region
    _
  $region53: #{uda_forward.1} parent=0 // pred_fallthru
    _
  // Predicated region
  $region54: #{uda_forward.1} parent=0 // pred_check
    _
  $region55: #{uda_forward.1} parent=0 // pred_check_branch
    %49 = sbr.rel (0) target = $region57
  $region56: #{uda_forward.1} parent=0 // pred_region
    _
  $region57: #{uda_forward.1} parent=0 // pred_fallthru
    _
  // Predicated region
  $region58: #{uda_forward.1} parent=0 // pred_check
    _
  $region59: #{uda_forward.1} parent=0 // pred_check_branch
    %51 = sbr.rel (0) target = $region61
  $region60: #{uda_forward.1} parent=0 // pred_region
    _
  $region61: #{uda_forward.1} parent=0 // pred_fallthru
    _
  // Predicated region
  $region62: #{uda_forward.1} parent=0 // pred_check
    _
  $region63: #{uda_forward.1} parent=0 // pred_check_branch
    %53 = sbr.rel (0) target = $region65
  $region64: #{uda_forward.1} parent=0 // pred_region
    _
  $region65: #{uda_forward.1} parent=0 // pred_fallthru
    _
  // Predicated region
  $region66: #{uda_forward.1} parent=0 // pred_check
    _
  $region67: #{uda_forward.1} parent=0 // pred_check_branch
    %55 = sbr.rel (0) target = $region69
  $region68: #{uda_forward.1} parent=0 // pred_region
    _
  $region69: #{uda_forward.1} parent=0 // pred_fallthru
    _
  %v56 = vld [vmem:[%s1] sm:$0xff]
  %v57 = vld [vmem:[%s2] sm:$0xff]
  %v58 = vld [vmem:[%s0] sm:$0xf]
  %60 = vset.pattern.permute.xlu0 0
  %61 = vperm.xlu0 %60, %v57
  %v62 = vpop.permute.xlu0 %61
  %65 = vset.pattern.permute.xlu0 0
  %66 = vperm.xlu0 %65, %v56
  %v67 = vpop.permute.xlu0 %66
  %v69 = vperm.slane %v58, 0
  %v70 = vmul.f32 %v67, %v69
  %v71 = vadd.f32 %v62, %v70
  %v72 = vperm.slane %v58, 2
  %v73 = vmul.f32 %v67, %v72
  %v74 = vadd.f32 %v62, %v73
  %75 = vset.pattern.permute.xlu0 1
  %76 = vperm.xlu0 %75, %v56
  %v77 = vpop.permute.xlu0 %76
  %v79 = vperm.slane %v58, 1
  %v80 = vmul.f32 %v77, %v79
  %v81 = vadd.f32 %v71, %v80
  %v82 = vperm.slane %v58, 3
  %v83 = vmul.f32 %v77, %v82
  %v84 = vadd.f32 %v74, %v83
  %85 = vset.pattern.permute.xlu0 2
  %86 = vperm.xlu0 %85, %v56
  %v87 = vpop.permute.xlu0 %86
  %v89 = vmul.f32 %v87, %v72
  %v90 = vadd.f32 %v81, %v89
  %v91 = vmul.f32 %v87, %v69
  %93 = vrot.lane.b32.xlu0 %v91, 127
  %v94 = vpop.permute.xlu0 %93
  %v96 = vadd.f32 %v84, %v94
  %97 = vset.pattern.permute.xlu0 3
  %98 = vperm.xlu0 %97, %v56
  %v99 = vpop.permute.xlu0 %98
  %v101 = vmul.f32 %v99, %v82
  %v102 = vadd.f32 %v90, %v101
  %v103 = vmul.f32 %v99, %v79
  %105 = vrot.lane.b32.xlu0 %v103, 127
  %v106 = vpop.permute.xlu0 %105
  %v108 = vadd.f32 %v96, %v106
  %109 = vset.pattern.permute.xlu0 4
  %110 = vperm.xlu0 %109, %v56
  %v111 = vpop.permute.xlu0 %110
  %v113 = vmul.f32 %v111, %v69
  %115 = vrot.lane.b32.xlu0 %v113, 127
  %v116 = vpop.permute.xlu0 %115
  %v118 = vadd.f32 %v102, %v116
  %v119 = vmul.f32 %v111, %v72
  %121 = vrot.lane.b32.xlu0 %v119, 127
  %v122 = vpop.permute.xlu0 %121
  %v124 = vadd.f32 %v108, %v122
  %125 = vset.pattern.permute.xlu0 5
  %126 = vperm.xlu0 %125, %v56
  %v127 = vpop.permute.xlu0 %126
  %v129 = vmul.f32 %v127, %v79
  %131 = vrot.lane.b32.xlu0 %v129, 127
  %v132 = vpop.permute.xlu0 %131
  %v134 = vadd.f32 %v118, %v132
  %v135 = vmul.f32 %v127, %v82
  %137 = vrot.lane.b32.xlu0 %v135, 127
  %v138 = vpop.permute.xlu0 %137
  %v140 = vadd.f32 %v124, %v138
  %141 = vset.pattern.permute.xlu0 6
  %142 = vperm.xlu0 %141, %v56
  %v143 = vpop.permute.xlu0 %142
  %v145 = vmul.f32 %v143, %v72
  %147 = vrot.lane.b32.xlu0 %v145, 127
  %v148 = vpop.permute.xlu0 %147
  %v150 = vadd.f32 %v134, %v148
  %v151 = vmul.f32 %v143, %v69
  %153 = vrot.lane.b32.xlu0 %v151, 126
  %v154 = vpop.permute.xlu0 %153
  %v156 = vadd.f32 %v140, %v154
  %157 = vset.pattern.permute.xlu0 7
  %158 = vperm.xlu0 %157, %v56
  %v159 = vpop.permute.xlu0 %158
  %v161 = vmul.f32 %v159, %v82
  %163 = vrot.lane.b32.xlu0 %v161, 127
  %v164 = vpop.permute.xlu0 %163
  %v166 = vadd.f32 %v150, %v164
  %v167 = vmul.f32 %v159, %v79
  %169 = vrot.lane.b32.xlu0 %v167, 126
  %v170 = vpop.permute.xlu0 %169
  %v172 = vadd.f32 %v156, %v170
  %173 = vset.pattern.permute.xlu0 8
  %174 = vperm.xlu0 %173, %v56
  %v175 = vpop.permute.xlu0 %174
  %v177 = vmul.f32 %v175, %v69
  %179 = vrot.lane.b32.xlu0 %v177, 126
  %v180 = vpop.permute.xlu0 %179
  %v182 = vadd.f32 %v166, %v180
  %v183 = vmul.f32 %v175, %v72
  %185 = vrot.lane.b32.xlu0 %v183, 126
  %v186 = vpop.permute.xlu0 %185
  %v188 = vadd.f32 %v172, %v186
  %189 = vset.pattern.permute.xlu0 9
  %190 = vperm.xlu0 %189, %v56
  %v191 = vpop.permute.xlu0 %190
  %v193 = vmul.f32 %v191, %v79
  %195 = vrot.lane.b32.xlu0 %v193, 126
  %v196 = vpop.permute.xlu0 %195
  %v198 = vadd.f32 %v182, %v196
  %v199 = vmul.f32 %v191, %v82
  %201 = vrot.lane.b32.xlu0 %v199, 126
  %v202 = vpop.permute.xlu0 %201
  %v204 = vadd.f32 %v188, %v202
  %205 = vset.pattern.permute.xlu0 10
  %206 = vperm.xlu0 %205, %v56
  %v207 = vpop.permute.xlu0 %206
  %v209 = vmul.f32 %v207, %v72
  %211 = vrot.lane.b32.xlu0 %v209, 126
  %v212 = vpop.permute.xlu0 %211
  %v214 = vadd.f32 %v198, %v212
  %v215 = vmul.f32 %v207, %v69
  %217 = vrot.lane.b32.xlu0 %v215, 125
  %v218 = vpop.permute.xlu0 %217
  %v220 = vadd.f32 %v204, %v218
  %221 = vset.pattern.permute.xlu0 11
  %222 = vperm.xlu0 %221, %v56
  %v223 = vpop.permute.xlu0 %222
  %v225 = vmul.f32 %v223, %v82
  %227 = vrot.lane.b32.xlu0 %v225, 126
  %v228 = vpop.permute.xlu0 %227
  %v230 = vadd.f32 %v214, %v228
  %v231 = vmul.f32 %v223, %v79
  %233 = vrot.lane.b32.xlu0 %v231, 125
  %v234 = vpop.permute.xlu0 %233
  %v236 = vadd.f32 %v220, %v234
  %237 = vset.pattern.permute.xlu0 12
  %238 = vperm.xlu0 %237, %v56
  %v239 = vpop.permute.xlu0 %238
  %v241 = vmul.f32 %v239, %v69
  %243 = vrot.lane.b32.xlu0 %v241, 125
  %v244 = vpop.permute.xlu0 %243
  %v246 = vadd.f32 %v230, %v244
  %v247 = vmul.f32 %v239, %v72
  %249 = vrot.lane.b32.xlu0 %v247, 125
  %v250 = vpop.permute.xlu0 %249
  %v252 = vadd.f32 %v236, %v250
  %253 = vset.pattern.permute.xlu0 13
  %254 = vperm.xlu0 %253, %v56
  %v255 = vpop.permute.xlu0 %254
  %v257 = vmul.f32 %v255, %v79
  %259 = vrot.lane.b32.xlu0 %v257, 125
  %v260 = vpop.permute.xlu0 %259
  %v262 = vadd.f32 %v246, %v260
  %v263 = vmul.f32 %v255, %v82
  %265 = vrot.lane.b32.xlu0 %v263, 125
  %v266 = vpop.permute.xlu0 %265
  %v268 = vadd.f32 %v252, %v266
  %269 = vset.pattern.permute.xlu0 14
  %270 = vperm.xlu0 %269, %v56
  %v271 = vpop.permute.xlu0 %270
  %v273 = vmul.f32 %v271, %v72
  %275 = vrot.lane.b32.xlu0 %v273, 125
  %v276 = vpop.permute.xlu0 %275
  %v278 = vadd.f32 %v262, %v276
  %v279 = vmul.f32 %v271, %v69
  %281 = vrot.lane.b32.xlu0 %v279, 124
  %v282 = vpop.permute.xlu0 %281
  %v284 = vadd.f32 %v268, %v282
  %285 = vset.pattern.permute.xlu0 15
  %286 = vperm.xlu0 %285, %v56
  %v287 = vpop.permute.xlu0 %286
  %v289 = vmul.f32 %v287, %v82
  %291 = vrot.lane.b32.xlu0 %v289, 125
  %v292 = vpop.permute.xlu0 %291
  %v294 = vadd.f32 %v278, %v292
  %v295 = vmul.f32 %v287, %v79
  %297 = vrot.lane.b32.xlu0 %v295, 124
  %v298 = vpop.permute.xlu0 %297
  %v300 = vadd.f32 %v284, %v298
  %301 = vset.pattern.permute.xlu0 16
  %302 = vperm.xlu0 %301, %v56
  %v303 = vpop.permute.xlu0 %302
  %v305 = vmul.f32 %v303, %v69
  %307 = vrot.lane.b32.xlu0 %v305, 124
  %v308 = vpop.permute.xlu0 %307
  %v310 = vadd.f32 %v294, %v308
  %v311 = vmul.f32 %v303, %v72
  %313 = vrot.lane.b32.xlu0 %v311, 124
  %v314 = vpop.permute.xlu0 %313
  %v316 = vadd.f32 %v300, %v314
  %317 = vset.pattern.permute.xlu0 17
  %318 = vperm.xlu0 %317, %v56
  %v319 = vpop.permute.xlu0 %318
  %v321 = vmul.f32 %v319, %v79
  %323 = vrot.lane.b32.xlu0 %v321, 124
  %v324 = vpop.permute.xlu0 %323
  %v326 = vadd.f32 %v310, %v324
  %v327 = vmul.f32 %v319, %v82
  %329 = vrot.lane.b32.xlu0 %v327, 124
  %v330 = vpop.permute.xlu0 %329
  %v332 = vadd.f32 %v316, %v330
  %333 = vset.pattern.permute.xlu0 18
  %334 = vperm.xlu0 %333, %v56
  %v335 = vpop.permute.xlu0 %334
  %v337 = vmul.f32 %v335, %v72
  %339 = vrot.lane.b32.xlu0 %v337, 124
  %v340 = vpop.permute.xlu0 %339
  %v342 = vadd.f32 %v326, %v340
  %v343 = vmul.f32 %v335, %v69
  %345 = vrot.lane.b32.xlu0 %v343, 123
  %v346 = vpop.permute.xlu0 %345
  %v348 = vadd.f32 %v332, %v346
  %349 = vset.pattern.permute.xlu0 19
  %350 = vperm.xlu0 %349, %v56
  %v351 = vpop.permute.xlu0 %350
  %v353 = vmul.f32 %v351, %v82
  %355 = vrot.lane.b32.xlu0 %v353, 124
  %v356 = vpop.permute.xlu0 %355
  %v358 = vadd.f32 %v342, %v356
  %v359 = vmul.f32 %v351, %v79
  %361 = vrot.lane.b32.xlu0 %v359, 123
  %v362 = vpop.permute.xlu0 %361
  %v364 = vadd.f32 %v348, %v362
  %365 = vset.pattern.permute.xlu0 20
  %366 = vperm.xlu0 %365, %v56
  %v367 = vpop.permute.xlu0 %366
  %v369 = vmul.f32 %v367, %v69
  %371 = vrot.lane.b32.xlu0 %v369, 123
  %v372 = vpop.permute.xlu0 %371
  %v374 = vadd.f32 %v358, %v372
  %v375 = vmul.f32 %v367, %v72
  %377 = vrot.lane.b32.xlu0 %v375, 123
  %v378 = vpop.permute.xlu0 %377
  %v380 = vadd.f32 %v364, %v378
  %381 = vset.pattern.permute.xlu0 21
  %382 = vperm.xlu0 %381, %v56
  %v383 = vpop.permute.xlu0 %382
  %v385 = vmul.f32 %v383, %v79
  %387 = vrot.lane.b32.xlu0 %v385, 123
  %v388 = vpop.permute.xlu0 %387
  %v390 = vadd.f32 %v374, %v388
  %v391 = vmul.f32 %v383, %v82
  %393 = vrot.lane.b32.xlu0 %v391, 123
  %v394 = vpop.permute.xlu0 %393
  %v396 = vadd.f32 %v380, %v394
  %397 = vset.pattern.permute.xlu0 22
  %398 = vperm.xlu0 %397, %v56
  %v399 = vpop.permute.xlu0 %398
  %v401 = vmul.f32 %v399, %v72
  %403 = vrot.lane.b32.xlu0 %v401, 123
  %v404 = vpop.permute.xlu0 %403
  %v406 = vadd.f32 %v390, %v404
  %v407 = vmul.f32 %v399, %v69
  %409 = vrot.lane.b32.xlu0 %v407, 122
  %v410 = vpop.permute.xlu0 %409
  %v412 = vadd.f32 %v396, %v410
  %413 = vset.pattern.permute.xlu0 23
  %414 = vperm.xlu0 %413, %v56
  %v415 = vpop.permute.xlu0 %414
  %v417 = vmul.f32 %v415, %v82
  %419 = vrot.lane.b32.xlu0 %v417, 123
  %v420 = vpop.permute.xlu0 %419
  %v422 = vadd.f32 %v406, %v420
  %v423 = vmul.f32 %v415, %v79
  %425 = vrot.lane.b32.xlu0 %v423, 122
  %v426 = vpop.permute.xlu0 %425
  %v428 = vadd.f32 %v412, %v426
  %429 = vset.pattern.permute.xlu0 24
  %430 = vperm.xlu0 %429, %v56
  %v431 = vpop.permute.xlu0 %430
  %v433 = vmul.f32 %v431, %v69
  %435 = vrot.lane.b32.xlu0 %v433, 122
  %v436 = vpop.permute.xlu0 %435
  %v438 = vadd.f32 %v422, %v436
  %v439 = vmul.f32 %v431, %v72
  %441 = vrot.lane.b32.xlu0 %v439, 122
  %v442 = vpop.permute.xlu0 %441
  %v444 = vadd.f32 %v428, %v442
  %445 = vset.pattern.permute.xlu0 25
  %446 = vperm.xlu0 %445, %v56
  %v447 = vpop.permute.xlu0 %446
  %v449 = vmul.f32 %v447, %v79
  %451 = vrot.lane.b32.xlu0 %v449, 122
  %v452 = vpop.permute.xlu0 %451
  %v454 = vadd.f32 %v438, %v452
  %v455 = vmul.f32 %v447, %v82
  %457 = vrot.lane.b32.xlu0 %v455, 122
  %v458 = vpop.permute.xlu0 %457
  %v460 = vadd.f32 %v444, %v458
  %461 = vset.pattern.permute.xlu0 26
  %462 = vperm.xlu0 %461, %v56
  %v463 = vpop.permute.xlu0 %462
  %v465 = vmul.f32 %v463, %v72
  %467 = vrot.lane.b32.xlu0 %v465, 122
  %v468 = vpop.permute.xlu0 %467
  %v470 = vadd.f32 %v454, %v468
  %v471 = vmul.f32 %v463, %v69
  %473 = vrot.lane.b32.xlu0 %v471, 121
  %v474 = vpop.permute.xlu0 %473
  %v476 = vadd.f32 %v460, %v474
  %477 = vset.pattern.permute.xlu0 27
  %478 = vperm.xlu0 %477, %v56
  %v479 = vpop.permute.xlu0 %478
  %v481 = vmul.f32 %v479, %v82
  %483 = vrot.lane.b32.xlu0 %v481, 122
  %v484 = vpop.permute.xlu0 %483
  %v486 = vadd.f32 %v470, %v484
  %v487 = vmul.f32 %v479, %v79
  %489 = vrot.lane.b32.xlu0 %v487, 121
  %v490 = vpop.permute.xlu0 %489
  %v492 = vadd.f32 %v476, %v490
  %493 = vset.pattern.permute.xlu0 28
  %494 = vperm.xlu0 %493, %v56
  %v495 = vpop.permute.xlu0 %494
  %v497 = vmul.f32 %v495, %v69
  %499 = vrot.lane.b32.xlu0 %v497, 121
  %v500 = vpop.permute.xlu0 %499
  %v502 = vadd.f32 %v486, %v500
  %v503 = vmul.f32 %v495, %v72
  %505 = vrot.lane.b32.xlu0 %v503, 121
  %v506 = vpop.permute.xlu0 %505
  %v508 = vadd.f32 %v492, %v506
  %509 = vset.pattern.permute.xlu0 29
  %510 = vperm.xlu0 %509, %v56
  %v511 = vpop.permute.xlu0 %510
  %v513 = vmul.f32 %v511, %v79
  %515 = vrot.lane.b32.xlu0 %v513, 121
  %v516 = vpop.permute.xlu0 %515
  %v518 = vadd.f32 %v502, %v516
  %v519 = vmul.f32 %v511, %v82
  %521 = vrot.lane.b32.xlu0 %v519, 121
  %v522 = vpop.permute.xlu0 %521
  %v524 = vadd.f32 %v508, %v522
  %525 = vset.pattern.permute.xlu0 30
  %526 = vperm.xlu0 %525, %v56
  %v527 = vpop.permute.xlu0 %526
  %v529 = vmul.f32 %v527, %v72
  %531 = vrot.lane.b32.xlu0 %v529, 121
  %v532 = vpop.permute.xlu0 %531
  %v534 = vadd.f32 %v518, %v532
  %v535 = vmul.f32 %v527, %v69
  %537 = vrot.lane.b32.xlu0 %v535, 120
  %v538 = vpop.permute.xlu0 %537
  %v540 = vadd.f32 %v524, %v538
  %541 = vset.pattern.permute.xlu0 31
  %542 = vperm.xlu0 %541, %v56
  %v543 = vpop.permute.xlu0 %542
  %v545 = vmul.f32 %v543, %v82
  %547 = vrot.lane.b32.xlu0 %v545, 121
  %v548 = vpop.permute.xlu0 %547
  %v550 = vadd.f32 %v534, %v548
  %v551 = vmul.f32 %v543, %v79
  %553 = vrot.lane.b32.xlu0 %v551, 120
  %v554 = vpop.permute.xlu0 %553
  %v556 = vadd.f32 %v540, %v554
  %v557 = vmax.f32 %v550, %v556
  %v558 = vmax.f32 %v557, 0.0
  %v559 = vld [vmem:[%s3] sm:$0xff]
  %v560 = vld [vmem:[%s3 + $0x8] sm:$0xff]
  %v561 = vld [vmem:[%s4] sm:$0xff]
  %v562 = vld [vmem:[%s4 + $0x8] sm:$0xff]
  %vm563 = vcmask 842752
  %564 = vst.msk [vmem:[#allocation2] sm:$0xff] %vm563, %v558
  %566 = vrot.lane.b32.xlu0 %v558, 127
  %v567 = vpop.permute.xlu0 %566
  %569 = vst.msk [vmem:[#allocation2 + $0x8] sm:$0xff] %vm563, %v567
  %570 = vrot.lane.b32.xlu0 %v558, 126
  %v571 = vpop.permute.xlu0 %570
  %573 = vst.msk [vmem:[#allocation2 + $0x10] sm:$0xff] %vm563, %v571
  %574 = vrot.lane.b32.xlu0 %v558, 125
  %v575 = vpop.permute.xlu0 %574
  %577 = vst.msk [vmem:[#allocation2 + $0x18] sm:$0xff] %vm563, %v575
  %578 = vrot.lane.b32.xlu0 %v558, 124
  %v579 = vpop.permute.xlu0 %578
  %581 = vst.msk [vmem:[#allocation2 + $0x20] sm:$0xff] %vm563, %v579
  %582 = vrot.lane.b32.xlu0 %v558, 123
  %v583 = vpop.permute.xlu0 %582
  %585 = vst.msk [vmem:[#allocation2 + $0x28] sm:$0xff] %vm563, %v583
  %586 = vrot.lane.b32.xlu0 %v558, 122
  %v587 = vpop.permute.xlu0 %586
  %589 = vst.msk [vmem:[#allocation2 + $0x30] sm:$0xff] %vm563, %v587
  %590 = vrot.lane.b32.xlu0 %v558, 121
  %v591 = vpop.permute.xlu0 %590
  %593 = vst.msk [vmem:[#allocation2 + $0x38] sm:$0xff] %vm563, %v591
  %594 = vrot.lane.b32.xlu0 %v558, 120
  %v595 = vpop.permute.xlu0 %594
  %597 = vst.msk [vmem:[#allocation2 + $0x40] sm:$0xff] %vm563, %v595
  %598 = vrot.lane.b32.xlu0 %v558, 119
  %v599 = vpop.permute.xlu0 %598
  %601 = vst.msk [vmem:[#allocation2 + $0x48] sm:$0xff] %vm563, %v599
  %602 = vrot.lane.b32.xlu0 %v558, 118
  %v603 = vpop.permute.xlu0 %602
  %605 = vst.msk [vmem:[#allocation2 + $0x50] sm:$0xff] %vm563, %v603
  %606 = vrot.lane.b32.xlu0 %v558, 117
  %v607 = vpop.permute.xlu0 %606
  %609 = vst.msk [vmem:[#allocation2 + $0x58] sm:$0xff] %vm563, %v607
  %610 = vrot.lane.b32.xlu0 %v558, 116
  %v611 = vpop.permute.xlu0 %610
  %613 = vst.msk [vmem:[#allocation2 + $0x60] sm:$0xff] %vm563, %v611
  %614 = vrot.lane.b32.xlu0 %v558, 115
  %v615 = vpop.permute.xlu0 %614
  %617 = vst.msk [vmem:[#allocation2 + $0x68] sm:$0xff] %vm563, %v615
  %618 = vrot.lane.b32.xlu0 %v558, 114
  %v619 = vpop.permute.xlu0 %618
  %621 = vst.msk [vmem:[#allocation2 + $0x70] sm:$0xff] %vm563, %v619
  %622 = vrot.lane.b32.xlu0 %v558, 113
  %v623 = vpop.permute.xlu0 %622
  %625 = vst.msk [vmem:[#allocation2 + $0x78] sm:$0xff] %vm563, %v623
  %v626 = vld [vmem:[#allocation2] sm:$0xff]
  %v627 = vld [vmem:[#allocation2 + $0x8] sm:$0xff]
  %v628 = vld [vmem:[#allocation2 + $0x10] sm:$0xff]
  %v629 = vld [vmem:[#allocation2 + $0x18] sm:$0xff]
  %v630 = vld [vmem:[#allocation2 + $0x20] sm:$0xff]
  %v631 = vld [vmem:[#allocation2 + $0x28] sm:$0xff]
  %v632 = vld [vmem:[#allocation2 + $0x30] sm:$0xff]
  %v633 = vld [vmem:[#allocation2 + $0x38] sm:$0xff]
  %v634 = vld [vmem:[#allocation2 + $0x40] sm:$0xff]
  %v635 = vld [vmem:[#allocation2 + $0x48] sm:$0xff]
  %v636 = vld [vmem:[#allocation2 + $0x50] sm:$0xff]
  %v637 = vld [vmem:[#allocation2 + $0x58] sm:$0xff]
  %v638 = vld [vmem:[#allocation2 + $0x60] sm:$0xff]
  %v639 = vld [vmem:[#allocation2 + $0x68] sm:$0xff]
  %v640 = vld [vmem:[#allocation2 + $0x70] sm:$0xff]
  %v641 = vld [vmem:[#allocation2 + $0x78] sm:$0xff]
  %643 = vset.pattern.permute.xlu0 0
  %644 = vperm.xlu0 %643, %v561
  %v645 = vpop.permute.xlu0 %644
  %648 = vset.pattern.permute.xlu0 0
  %649 = vperm.xlu0 %648, %v562
  %v650 = vpop.permute.xlu0 %649
  %652 = vmatpush.msra.mxu0 %v641
  %653 = vmatpush.msra.mxu0 %v640
  %654 = vmatpush.msra.mxu0 %v639
  %655 = vmatpush.msra.mxu0 %v638
  %656 = vmatpush.msra.mxu0 %v637
  %657 = vmatpush.msra.mxu0 %v636
  %658 = vmatpush.msra.mxu0 %v635
  %659 = vmatpush.msra.mxu0 %v634
  %660 = vmatpush.msra.mxu0 %v633
  %661 = vmatpush.msra.mxu0 %v632
  %662 = vmatpush.msra.mxu0 %v631
  %663 = vmatpush.msra.mxu0 %v630
  %664 = vmatpush.msra.mxu0 %v629
  %665 = vmatpush.msra.mxu0 %v628
  %666 = vmatpush.msra.mxu0 %v627
  %667 = vmatpush.msra.mxu0 %v626
  %668 = vmatmul.f32.gmra.mxu0 %v559
  %v669 = vpop.f32.mrf.mxu0
  %v670 = vadd.f32 %v645, %v669
  %671 = vmatmul.f32.gmra.mxu0 %v560
  %v672 = vpop.f32.mrf.mxu0
  %v673 = vadd.f32 %v650, %v672
  %674 = vdwg.mxu0
  %v675 = vmax.f32 %v670, 0.0
  %v676 = vmax.f32 %v673, 0.0
  %679 = vrot.lane.b32.xlu0 %v675, 126
  %v680 = vpop.permute.xlu0 %679
  %681 = vrot.lane.b32.xlu0 %v676, 126
  %v682 = vpop.permute.xlu0 %681
  %v685 = vmax.f32 %v675, %v680
  %v686 = vmax.f32 %v676, %v682
  %v687 = vld [vmem:[%s9] sm:$0xff]
  %v688 = vld [vmem:[%s9 + $0x8] sm:$0xff]
  %v689 = vld [vmem:[%s9 + $0x10] sm:$0xff]
  %v690 = vld [vmem:[%s9 + $0x18] sm:$0xff]
  %v691 = vld [vmem:[%s9 + $0x20] sm:$0xff]
  %v692 = vld [vmem:[%s9 + $0x28] sm:$0xff]
  %v693 = vld [vmem:[%s9 + $0x30] sm:$0xff]
  %v694 = vld [vmem:[%s9 + $0x38] sm:$0xff]
  %v695 = vld [vmem:[%s9 + $0x40] sm:$0xff]
  %v696 = vld [vmem:[%s9 + $0x48] sm:$0xff]
  %v697 = vld [vmem:[%s9 + $0x50] sm:$0xff]
  %v698 = vld [vmem:[%s9 + $0x58] sm:$0xff]
  %v699 = vld [vmem:[%s9 + $0x60] sm:$0x1f]
  %vm700 = vcmask 826368
  %v702 = vsel %vm700, %v685, 0
  %v705 = vsel %vm700, %v686, 0
  %vm707 = vcmask 1044480
  %v709 = vsel %vm707, %v699, 0
  %711 = vmatpush.msra.mxu0 0.0
  %712 = vmatpush.msra.mxu0 0.0
  %713 = vmatpush.msra.mxu0 0.0
  %v714 = vand.u32 %v709, 4294901760
  %715 = vmatpush.msra.mxu0 %v714
  %v716 = vand.u32 %v698, 4294901760
  %717 = vmatpush.msra.mxu0 %v716
  %v718 = vand.u32 %v697, 4294901760
  %719 = vmatpush.msra.mxu0 %v718
  %v720 = vand.u32 %v696, 4294901760
  %721 = vmatpush.msra.mxu0 %v720
  %v722 = vand.u32 %v695, 4294901760
  %723 = vmatpush.msra.mxu0 %v722
  %v724 = vand.u32 %v694, 4294901760
  %725 = vmatpush.msra.mxu0 %v724
  %v726 = vand.u32 %v693, 4294901760
  %727 = vmatpush.msra.mxu0 %v726
  %v728 = vand.u32 %v692, 4294901760
  %729 = vmatpush.msra.mxu0 %v728
  %v730 = vand.u32 %v691, 4294901760
  %731 = vmatpush.msra.mxu0 %v730
  %v732 = vand.u32 %v690, 4294901760
  %733 = vmatpush.msra.mxu0 %v732
  %v734 = vand.u32 %v689, 4294901760
  %735 = vmatpush.msra.mxu0 %v734
  %v736 = vand.u32 %v688, 4294901760
  %737 = vmatpush.msra.mxu0 %v736
  %v738 = vand.u32 %v687, 4294901760
  %739 = vmatpush.msra.mxu0 %v738
  %v740 = vand.u32 %v702, 4294901760
  %v741 = vsub.f32 %v702, %v740
  %v742 = vand.u32 %v741, 4294901760
  %v743 = vsub.f32 %v741, %v742
  %v744 = vand.u32 %v743, 4294901760
  %745 = vmatmul.f32.gmra.mxu0 %v744
  %v746 = vpop.f32.mrf.mxu0
  %v747 = vadd.f32 0.0, %v746
  %v748 = vand.u32 %v705, 4294901760
  %v749 = vsub.f32 %v705, %v748
  %v750 = vand.u32 %v749, 4294901760
  %v751 = vsub.f32 %v749, %v750
  %v752 = vand.u32 %v751, 4294901760
  %753 = vmatmul.f32.gmra.mxu0 %v752
  %v754 = vpop.f32.mrf.mxu0
  %v755 = vadd.f32 0.0, %v754
  %756 = vdwg.mxu0
  %757 = vmatpush.msra.mxu0 0.0
  %758 = vmatpush.msra.mxu0 0.0
  %759 = vmatpush.msra.mxu0 0.0
  %v760 = vand.u32 %v709, 4294901760
  %v761 = vsub.f32 %v709, %v760
  %v762 = vand.u32 %v761, 4294901760
  %v763 = vsub.f32 %v761, %v762
  %v764 = vand.u32 %v763, 4294901760
  %765 = vmatpush.msra.mxu0 %v764
  %v766 = vand.u32 %v698, 4294901760
  %v767 = vsub.f32 %v698, %v766
  %v768 = vand.u32 %v767, 4294901760
  %v769 = vsub.f32 %v767, %v768
  %v770 = vand.u32 %v769, 4294901760
  %771 = vmatpush.msra.mxu0 %v770
  %v772 = vand.u32 %v697, 4294901760
  %v773 = vsub.f32 %v697, %v772
  %v774 = vand.u32 %v773, 4294901760
  %v775 = vsub.f32 %v773, %v774
  %v776 = vand.u32 %v775, 4294901760
  %777 = vmatpush.msra.mxu0 %v776
  %v778 = vand.u32 %v696, 4294901760
  %v779 = vsub.f32 %v696, %v778
  %v780 = vand.u32 %v779, 4294901760
  %v781 = vsub.f32 %v779, %v780
  %v782 = vand.u32 %v781, 4294901760
  %783 = vmatpush.msra.mxu0 %v782
  %v784 = vand.u32 %v695, 4294901760
  %v785 = vsub.f32 %v695, %v784
  %v786 = vand.u32 %v785, 4294901760
  %v787 = vsub.f32 %v785, %v786
  %v788 = vand.u32 %v787, 4294901760
  %789 = vmatpush.msra.mxu0 %v788
  %v790 = vand.u32 %v694, 4294901760
  %v791 = vsub.f32 %v694, %v790
  %v792 = vand.u32 %v791, 4294901760
  %v793 = vsub.f32 %v791, %v792
  %v794 = vand.u32 %v793, 4294901760
  %795 = vmatpush.msra.mxu0 %v794
  %v796 = vand.u32 %v693, 4294901760
  %v797 = vsub.f32 %v693, %v796
  %v798 = vand.u32 %v797, 4294901760
  %v799 = vsub.f32 %v797, %v798
  %v800 = vand.u32 %v799, 4294901760
  %801 = vmatpush.msra.mxu0 %v800
  %v802 = vand.u32 %v692, 4294901760
  %v803 = vsub.f32 %v692, %v802
  %v804 = vand.u32 %v803, 4294901760
  %v805 = vsub.f32 %v803, %v804
  %v806 = vand.u32 %v805, 4294901760
  %807 = vmatpush.msra.mxu0 %v806
  %v808 = vand.u32 %v691, 4294901760
  %v809 = vsub.f32 %v691, %v808
  %v810 = vand.u32 %v809, 4294901760
  %v811 = vsub.f32 %v809, %v810
  %v812 = vand.u32 %v811, 4294901760
  %813 = vmatpush.msra.mxu0 %v812
  %v814 = vand.u32 %v690, 4294901760
  %v815 = vsub.f32 %v690, %v814
  %v816 = vand.u32 %v815, 4294901760
  %v817 = vsub.f32 %v815, %v816
  %v818 = vand.u32 %v817, 4294901760
  %819 = vmatpush.msra.mxu0 %v818
  %v820 = vand.u32 %v689, 4294901760
  %v821 = vsub.f32 %v689, %v820
  %v822 = vand.u32 %v821, 4294901760
  %v823 = vsub.f32 %v821, %v822
  %v824 = vand.u32 %v823, 4294901760
  %825 = vmatpush.msra.mxu0 %v824
  %v826 = vand.u32 %v688, 4294901760
  %v827 = vsub.f32 %v688, %v826
  %v828 = vand.u32 %v827, 4294901760
  %v829 = vsub.f32 %v827, %v828
  %v830 = vand.u32 %v829, 4294901760
  %831 = vmatpush.msra.mxu0 %v830
  %v832 = vand.u32 %v687, 4294901760
  %v833 = vsub.f32 %v687, %v832
  %v834 = vand.u32 %v833, 4294901760
  %v835 = vsub.f32 %v833, %v834
  %v836 = vand.u32 %v835, 4294901760
  %837 = vmatpush.msra.mxu0 %v836
  %v838 = vand.u32 %v702, 4294901760
  %839 = vmatmul.f32.gmra.mxu0 %v838
  %v840 = vpop.f32.mrf.mxu0
  %v841 = vadd.f32 %v747, %v840
  %v842 = vand.u32 %v705, 4294901760
  %843 = vmatmul.f32.gmra.mxu0 %v842
  %v844 = vpop.f32.mrf.mxu0
  %v845 = vadd.f32 %v755, %v844
  %846 = vdwg.mxu0
  %847 = vmatpush.msra.mxu0 0.0
  %848 = vmatpush.msra.mxu0 0.0
  %849 = vmatpush.msra.mxu0 0.0
  %v850 = vand.u32 %v709, 4294901760
  %v851 = vsub.f32 %v709, %v850
  %852 = vmatpush.msra.mxu0 %v851
  %v853 = vand.u32 %v698, 4294901760
  %v854 = vsub.f32 %v698, %v853
  %855 = vmatpush.msra.mxu0 %v854
  %v856 = vand.u32 %v697, 4294901760
  %v857 = vsub.f32 %v697, %v856
  %858 = vmatpush.msra.mxu0 %v857
  %v859 = vand.u32 %v696, 4294901760
  %v860 = vsub.f32 %v696, %v859
  %861 = vmatpush.msra.mxu0 %v860
  %v862 = vand.u32 %v695, 4294901760
  %v863 = vsub.f32 %v695, %v862
  %864 = vmatpush.msra.mxu0 %v863
  %v865 = vand.u32 %v694, 4294901760
  %v866 = vsub.f32 %v694, %v865
  %867 = vmatpush.msra.mxu0 %v866
  %v868 = vand.u32 %v693, 4294901760
  %v869 = vsub.f32 %v693, %v868
  %870 = vmatpush.msra.mxu0 %v869
  %v871 = vand.u32 %v692, 4294901760
  %v872 = vsub.f32 %v692, %v871
  %873 = vmatpush.msra.mxu0 %v872
  %v874 = vand.u32 %v691, 4294901760
  %v875 = vsub.f32 %v691, %v874
  %876 = vmatpush.msra.mxu0 %v875
  %v877 = vand.u32 %v690, 4294901760
  %v878 = vsub.f32 %v690, %v877
  %879 = vmatpush.msra.mxu0 %v878
  %v880 = vand.u32 %v689, 4294901760
  %v881 = vsub.f32 %v689, %v880
  %882 = vmatpush.msra.mxu0 %v881
  %v883 = vand.u32 %v688, 4294901760
  %v884 = vsub.f32 %v688, %v883
  %885 = vmatpush.msra.mxu0 %v884
  %v886 = vand.u32 %v687, 4294901760
  %v887 = vsub.f32 %v687, %v886
  %888 = vmatpush.msra.mxu0 %v887
  %v889 = vand.u32 %v702, 4294901760
  %v890 = vsub.f32 %v702, %v889
  %891 = vmatmul.f32.gmra.mxu0 %v890
  %v892 = vpop.f32.mrf.mxu0
  %v893 = vadd.f32 %v841, %v892
  %v894 = vand.u32 %v705, 4294901760
  %v895 = vsub.f32 %v705, %v894
  %896 = vmatmul.f32.gmra.mxu0 %v895
  %v897 = vpop.f32.mrf.mxu0
  %v898 = vadd.f32 %v845, %v897
  %899 = vdwg.mxu0
  %900 = vmatpush.msra.mxu0 0.0
  %901 = vmatpush.msra.mxu0 0.0
  %902 = vmatpush.msra.mxu0 0.0
  %v903 = vand.u32 %v709, 4294901760
  %904 = vmatpush.msra.mxu0 %v903
  %v905 = vand.u32 %v698, 4294901760
  %906 = vmatpush.msra.mxu0 %v905
  %v907 = vand.u32 %v697, 4294901760
  %908 = vmatpush.msra.mxu0 %v907
  %v909 = vand.u32 %v696, 4294901760
  %910 = vmatpush.msra.mxu0 %v909
  %v911 = vand.u32 %v695, 4294901760
  %912 = vmatpush.msra.mxu0 %v911
  %v913 = vand.u32 %v694, 4294901760
  %914 = vmatpush.msra.mxu0 %v913
  %v915 = vand.u32 %v693, 4294901760
  %916 = vmatpush.msra.mxu0 %v915
  %v917 = vand.u32 %v692, 4294901760
  %918 = vmatpush.msra.mxu0 %v917
  %v919 = vand.u32 %v691, 4294901760
  %920 = vmatpush.msra.mxu0 %v919
  %v921 = vand.u32 %v690, 4294901760
  %922 = vmatpush.msra.mxu0 %v921
  %v923 = vand.u32 %v689, 4294901760
  %924 = vmatpush.msra.mxu0 %v923
  %v925 = vand.u32 %v688, 4294901760
  %926 = vmatpush.msra.mxu0 %v925
  %v927 = vand.u32 %v687, 4294901760
  %928 = vmatpush.msra.mxu0 %v927
  %v929 = vand.u32 %v702, 4294901760
  %v930 = vsub.f32 %v702, %v929
  %v931 = vand.u32 %v930, 4294901760
  %932 = vmatmul.f32.gmra.mxu0 %v931
  %v933 = vpop.f32.mrf.mxu0
  %v934 = vadd.f32 %v893, %v933
  %v935 = vand.u32 %v705, 4294901760
  %v936 = vsub.f32 %v705, %v935
  %v937 = vand.u32 %v936, 4294901760
  %938 = vmatmul.f32.gmra.mxu0 %v937
  %v939 = vpop.f32.mrf.mxu0
  %v940 = vadd.f32 %v898, %v939
  %941 = vdwg.mxu0
  %942 = vmatpush.msra.mxu0 0.0
  %943 = vmatpush.msra.mxu0 0.0
  %944 = vmatpush.msra.mxu0 0.0
  %v945 = vand.u32 %v709, 4294901760
  %v946 = vsub.f32 %v709, %v945
  %v947 = vand.u32 %v946, 4294901760
  %948 = vmatpush.msra.mxu0 %v947
  %v949 = vand.u32 %v698, 4294901760
  %v950 = vsub.f32 %v698, %v949
  %v951 = vand.u32 %v950, 4294901760
  %952 = vmatpush.msra.mxu0 %v951
  %v953 = vand.u32 %v697, 4294901760
  %v954 = vsub.f32 %v697, %v953
  %v955 = vand.u32 %v954, 4294901760
  %956 = vmatpush.msra.mxu0 %v955
  %v957 = vand.u32 %v696, 4294901760
  %v958 = vsub.f32 %v696, %v957
  %v959 = vand.u32 %v958, 4294901760
  %960 = vmatpush.msra.mxu0 %v959
  %v961 = vand.u32 %v695, 4294901760
  %v962 = vsub.f32 %v695, %v961
  %v963 = vand.u32 %v962, 4294901760
  %964 = vmatpush.msra.mxu0 %v963
  %v965 = vand.u32 %v694, 4294901760
  %v966 = vsub.f32 %v694, %v965
  %v967 = vand.u32 %v966, 4294901760
  %968 = vmatpush.msra.mxu0 %v967
  %v969 = vand.u32 %v693, 4294901760
  %v970 = vsub.f32 %v693, %v969
  %v971 = vand.u32 %v970, 4294901760
  %972 = vmatpush.msra.mxu0 %v971
  %v973 = vand.u32 %v692, 4294901760
  %v974 = vsub.f32 %v692, %v973
  %v975 = vand.u32 %v974, 4294901760
  %976 = vmatpush.msra.mxu0 %v975
  %v977 = vand.u32 %v691, 4294901760
  %v978 = vsub.f32 %v691, %v977
  %v979 = vand.u32 %v978, 4294901760
  %980 = vmatpush.msra.mxu0 %v979
  %v981 = vand.u32 %v690, 4294901760
  %v982 = vsub.f32 %v690, %v981
  %v983 = vand.u32 %v982, 4294901760
  %984 = vmatpush.msra.mxu0 %v983
  %v985 = vand.u32 %v689, 4294901760
  %v986 = vsub.f32 %v689, %v985
  %v987 = vand.u32 %v986, 4294901760
  %988 = vmatpush.msra.mxu0 %v987
  %v989 = vand.u32 %v688, 4294901760
  %v990 = vsub.f32 %v688, %v989
  %v991 = vand.u32 %v990, 4294901760
  %992 = vmatpush.msra.mxu0 %v991
  %v993 = vand.u32 %v687, 4294901760
  %v994 = vsub.f32 %v687, %v993
  %v995 = vand.u32 %v994, 4294901760
  %996 = vmatpush.msra.mxu0 %v995
  %v997 = vand.u32 %v702, 4294901760
  %998 = vmatmul.f32.gmra.mxu0 %v997
  %v999 = vpop.f32.mrf.mxu0
  %v1000 = vadd.f32 %v934, %v999
  %v1001 = vand.u32 %v705, 4294901760
  %1002 = vmatmul.f32.gmra.mxu0 %v1001
  %v1003 = vpop.f32.mrf.mxu0
  %v1004 = vadd.f32 %v940, %v1003
  %1005 = vdwg.mxu0
  %1006 = vmatpush.msra.mxu0 0.0
  %1007 = vmatpush.msra.mxu0 0.0
  %1008 = vmatpush.msra.mxu0 0.0
  %v1009 = vand.u32 %v709, 4294901760
  %1010 = vmatpush.msra.mxu0 %v1009
  %v1011 = vand.u32 %v698, 4294901760
  %1012 = vmatpush.msra.mxu0 %v1011
  %v1013 = vand.u32 %v697, 4294901760
  %1014 = vmatpush.msra.mxu0 %v1013
  %v1015 = vand.u32 %v696, 4294901760
  %1016 = vmatpush.msra.mxu0 %v1015
  %v1017 = vand.u32 %v695, 4294901760
  %1018 = vmatpush.msra.mxu0 %v1017
  %v1019 = vand.u32 %v694, 4294901760
  %1020 = vmatpush.msra.mxu0 %v1019
  %v1021 = vand.u32 %v693, 4294901760
  %1022 = vmatpush.msra.mxu0 %v1021
  %v1023 = vand.u32 %v692, 4294901760
  %1024 = vmatpush.msra.mxu0 %v1023
  %v1025 = vand.u32 %v691, 4294901760
  %1026 = vmatpush.msra.mxu0 %v1025
  %v1027 = vand.u32 %v690, 4294901760
  %1028 = vmatpush.msra.mxu0 %v1027
  %v1029 = vand.u32 %v689, 4294901760
  %1030 = vmatpush.msra.mxu0 %v1029
  %v1031 = vand.u32 %v688, 4294901760
  %1032 = vmatpush.msra.mxu0 %v1031
  %v1033 = vand.u32 %v687, 4294901760
  %1034 = vmatpush.msra.mxu0 %v1033
  %v1035 = vand.u32 %v702, 4294901760
  %1036 = vmatmul.f32.gmra.mxu0 %v1035
  %v1037 = vpop.f32.mrf.mxu0
  %v1038 = vadd.f32 %v1000, %v1037
  %v1039 = vand.u32 %v705, 4294901760
  %1040 = vmatmul.f32.gmra.mxu0 %v1039
  %v1041 = vpop.f32.mrf.mxu0
  %v1042 = vadd.f32 %v1004, %v1041
  %1043 = vdwg.mxu0
  %v1044 = vld [vmem:[%s5] sm:$0xff]
  %v1045 = vld [vmem:[%s5 + $0x8] sm:$0xff]
  %v1046 = vld [vmem:[%s5 + $0x10] sm:$0xff]
  %v1047 = vld [vmem:[%s5 + $0x18] sm:$0xff]
  %v1048 = vld [vmem:[%s6] sm:$0xff]
  %v1049 = vld [vmem:[%s6 + $0x8] sm:$0xff]
  %v1050 = vld [vmem:[%s6 + $0x10] sm:$0xff]
  %v1051 = vld [vmem:[%s6 + $0x18] sm:$0xff]
  %vm1052 = vcmask 154624
  %1053 = vst.msk [vmem:[#allocation2] sm:$0xff] %vm1052, %v1038
  %1054 = vst.msk [vmem:[#allocation2 + $0x8] sm:$0xff] %vm1052, %v1042
  %1057 = vrot.lane.b32.xlu0 %v1038, 127
  %v1058 = vpop.permute.xlu0 %1057
  %1059 = vrot.lane.b32.xlu0 %v1042, 127
  %v1060 = vpop.permute.xlu0 %1059
  %1063 = vst.msk [vmem:[#allocation2 + $0x10] sm:$0xff] %vm1052, %v1058
  %1064 = vst.msk [vmem:[#allocation2 + $0x18] sm:$0xff] %vm1052, %v1060
  %1065 = vrot.lane.b32.xlu0 %v1038, 126
  %v1066 = vpop.permute.xlu0 %1065
  %1067 = vrot.lane.b32.xlu0 %v1042, 126
  %v1068 = vpop.permute.xlu0 %1067
  %1071 = vst.msk [vmem:[#allocation2 + $0x20] sm:$0xff] %vm1052, %v1066
  %1072 = vst.msk [vmem:[#allocation2 + $0x28] sm:$0xff] %vm1052, %v1068
  %1073 = vrot.lane.b32.xlu0 %v1038, 125
  %v1074 = vpop.permute.xlu0 %1073
  %1075 = vrot.lane.b32.xlu0 %v1042, 125
  %v1076 = vpop.permute.xlu0 %1075
  %1079 = vst.msk [vmem:[#allocation2 + $0x30] sm:$0xff] %vm1052, %v1074
  %1080 = vst.msk [vmem:[#allocation2 + $0x38] sm:$0xff] %vm1052, %v1076
  %1081 = vrot.lane.b32.xlu0 %v1038, 124
  %v1082 = vpop.permute.xlu0 %1081
  %1083 = vrot.lane.b32.xlu0 %v1042, 124
  %v1084 = vpop.permute.xlu0 %1083
  %1087 = vst.msk [vmem:[#allocation2 + $0x40] sm:$0xff] %vm1052, %v1082
  %1088 = vst.msk [vmem:[#allocation2 + $0x48] sm:$0xff] %vm1052, %v1084
  %1089 = vrot.lane.b32.xlu0 %v1038, 123
  %v1090 = vpop.permute.xlu0 %1089
  %1091 = vrot.lane.b32.xlu0 %v1042, 123
  %v1092 = vpop.permute.xlu0 %1091
  %1095 = vst.msk [vmem:[#allocation2 + $0x50] sm:$0xff] %vm1052, %v1090
  %1096 = vst.msk [vmem:[#allocation2 + $0x58] sm:$0xff] %vm1052, %v1092
  %1097 = vrot.lane.b32.xlu0 %v1038, 122
  %v1098 = vpop.permute.xlu0 %1097
  %1099 = vrot.lane.b32.xlu0 %v1042, 122
  %v1100 = vpop.permute.xlu0 %1099
  %1103 = vst.msk [vmem:[#allocation2 + $0x60] sm:$0xff] %vm1052, %v1098
  %1104 = vst.msk [vmem:[#allocation2 + $0x68] sm:$0xff] %vm1052, %v1100
  %1105 = vrot.lane.b32.xlu0 %v1038, 121
  %v1106 = vpop.permute.xlu0 %1105
  %1107 = vrot.lane.b32.xlu0 %v1042, 121
  %v1108 = vpop.permute.xlu0 %1107
  %1111 = vst.msk [vmem:[#allocation2 + $0x70] sm:$0xff] %vm1052, %v1106
  %1112 = vst.msk [vmem:[#allocation2 + $0x78] sm:$0xff] %vm1052, %v1108
  %v1113 = vld [vmem:[#allocation2] sm:$0xff]
  %v1114 = vld [vmem:[#allocation2 + $0x8] sm:$0xff]
  %v1115 = vld [vmem:[#allocation2 + $0x10] sm:$0xff]
  %v1116 = vld [vmem:[#allocation2 + $0x18] sm:$0xff]
  %v1117 = vld [vmem:[#allocation2 + $0x20] sm:$0xff]
  %v1118 = vld [vmem:[#allocation2 + $0x28] sm:$0xff]
  %v1119 = vld [vmem:[#allocation2 + $0x30] sm:$0xff]
  %v1120 = vld [vmem:[#allocation2 + $0x38] sm:$0xff]
  %v1121 = vld [vmem:[#allocation2 + $0x40] sm:$0xff]
  %v1122 = vld [vmem:[#allocation2 + $0x48] sm:$0xff]
  %v1123 = vld [vmem:[#allocation2 + $0x50] sm:$0xff]
  %v1124 = vld [vmem:[#allocation2 + $0x58] sm:$0xff]
  %v1125 = vld [vmem:[#allocation2 + $0x60] sm:$0xff]
  %v1126 = vld [vmem:[#allocation2 + $0x68] sm:$0xff]
  %v1127 = vld [vmem:[#allocation2 + $0x70] sm:$0xff]
  %v1128 = vld [vmem:[#allocation2 + $0x78] sm:$0xff]
  %1130 = vset.pattern.permute.xlu0 0
  %1131 = vperm.xlu0 %1130, %v1048
  %v1132 = vpop.permute.xlu0 %1131
  %1135 = vset.pattern.permute.xlu0 0
  %1136 = vperm.xlu0 %1135, %v1049
  %v1137 = vpop.permute.xlu0 %1136
  %1140 = vset.pattern.permute.xlu0 0
  %1141 = vperm.xlu0 %1140, %v1050
  %v1142 = vpop.permute.xlu0 %1141
  %1145 = vset.pattern.permute.xlu0 0
  %1146 = vperm.xlu0 %1145, %v1051
  %v1147 = vpop.permute.xlu0 %1146
  %1149 = vmatpush.msra.mxu0 %v1128
  %1150 = vmatpush.msra.mxu0 %v1127
  %1151 = vmatpush.msra.mxu0 %v1126
  %1152 = vmatpush.msra.mxu0 %v1125
  %1153 = vmatpush.msra.mxu0 %v1124
  %1154 = vmatpush.msra.mxu0 %v1123
  %1155 = vmatpush.msra.mxu0 %v1122
  %1156 = vmatpush.msra.mxu0 %v1121
  %1157 = vmatpush.msra.mxu0 %v1120
  %1158 = vmatpush.msra.mxu0 %v1119
  %1159 = vmatpush.msra.mxu0 %v1118
  %1160 = vmatpush.msra.mxu0 %v1117
  %1161 = vmatpush.msra.mxu0 %v1116
  %1162 = vmatpush.msra.mxu0 %v1115
  %1163 = vmatpush.msra.mxu0 %v1114
  %1164 = vmatpush.msra.mxu0 %v1113
  %1165 = vmatmul.f32.gmra.mxu0 %v1044
  %v1166 = vpop.f32.mrf.mxu0
  %v1167 = vadd.f32 %v1132, %v1166
  %1168 = vmatmul.f32.gmra.mxu0 %v1045
  %v1169 = vpop.f32.mrf.mxu0
  %v1170 = vadd.f32 %v1137, %v1169
  %1171 = vmatmul.f32.gmra.mxu0 %v1046
  %v1172 = vpop.f32.mrf.mxu0
  %v1173 = vadd.f32 %v1142, %v1172
  %1174 = vmatmul.f32.gmra.mxu0 %v1047
  %v1175 = vpop.f32.mrf.mxu0
  %v1176 = vadd.f32 %v1147, %v1175
  %1177 = vdwg.mxu0
  %v1178 = vmax.f32 %v1167, 0.0
  %v1179 = vmax.f32 %v1170, 0.0
  %v1180 = vmax.f32 %v1173, 0.0
  %v1181 = vmax.f32 %v1176, 0.0
  %1186 = vrot.lane.b32.xlu0 %v1178, 126
  %v1187 = vpop.permute.xlu0 %1186
  %1188 = vrot.lane.b32.xlu0 %v1179, 126
  %v1189 = vpop.permute.xlu0 %1188
  %1190 = vrot.lane.b32.xlu0 %v1180, 126
  %v1191 = vpop.permute.xlu0 %1190
  %1192 = vrot.lane.b32.xlu0 %v1181, 126
  %v1193 = vpop.permute.xlu0 %1192
  %v1198 = vmax.f32 %v1178, %v1187
  %v1199 = vmax.f32 %v1179, %v1189
  %v1200 = vmax.f32 %v1180, %v1191
  %v1201 = vmax.f32 %v1181, %v1193
  %v1202 = vld [vmem:[%s10] sm:$0xff]
  %v1203 = vld [vmem:[%s10 + $0x8] sm:$0xff]
  %v1204 = vld [vmem:[%s10 + $0x10] sm:$0x1]
  %vm1205 = vcmask 138240
  %v1207 = vsel %vm1205, %v1198, 0
  %v1210 = vsel %vm1205, %v1199, 0
  %v1213 = vsel %vm1205, %v1200, 0
  %v1216 = vsel %vm1205, %v1201, 0
  %vm1218 = vcmask 1040384
  %v1220 = vsel %vm1218, %v1204, 0
  %1222 = vmatpush.msra.mxu0 0.0
  %1223 = vmatpush.msra.mxu0 0.0
  %1224 = vmatpush.msra.mxu0 0.0
  %1225 = vmatpush.msra.mxu0 0.0
  %1226 = vmatpush.msra.mxu0 0.0
  %1227 = vmatpush.msra.mxu0 0.0
  %1228 = vmatpush.msra.mxu0 0.0
  %1229 = vmatpush.msra.mxu0 0.0
  %1230 = vmatpush.msra.mxu0 0.0
  %1231 = vmatpush.msra.mxu0 0.0
  %1232 = vmatpush.msra.mxu0 0.0
  %1233 = vmatpush.msra.mxu0 0.0
  %1234 = vmatpush.msra.mxu0 0.0
  %v1235 = vand.u32 %v1220, 4294901760
  %1236 = vmatpush.msra.mxu0 %v1235
  %v1237 = vand.u32 %v1203, 4294901760
  %1238 = vmatpush.msra.mxu0 %v1237
  %v1239 = vand.u32 %v1202, 4294901760
  %1240 = vmatpush.msra.mxu0 %v1239
  %v1241 = vand.u32 %v1207, 4294901760
  %v1242 = vsub.f32 %v1207, %v1241
  %v1243 = vand.u32 %v1242, 4294901760
  %v1244 = vsub.f32 %v1242, %v1243
  %v1245 = vand.u32 %v1244, 4294901760
  %1246 = vmatmul.f32.gmra.mxu0 %v1245
  %v1247 = vpop.f32.mrf.mxu0
  %v1248 = vadd.f32 0.0, %v1247
  %v1249 = vand.u32 %v1210, 4294901760
  %v1250 = vsub.f32 %v1210, %v1249
  %v1251 = vand.u32 %v1250, 4294901760
  %v1252 = vsub.f32 %v1250, %v1251
  %v1253 = vand.u32 %v1252, 4294901760
  %1254 = vmatmul.f32.gmra.mxu0 %v1253
  %v1255 = vpop.f32.mrf.mxu0
  %v1256 = vadd.f32 0.0, %v1255
  %v1257 = vand.u32 %v1213, 4294901760
  %v1258 = vsub.f32 %v1213, %v1257
  %v1259 = vand.u32 %v1258, 4294901760
  %v1260 = vsub.f32 %v1258, %v1259
  %v1261 = vand.u32 %v1260, 4294901760
  %1262 = vmatmul.f32.gmra.mxu0 %v1261
  %v1263 = vpop.f32.mrf.mxu0
  %v1264 = vadd.f32 0.0, %v1263
  %v1265 = vand.u32 %v1216, 4294901760
  %v1266 = vsub.f32 %v1216, %v1265
  %v1267 = vand.u32 %v1266, 4294901760
  %v1268 = vsub.f32 %v1266, %v1267
  %v1269 = vand.u32 %v1268, 4294901760
  %1270 = vmatmul.f32.gmra.mxu0 %v1269
  %v1271 = vpop.f32.mrf.mxu0
  %v1272 = vadd.f32 0.0, %v1271
  %1273 = vdwg.mxu0
  %1274 = vmatpush.msra.mxu0 0.0
  %1275 = vmatpush.msra.mxu0 0.0
  %1276 = vmatpush.msra.mxu0 0.0
  %1277 = vmatpush.msra.mxu0 0.0
  %1278 = vmatpush.msra.mxu0 0.0
  %1279 = vmatpush.msra.mxu0 0.0
  %1280 = vmatpush.msra.mxu0 0.0
  %1281 = vmatpush.msra.mxu0 0.0
  %1282 = vmatpush.msra.mxu0 0.0
  %1283 = vmatpush.msra.mxu0 0.0
  %1284 = vmatpush.msra.mxu0 0.0
  %1285 = vmatpush.msra.mxu0 0.0
  %1286 = vmatpush.msra.mxu0 0.0
  %v1287 = vand.u32 %v1220, 4294901760
  %v1288 = vsub.f32 %v1220, %v1287
  %v1289 = vand.u32 %v1288, 4294901760
  %v1290 = vsub.f32 %v1288, %v1289
  %v1291 = vand.u32 %v1290, 4294901760
  %1292 = vmatpush.msra.mxu0 %v1291
  %v1293 = vand.u32 %v1203, 4294901760
  %v1294 = vsub.f32 %v1203, %v1293
  %v1295 = vand.u32 %v1294, 4294901760
  %v1296 = vsub.f32 %v1294, %v1295
  %v1297 = vand.u32 %v1296, 4294901760
  %1298 = vmatpush.msra.mxu0 %v1297
  %v1299 = vand.u32 %v1202, 4294901760
  %v1300 = vsub.f32 %v1202, %v1299
  %v1301 = vand.u32 %v1300, 4294901760
  %v1302 = vsub.f32 %v1300, %v1301
  %v1303 = vand.u32 %v1302, 4294901760
  %1304 = vmatpush.msra.mxu0 %v1303
  %v1305 = vand.u32 %v1207, 4294901760
  %1306 = vmatmul.f32.gmra.mxu0 %v1305
  %v1307 = vpop.f32.mrf.mxu0
  %v1308 = vadd.f32 %v1248, %v1307
  %v1309 = vand.u32 %v1210, 4294901760
  %1310 = vmatmul.f32.gmra.mxu0 %v1309
  %v1311 = vpop.f32.mrf.mxu0
  %v1312 = vadd.f32 %v1256, %v1311
  %v1313 = vand.u32 %v1213, 4294901760
  %1314 = vmatmul.f32.gmra.mxu0 %v1313
  %v1315 = vpop.f32.mrf.mxu0
  %v1316 = vadd.f32 %v1264, %v1315
  %v1317 = vand.u32 %v1216, 4294901760
  %1318 = vmatmul.f32.gmra.mxu0 %v1317
  %v1319 = vpop.f32.mrf.mxu0
  %v1320 = vadd.f32 %v1272, %v1319
  %1321 = vdwg.mxu0
  %1322 = vmatpush.msra.mxu0 0.0
  %1323 = vmatpush.msra.mxu0 0.0
  %1324 = vmatpush.msra.mxu0 0.0
  %1325 = vmatpush.msra.mxu0 0.0
  %1326 = vmatpush.msra.mxu0 0.0
  %1327 = vmatpush.msra.mxu0 0.0
  %1328 = vmatpush.msra.mxu0 0.0
  %1329 = vmatpush.msra.mxu0 0.0
  %1330 = vmatpush.msra.mxu0 0.0
  %1331 = vmatpush.msra.mxu0 0.0
  %1332 = vmatpush.msra.mxu0 0.0
  %1333 = vmatpush.msra.mxu0 0.0
  %1334 = vmatpush.msra.mxu0 0.0
  %v1335 = vand.u32 %v1220, 4294901760
  %v1336 = vsub.f32 %v1220, %v1335
  %1337 = vmatpush.msra.mxu0 %v1336
  %v1338 = vand.u32 %v1203, 4294901760
  %v1339 = vsub.f32 %v1203, %v1338
  %1340 = vmatpush.msra.mxu0 %v1339
  %v1341 = vand.u32 %v1202, 4294901760
  %v1342 = vsub.f32 %v1202, %v1341
  %1343 = vmatpush.msra.mxu0 %v1342
  %v1344 = vand.u32 %v1207, 4294901760
  %v1345 = vsub.f32 %v1207, %v1344
  %1346 = vmatmul.f32.gmra.mxu0 %v1345
  %v1347 = vpop.f32.mrf.mxu0
  %v1348 = vadd.f32 %v1308, %v1347
  %v1349 = vand.u32 %v1210, 4294901760
  %v1350 = vsub.f32 %v1210, %v1349
  %1351 = vmatmul.f32.gmra.mxu0 %v1350
  %v1352 = vpop.f32.mrf.mxu0
  %v1353 = vadd.f32 %v1312, %v1352
  %v1354 = vand.u32 %v1213, 4294901760
  %v1355 = vsub.f32 %v1213, %v1354
  %1356 = vmatmul.f32.gmra.mxu0 %v1355
  %v1357 = vpop.f32.mrf.mxu0
  %v1358 = vadd.f32 %v1316, %v1357
  %v1359 = vand.u32 %v1216, 4294901760
  %v1360 = vsub.f32 %v1216, %v1359
  %1361 = vmatmul.f32.gmra.mxu0 %v1360
  %v1362 = vpop.f32.mrf.mxu0
  %v1363 = vadd.f32 %v1320, %v1362
  %1364 = vdwg.mxu0
  %1365 = vmatpush.msra.mxu0 0.0
  %1366 = vmatpush.msra.mxu0 0.0
  %1367 = vmatpush.msra.mxu0 0.0
  %1368 = vmatpush.msra.mxu0 0.0
  %1369 = vmatpush.msra.mxu0 0.0
  %1370 = vmatpush.msra.mxu0 0.0
  %1371 = vmatpush.msra.mxu0 0.0
  %1372 = vmatpush.msra.mxu0 0.0
  %1373 = vmatpush.msra.mxu0 0.0
  %1374 = vmatpush.msra.mxu0 0.0
  %1375 = vmatpush.msra.mxu0 0.0
  %1376 = vmatpush.msra.mxu0 0.0
  %1377 = vmatpush.msra.mxu0 0.0
  %v1378 = vand.u32 %v1220, 4294901760
  %1379 = vmatpush.msra.mxu0 %v1378
  %v1380 = vand.u32 %v1203, 4294901760
  %1381 = vmatpush.msra.mxu0 %v1380
  %v1382 = vand.u32 %v1202, 4294901760
  %1383 = vmatpush.msra.mxu0 %v1382
  %v1384 = vand.u32 %v1207, 4294901760
  %v1385 = vsub.f32 %v1207, %v1384
  %v1386 = vand.u32 %v1385, 4294901760
  %1387 = vmatmul.f32.gmra.mxu0 %v1386
  %v1388 = vpop.f32.mrf.mxu0
  %v1389 = vadd.f32 %v1348, %v1388
  %v1390 = vand.u32 %v1210, 4294901760
  %v1391 = vsub.f32 %v1210, %v1390
  %v1392 = vand.u32 %v1391, 4294901760
  %1393 = vmatmul.f32.gmra.mxu0 %v1392
  %v1394 = vpop.f32.mrf.mxu0
  %v1395 = vadd.f32 %v1353, %v1394
  %v1396 = vand.u32 %v1213, 4294901760
  %v1397 = vsub.f32 %v1213, %v1396
  %v1398 = vand.u32 %v1397, 4294901760
  %1399 = vmatmul.f32.gmra.mxu0 %v1398
  %v1400 = vpop.f32.mrf.mxu0
  %v1401 = vadd.f32 %v1358, %v1400
  %v1402 = vand.u32 %v1216, 4294901760
  %v1403 = vsub.f32 %v1216, %v1402
  %v1404 = vand.u32 %v1403, 4294901760
  %1405 = vmatmul.f32.gmra.mxu0 %v1404
  %v1406 = vpop.f32.mrf.mxu0
  %v1407 = vadd.f32 %v1363, %v1406
  %1408 = vdwg.mxu0
  %1409 = vmatpush.msra.mxu0 0.0
  %1410 = vmatpush.msra.mxu0 0.0
  %1411 = vmatpush.msra.mxu0 0.0
  %1412 = vmatpush.msra.mxu0 0.0
  %1413 = vmatpush.msra.mxu0 0.0
  %1414 = vmatpush.msra.mxu0 0.0
  %1415 = vmatpush.msra.mxu0 0.0
  %1416 = vmatpush.msra.mxu0 0.0
  %1417 = vmatpush.msra.mxu0 0.0
  %1418 = vmatpush.msra.mxu0 0.0
  %1419 = vmatpush.msra.mxu0 0.0
  %1420 = vmatpush.msra.mxu0 0.0
  %1421 = vmatpush.msra.mxu0 0.0
  %v1422 = vand.u32 %v1220, 4294901760
  %v1423 = vsub.f32 %v1220, %v1422
  %v1424 = vand.u32 %v1423, 4294901760
  %1425 = vmatpush.msra.mxu0 %v1424
  %v1426 = vand.u32 %v1203, 4294901760
  %v1427 = vsub.f32 %v1203, %v1426
  %v1428 = vand.u32 %v1427, 4294901760
  %1429 = vmatpush.msra.mxu0 %v1428
  %v1430 = vand.u32 %v1202, 4294901760
  %v1431 = vsub.f32 %v1202, %v1430
  %v1432 = vand.u32 %v1431, 4294901760
  %1433 = vmatpush.msra.mxu0 %v1432
  %v1434 = vand.u32 %v1207, 4294901760
  %1435 = vmatmul.f32.gmra.mxu0 %v1434
  %v1436 = vpop.f32.mrf.mxu0
  %v1437 = vadd.f32 %v1389, %v1436
  %v1438 = vand.u32 %v1210, 4294901760
  %1439 = vmatmul.f32.gmra.mxu0 %v1438
  %v1440 = vpop.f32.mrf.mxu0
  %v1441 = vadd.f32 %v1395, %v1440
  %v1442 = vand.u32 %v1213, 4294901760
  %1443 = vmatmul.f32.gmra.mxu0 %v1442
  %v1444 = vpop.f32.mrf.mxu0
  %v1445 = vadd.f32 %v1401, %v1444
  %v1446 = vand.u32 %v1216, 4294901760
  %1447 = vmatmul.f32.gmra.mxu0 %v1446
  %v1448 = vpop.f32.mrf.mxu0
  %v1449 = vadd.f32 %v1407, %v1448
  %1450 = vdwg.mxu0
  %1451 = vmatpush.msra.mxu0 0.0
  %1452 = vmatpush.msra.mxu0 0.0
  %1453 = vmatpush.msra.mxu0 0.0
  %1454 = vmatpush.msra.mxu0 0.0
  %1455 = vmatpush.msra.mxu0 0.0
  %1456 = vmatpush.msra.mxu0 0.0
  %1457 = vmatpush.msra.mxu0 0.0
  %1458 = vmatpush.msra.mxu0 0.0
  %1459 = vmatpush.msra.mxu0 0.0
  %1460 = vmatpush.msra.mxu0 0.0
  %1461 = vmatpush.msra.mxu0 0.0
  %1462 = vmatpush.msra.mxu0 0.0
  %1463 = vmatpush.msra.mxu0 0.0
  %v1464 = vand.u32 %v1220, 4294901760
  %1465 = vmatpush.msra.mxu0 %v1464
  %v1466 = vand.u32 %v1203, 4294901760
  %1467 = vmatpush.msra.mxu0 %v1466
  %v1468 = vand.u32 %v1202, 4294901760
  %1469 = vmatpush.msra.mxu0 %v1468
  %v1470 = vand.u32 %v1207, 4294901760
  %1471 = vmatmul.f32.gmra.mxu0 %v1470
  %v1472 = vpop.f32.mrf.mxu0
  %v1473 = vadd.f32 %v1437, %v1472
  %v1474 = vand.u32 %v1210, 4294901760
  %1475 = vmatmul.f32.gmra.mxu0 %v1474
  %v1476 = vpop.f32.mrf.mxu0
  %v1477 = vadd.f32 %v1441, %v1476
  %v1478 = vand.u32 %v1213, 4294901760
  %1479 = vmatmul.f32.gmra.mxu0 %v1478
  %v1480 = vpop.f32.mrf.mxu0
  %v1481 = vadd.f32 %v1445, %v1480
  %v1482 = vand.u32 %v1216, 4294901760
  %1483 = vmatmul.f32.gmra.mxu0 %v1482
  %v1484 = vpop.f32.mrf.mxu0
  %v1485 = vadd.f32 %v1449, %v1484
  %1486 = vdwg.mxu0
  %v1487 = vld [vmem:[%s7] sm:$0xff]
  %v1488 = vld [vmem:[%s7 + $0x8] sm:$0xff]
  %v1489 = vld [vmem:[%s7 + $0x10] sm:$0xff]
  %v1490 = vld [vmem:[%s7 + $0x18] sm:$0xff]
  %v1491 = vld [vmem:[%s8] sm:$0xff]
  %v1492 = vld [vmem:[%s8 + $0x8] sm:$0xff]
  %v1493 = vld [vmem:[%s8 + $0x10] sm:$0xff]
  %v1494 = vld [vmem:[%s8 + $0x18] sm:$0xff]
  %vm1495 = vcmask 23552
  %1496 = vst.msk [vmem:[#allocation2] sm:$0xff] %vm1495, %v1473
  %1497 = vst.msk [vmem:[#allocation2 + $0x8] sm:$0xff] %vm1495, %v1477
  %1498 = vst.msk [vmem:[#allocation2 + $0x10] sm:$0xff] %vm1495, %v1481
  %1499 = vst.msk [vmem:[#allocation2 + $0x18] sm:$0xff] %vm1495, %v1485
  %1504 = vrot.lane.b32.xlu0 %v1473, 127
  %v1505 = vpop.permute.xlu0 %1504
  %1506 = vrot.lane.b32.xlu0 %v1477, 127
  %v1507 = vpop.permute.xlu0 %1506
  %1508 = vrot.lane.b32.xlu0 %v1481, 127
  %v1509 = vpop.permute.xlu0 %1508
  %1510 = vrot.lane.b32.xlu0 %v1485, 127
  %v1511 = vpop.permute.xlu0 %1510
  %1516 = vst.msk [vmem:[#allocation2 + $0x20] sm:$0xff] %vm1495, %v1505
  %1517 = vst.msk [vmem:[#allocation2 + $0x28] sm:$0xff] %vm1495, %v1507
  %1518 = vst.msk [vmem:[#allocation2 + $0x30] sm:$0xff] %vm1495, %v1509
  %1519 = vst.msk [vmem:[#allocation2 + $0x38] sm:$0xff] %vm1495, %v1511
  %1520 = vrot.lane.b32.xlu0 %v1473, 126
  %v1521 = vpop.permute.xlu0 %1520
  %1522 = vrot.lane.b32.xlu0 %v1477, 126
  %v1523 = vpop.permute.xlu0 %1522
  %1524 = vrot.lane.b32.xlu0 %v1481, 126
  %v1525 = vpop.permute.xlu0 %1524
  %1526 = vrot.lane.b32.xlu0 %v1485, 126
  %v1527 = vpop.permute.xlu0 %1526
  %1532 = vst.msk [vmem:[#allocation2 + $0x40] sm:$0xff] %vm1495, %v1521
  %1533 = vst.msk [vmem:[#allocation2 + $0x48] sm:$0xff] %vm1495, %v1523
  %1534 = vst.msk [vmem:[#allocation2 + $0x50] sm:$0xff] %vm1495, %v1525
  %1535 = vst.msk [vmem:[#allocation2 + $0x58] sm:$0xff] %vm1495, %v1527
  %v1536 = vld [vmem:[#allocation2] sm:$0xff]
  %v1537 = vld [vmem:[#allocation2 + $0x8] sm:$0xff]
  %v1538 = vld [vmem:[#allocation2 + $0x10] sm:$0xff]
  %v1539 = vld [vmem:[#allocation2 + $0x18] sm:$0xff]
  %v1540 = vld [vmem:[#allocation2 + $0x20] sm:$0xff]
  %v1541 = vld [vmem:[#allocation2 + $0x28] sm:$0xff]
  %v1542 = vld [vmem:[#allocation2 + $0x30] sm:$0xff]
  %v1543 = vld [vmem:[#allocation2 + $0x38] sm:$0xff]
  %v1544 = vld [vmem:[#allocation2 + $0x40] sm:$0xff]
  %v1545 = vld [vmem:[#allocation2 + $0x48] sm:$0xff]
  %v1546 = vld [vmem:[#allocation2 + $0x50] sm:$0xff]
  %v1547 = vld [vmem:[#allocation2 + $0x58] sm:$0xff]
  %1549 = vset.pattern.permute.xlu0 0
  %1550 = vperm.xlu0 %1549, %v1491
  %v1551 = vpop.permute.xlu0 %1550
  %1554 = vset.pattern.permute.xlu0 0
  %1555 = vperm.xlu0 %1554, %v1492
  %v1556 = vpop.permute.xlu0 %1555
  %1559 = vset.pattern.permute.xlu0 0
  %1560 = vperm.xlu0 %1559, %v1493
  %v1561 = vpop.permute.xlu0 %1560
  %1564 = vset.pattern.permute.xlu0 0
  %1565 = vperm.xlu0 %1564, %v1494
  %v1566 = vpop.permute.xlu0 %1565
  %vm1568 = vcmask 785408
  %v1570 = vsel %vm1568, %v1487, 0
  %v1573 = vsel %vm1568, %v1488, 0
  %v1576 = vsel %vm1568, %v1489, 0
  %v1579 = vsel %vm1568, %v1490, 0
  %1581 = vmatpush.msra.mxu0 0.0
  %1582 = vmatpush.msra.mxu0 0.0
  %1583 = vmatpush.msra.mxu0 0.0
  %1584 = vmatpush.msra.mxu0 0.0
  %1585 = vmatpush.msra.mxu0 %v1547
  %1586 = vmatpush.msra.mxu0 %v1546
  %1587 = vmatpush.msra.mxu0 %v1545
  %1588 = vmatpush.msra.mxu0 %v1544
  %1589 = vmatpush.msra.mxu0 %v1543
  %1590 = vmatpush.msra.mxu0 %v1542
  %1591 = vmatpush.msra.mxu0 %v1541
  %1592 = vmatpush.msra.mxu0 %v1540
  %1593 = vmatpush.msra.mxu0 %v1539
  %1594 = vmatpush.msra.mxu0 %v1538
  %1595 = vmatpush.msra.mxu0 %v1537
  %1596 = vmatpush.msra.mxu0 %v1536
  %1597 = vmatmul.f32.gmra.mxu0 %v1570
  %v1598 = vpop.f32.mrf.mxu0
  %v1599 = vadd.f32 %v1551, %v1598
  %1600 = vmatmul.f32.gmra.mxu0 %v1573
  %v1601 = vpop.f32.mrf.mxu0
  %v1602 = vadd.f32 %v1556, %v1601
  %1603 = vmatmul.f32.gmra.mxu0 %v1576
  %v1604 = vpop.f32.mrf.mxu0
  %v1605 = vadd.f32 %v1561, %v1604
  %1606 = vmatmul.f32.gmra.mxu0 %v1579
  %v1607 = vpop.f32.mrf.mxu0
  %v1608 = vadd.f32 %v1566, %v1607
  %1609 = vdwg.mxu0
  %v1610 = vmax.f32 %v1599, 0.0
  %v1611 = vmax.f32 %v1602, 0.0
  %v1612 = vmax.f32 %v1605, 0.0
  %v1613 = vmax.f32 %v1608, 0.0
  %1618 = vrot.lane.b32.xlu0 %v1610, 126
  %v1619 = vpop.permute.xlu0 %1618
  %1620 = vrot.lane.b32.xlu0 %v1611, 126
  %v1621 = vpop.permute.xlu0 %1620
  %1622 = vrot.lane.b32.xlu0 %v1612, 126
  %v1623 = vpop.permute.xlu0 %1622
  %1624 = vrot.lane.b32.xlu0 %v1613, 126
  %v1625 = vpop.permute.xlu0 %1624
  %v1630 = vmax.f32 %v1610, %v1619
  %v1631 = vmax.f32 %v1611, %v1621
  %v1632 = vmax.f32 %v1612, %v1623
  %v1633 = vmax.f32 %v1613, %v1625
  %vm1634 = vcmask 7168
  %1635 = vst.msk [vmem:[#allocation3] sm:$0xff] %vm1634, %v1630
  %1636 = vst.msk [vmem:[#allocation3 + $0x8] sm:$0xff] %vm1634, %v1631
  %1637 = vst.msk [vmem:[#allocation3 + $0x10] sm:$0xff] %vm1634, %v1632
  %1638 = vst.msk [vmem:[#allocation3 + $0x18] sm:$0xff] %vm1634, %v1633
  %v1639 = vld [vmem:[%s1] sm:$0xff]
  %v1640 = vld [vmem:[%s2] sm:$0xff]
  %s1641 = scalar_lea.vmem %s0, 4
  %v1642 = vld [vmem:[%s1641] sm:$0xf]
  %1644 = vset.pattern.permute.xlu0 0
  %1645 = vperm.xlu0 %1644, %v1640
  %v1646 = vpop.permute.xlu0 %1645
  %1649 = vset.pattern.permute.xlu0 0
  %1650 = vperm.xlu0 %1649, %v1639
  %v1651 = vpop.permute.xlu0 %1650
  %v1653 = vperm.slane %v1642, 0
  %v1654 = vmul.f32 %v1651, %v1653
  %v1655 = vadd.f32 %v1646, %v1654
  %v1656 = vperm.slane %v1642, 2
  %v1657 = vmul.f32 %v1651, %v1656
  %v1658 = vadd.f32 %v1646, %v1657
  %1659 = vset.pattern.permute.xlu0 1
  %1660 = vperm.xlu0 %1659, %v1639
  %v1661 = vpop.permute.xlu0 %1660
  %v1663 = vperm.slane %v1642, 1
  %v1664 = vmul.f32 %v1661, %v1663
  %v1665 = vadd.f32 %v1655, %v1664
  %v1666 = vperm.slane %v1642, 3
  %v1667 = vmul.f32 %v1661, %v1666
  %v1668 = vadd.f32 %v1658, %v1667
  %1669 = vset.pattern.permute.xlu0 2
  %1670 = vperm.xlu0 %1669, %v1639
  %v1671 = vpop.permute.xlu0 %1670
  %v1673 = vmul.f32 %v1671, %v1656
  %v1674 = vadd.f32 %v1665, %v1673
  %v1675 = vmul.f32 %v1671, %v1653
  %1677 = vrot.lane.b32.xlu0 %v1675, 127
  %v1678 = vpop.permute.xlu0 %1677
  %v1680 = vadd.f32 %v1668, %v1678
  %1681 = vset.pattern.permute.xlu0 3
  %1682 = vperm.xlu0 %1681, %v1639
  %v1683 = vpop.permute.xlu0 %1682
  %v1685 = vmul.f32 %v1683, %v1666
  %v1686 = vadd.f32 %v1674, %v1685
  %v1687 = vmul.f32 %v1683, %v1663
  %1689 = vrot.lane.b32.xlu0 %v1687, 127
  %v1690 = vpop.permute.xlu0 %1689
  %v1692 = vadd.f32 %v1680, %v1690
  %1693 = vset.pattern.permute.xlu0 4
  %1694 = vperm.xlu0 %1693, %v1639
  %v1695 = vpop.permute.xlu0 %1694
  %v1697 = vmul.f32 %v1695, %v1653
  %1699 = vrot.lane.b32.xlu0 %v1697, 127
  %v1700 = vpop.permute.xlu0 %1699
  %v1702 = vadd.f32 %v1686, %v1700
  %v1703 = vmul.f32 %v1695, %v1656
  %1705 = vrot.lane.b32.xlu0 %v1703, 127
  %v1706 = vpop.permute.xlu0 %1705
  %v1708 = vadd.f32 %v1692, %v1706
  %1709 = vset.pattern.permute.xlu0 5
  %1710 = vperm.xlu0 %1709, %v1639
  %v1711 = vpop.permute.xlu0 %1710
  %v1713 = vmul.f32 %v1711, %v1663
  %1715 = vrot.lane.b32.xlu0 %v1713, 127
  %v1716 = vpop.permute.xlu0 %1715
  %v1718 = vadd.f32 %v1702, %v1716
  %v1719 = vmul.f32 %v1711, %v1666
  %1721 = vrot.lane.b32.xlu0 %v1719, 127
  %v1722 = vpop.permute.xlu0 %1721
  %v1724 = vadd.f32 %v1708, %v1722
  %1725 = vset.pattern.permute.xlu0 6
  %1726 = vperm.xlu0 %1725, %v1639
  %v1727 = vpop.permute.xlu0 %1726
  %v1729 = vmul.f32 %v1727, %v1656
  %1731 = vrot.lane.b32.xlu0 %v1729, 127
  %v1732 = vpop.permute.xlu0 %1731
  %v1734 = vadd.f32 %v1718, %v1732
  %v1735 = vmul.f32 %v1727, %v1653
  %1737 = vrot.lane.b32.xlu0 %v1735, 126
  %v1738 = vpop.permute.xlu0 %1737
  %v1740 = vadd.f32 %v1724, %v1738
  %1741 = vset.pattern.permute.xlu0 7
  %1742 = vperm.xlu0 %1741, %v1639
  %v1743 = vpop.permute.xlu0 %1742
  %v1745 = vmul.f32 %v1743, %v1666
  %1747 = vrot.lane.b32.xlu0 %v1745, 127
  %v1748 = vpop.permute.xlu0 %1747
  %v1750 = vadd.f32 %v1734, %v1748
  %v1751 = vmul.f32 %v1743, %v1663
  %1753 = vrot.lane.b32.xlu0 %v1751, 126
  %v1754 = vpop.permute.xlu0 %1753
  %v1756 = vadd.f32 %v1740, %v1754
  %1757 = vset.pattern.permute.xlu0 8
  %1758 = vperm.xlu0 %1757, %v1639
  %v1759 = vpop.permute.xlu0 %1758
  %v1761 = vmul.f32 %v1759, %v1653
  %1763 = vrot.lane.b32.xlu0 %v1761, 126
  %v1764 = vpop.permute.xlu0 %1763
  %v1766 = vadd.f32 %v1750, %v1764
  %v1767 = vmul.f32 %v1759, %v1656
  %1769 = vrot.lane.b32.xlu0 %v1767, 126
  %v1770 = vpop.permute.xlu0 %1769
  %v1772 = vadd.f32 %v1756, %v1770
  %1773 = vset.pattern.permute.xlu0 9
  %1774 = vperm.xlu0 %1773, %v1639
  %v1775 = vpop.permute.xlu0 %1774
  %v1777 = vmul.f32 %v1775, %v1663
  %1779 = vrot.lane.b32.xlu0 %v1777, 126
  %v1780 = vpop.permute.xlu0 %1779
  %v1782 = vadd.f32 %v1766, %v1780
  %v1783 = vmul.f32 %v1775, %v1666
  %1785 = vrot.lane.b32.xlu0 %v1783, 126
  %v1786 = vpop.permute.xlu0 %1785
  %v1788 = vadd.f32 %v1772, %v1786
  %1789 = vset.pattern.permute.xlu0 10
  %1790 = vperm.xlu0 %1789, %v1639
  %v1791 = vpop.permute.xlu0 %1790
  %v1793 = vmul.f32 %v1791, %v1656
  %1795 = vrot.lane.b32.xlu0 %v1793, 126
  %v1796 = vpop.permute.xlu0 %1795
  %v1798 = vadd.f32 %v1782, %v1796
  %v1799 = vmul.f32 %v1791, %v1653
  %1801 = vrot.lane.b32.xlu0 %v1799, 125
  %v1802 = vpop.permute.xlu0 %1801
  %v1804 = vadd.f32 %v1788, %v1802
  %1805 = vset.pattern.permute.xlu0 11
  %1806 = vperm.xlu0 %1805, %v1639
  %v1807 = vpop.permute.xlu0 %1806
  %v1809 = vmul.f32 %v1807, %v1666
  %1811 = vrot.lane.b32.xlu0 %v1809, 126
  %v1812 = vpop.permute.xlu0 %1811
  %v1814 = vadd.f32 %v1798, %v1812
  %v1815 = vmul.f32 %v1807, %v1663
  %1817 = vrot.lane.b32.xlu0 %v1815, 125
  %v1818 = vpop.permute.xlu0 %1817
  %v1820 = vadd.f32 %v1804, %v1818
  %1821 = vset.pattern.permute.xlu0 12
  %1822 = vperm.xlu0 %1821, %v1639
  %v1823 = vpop.permute.xlu0 %1822
  %v1825 = vmul.f32 %v1823, %v1653
  %1827 = vrot.lane.b32.xlu0 %v1825, 125
  %v1828 = vpop.permute.xlu0 %1827
  %v1830 = vadd.f32 %v1814, %v1828
  %v1831 = vmul.f32 %v1823, %v1656
  %1833 = vrot.lane.b32.xlu0 %v1831, 125
  %v1834 = vpop.permute.xlu0 %1833
  %v1836 = vadd.f32 %v1820, %v1834
  %1837 = vset.pattern.permute.xlu0 13
  %1838 = vperm.xlu0 %1837, %v1639
  %v1839 = vpop.permute.xlu0 %1838
  %v1841 = vmul.f32 %v1839, %v1663
  %1843 = vrot.lane.b32.xlu0 %v1841, 125
  %v1844 = vpop.permute.xlu0 %1843
  %v1846 = vadd.f32 %v1830, %v1844
  %v1847 = vmul.f32 %v1839, %v1666
  %1849 = vrot.lane.b32.xlu0 %v1847, 125
  %v1850 = vpop.permute.xlu0 %1849
  %v1852 = vadd.f32 %v1836, %v1850
  %1853 = vset.pattern.permute.xlu0 14
  %1854 = vperm.xlu0 %1853, %v1639
  %v1855 = vpop.permute.xlu0 %1854
  %v1857 = vmul.f32 %v1855, %v1656
  %1859 = vrot.lane.b32.xlu0 %v1857, 125
  %v1860 = vpop.permute.xlu0 %1859
  %v1862 = vadd.f32 %v1846, %v1860
  %v1863 = vmul.f32 %v1855, %v1653
  %1865 = vrot.lane.b32.xlu0 %v1863, 124
  %v1866 = vpop.permute.xlu0 %1865
  %v1868 = vadd.f32 %v1852, %v1866
  %1869 = vset.pattern.permute.xlu0 15
  %1870 = vperm.xlu0 %1869, %v1639
  %v1871 = vpop.permute.xlu0 %1870
  %v1873 = vmul.f32 %v1871, %v1666
  %1875 = vrot.lane.b32.xlu0 %v1873, 125
  %v1876 = vpop.permute.xlu0 %1875
  %v1878 = vadd.f32 %v1862, %v1876
  %v1879 = vmul.f32 %v1871, %v1663
  %1881 = vrot.lane.b32.xlu0 %v1879, 124
  %v1882 = vpop.permute.xlu0 %1881
  %v1884 = vadd.f32 %v1868, %v1882
  %1885 = vset.pattern.permute.xlu0 16
  %1886 = vperm.xlu0 %1885, %v1639
  %v1887 = vpop.permute.xlu0 %1886
  %v1889 = vmul.f32 %v1887, %v1653
  %1891 = vrot.lane.b32.xlu0 %v1889, 124
  %v1892 = vpop.permute.xlu0 %1891
  %v1894 = vadd.f32 %v1878, %v1892
  %v1895 = vmul.f32 %v1887, %v1656
  %1897 = vrot.lane.b32.xlu0 %v1895, 124
  %v1898 = vpop.permute.xlu0 %1897
  %v1900 = vadd.f32 %v1884, %v1898
  %1901 = vset.pattern.permute.xlu0 17
  %1902 = vperm.xlu0 %1901, %v1639
  %v1903 = vpop.permute.xlu0 %1902
  %v1905 = vmul.f32 %v1903, %v1663
  %1907 = vrot.lane.b32.xlu0 %v1905, 124
  %v1908 = vpop.permute.xlu0 %1907
  %v1910 = vadd.f32 %v1894, %v1908
  %v1911 = vmul.f32 %v1903, %v1666
  %1913 = vrot.lane.b32.xlu0 %v1911, 124
  %v1914 = vpop.permute.xlu0 %1913
  %v1916 = vadd.f32 %v1900, %v1914
  %1917 = vset.pattern.permute.xlu0 18
  %1918 = vperm.xlu0 %1917, %v1639
  %v1919 = vpop.permute.xlu0 %1918
  %v1921 = vmul.f32 %v1919, %v1656
  %1923 = vrot.lane.b32.xlu0 %v1921, 124
  %v1924 = vpop.permute.xlu0 %1923
  %v1926 = vadd.f32 %v1910, %v1924
  %v1927 = vmul.f32 %v1919, %v1653
  %1929 = vrot.lane.b32.xlu0 %v1927, 123
  %v1930 = vpop.permute.xlu0 %1929
  %v1932 = vadd.f32 %v1916, %v1930
  %1933 = vset.pattern.permute.xlu0 19
  %1934 = vperm.xlu0 %1933, %v1639
  %v1935 = vpop.permute.xlu0 %1934
  %v1937 = vmul.f32 %v1935, %v1666
  %1939 = vrot.lane.b32.xlu0 %v1937, 124
  %v1940 = vpop.permute.xlu0 %1939
  %v1942 = vadd.f32 %v1926, %v1940
  %v1943 = vmul.f32 %v1935, %v1663
  %1945 = vrot.lane.b32.xlu0 %v1943, 123
  %v1946 = vpop.permute.xlu0 %1945
  %v1948 = vadd.f32 %v1932, %v1946
  %1949 = vset.pattern.permute.xlu0 20
  %1950 = vperm.xlu0 %1949, %v1639
  %v1951 = vpop.permute.xlu0 %1950
  %v1953 = vmul.f32 %v1951, %v1653
  %1955 = vrot.lane.b32.xlu0 %v1953, 123
  %v1956 = vpop.permute.xlu0 %1955
  %v1958 = vadd.f32 %v1942, %v1956
  %v1959 = vmul.f32 %v1951, %v1656
  %1961 = vrot.lane.b32.xlu0 %v1959, 123
  %v1962 = vpop.permute.xlu0 %1961
  %v1964 = vadd.f32 %v1948, %v1962
  %1965 = vset.pattern.permute.xlu0 21
  %1966 = vperm.xlu0 %1965, %v1639
  %v1967 = vpop.permute.xlu0 %1966
  %v1969 = vmul.f32 %v1967, %v1663
  %1971 = vrot.lane.b32.xlu0 %v1969, 123
  %v1972 = vpop.permute.xlu0 %1971
  %v1974 = vadd.f32 %v1958, %v1972
  %v1975 = vmul.f32 %v1967, %v1666
  %1977 = vrot.lane.b32.xlu0 %v1975, 123
  %v1978 = vpop.permute.xlu0 %1977
  %v1980 = vadd.f32 %v1964, %v1978
  %1981 = vset.pattern.permute.xlu0 22
  %1982 = vperm.xlu0 %1981, %v1639
  %v1983 = vpop.permute.xlu0 %1982
  %v1985 = vmul.f32 %v1983, %v1656
  %1987 = vrot.lane.b32.xlu0 %v1985, 123
  %v1988 = vpop.permute.xlu0 %1987
  %v1990 = vadd.f32 %v1974, %v1988
  %v1991 = vmul.f32 %v1983, %v1653
  %1993 = vrot.lane.b32.xlu0 %v1991, 122
  %v1994 = vpop.permute.xlu0 %1993
  %v1996 = vadd.f32 %v1980, %v1994
  %1997 = vset.pattern.permute.xlu0 23
  %1998 = vperm.xlu0 %1997, %v1639
  %v1999 = vpop.permute.xlu0 %1998
  %v2001 = vmul.f32 %v1999, %v1666
  %2003 = vrot.lane.b32.xlu0 %v2001, 123
  %v2004 = vpop.permute.xlu0 %2003
  %v2006 = vadd.f32 %v1990, %v2004
  %v2007 = vmul.f32 %v1999, %v1663
  %2009 = vrot.lane.b32.xlu0 %v2007, 122
  %v2010 = vpop.permute.xlu0 %2009
  %v2012 = vadd.f32 %v1996, %v2010
  %2013 = vset.pattern.permute.xlu0 24
  %2014 = vperm.xlu0 %2013, %v1639
  %v2015 = vpop.permute.xlu0 %2014
  %v2017 = vmul.f32 %v2015, %v1653
  %2019 = vrot.lane.b32.xlu0 %v2017, 122
  %v2020 = vpop.permute.xlu0 %2019
  %v2022 = vadd.f32 %v2006, %v2020
  %v2023 = vmul.f32 %v2015, %v1656
  %2025 = vrot.lane.b32.xlu0 %v2023, 122
  %v2026 = vpop.permute.xlu0 %2025
  %v2028 = vadd.f32 %v2012, %v2026
  %2029 = vset.pattern.permute.xlu0 25
  %2030 = vperm.xlu0 %2029, %v1639
  %v2031 = vpop.permute.xlu0 %2030
  %v2033 = vmul.f32 %v2031, %v1663
  %2035 = vrot.lane.b32.xlu0 %v2033, 122
  %v2036 = vpop.permute.xlu0 %2035
  %v2038 = vadd.f32 %v2022, %v2036
  %v2039 = vmul.f32 %v2031, %v1666
  %2041 = vrot.lane.b32.xlu0 %v2039, 122
  %v2042 = vpop.permute.xlu0 %2041
  %v2044 = vadd.f32 %v2028, %v2042
  %2045 = vset.pattern.permute.xlu0 26
  %2046 = vperm.xlu0 %2045, %v1639
  %v2047 = vpop.permute.xlu0 %2046
  %v2049 = vmul.f32 %v2047, %v1656
  %2051 = vrot.lane.b32.xlu0 %v2049, 122
  %v2052 = vpop.permute.xlu0 %2051
  %v2054 = vadd.f32 %v2038, %v2052
  %v2055 = vmul.f32 %v2047, %v1653
  %2057 = vrot.lane.b32.xlu0 %v2055, 121
  %v2058 = vpop.permute.xlu0 %2057
  %v2060 = vadd.f32 %v2044, %v2058
  %2061 = vset.pattern.permute.xlu0 27
  %2062 = vperm.xlu0 %2061, %v1639
  %v2063 = vpop.permute.xlu0 %2062
  %v2065 = vmul.f32 %v2063, %v1666
  %2067 = vrot.lane.b32.xlu0 %v2065, 122
  %v2068 = vpop.permute.xlu0 %2067
  %v2070 = vadd.f32 %v2054, %v2068
  %v2071 = vmul.f32 %v2063, %v1663
  %2073 = vrot.lane.b32.xlu0 %v2071, 121
  %v2074 = vpop.permute.xlu0 %2073
  %v2076 = vadd.f32 %v2060, %v2074
  %2077 = vset.pattern.permute.xlu0 28
  %2078 = vperm.xlu0 %2077, %v1639
  %v2079 = vpop.permute.xlu0 %2078
  %v2081 = vmul.f32 %v2079, %v1653
  %2083 = vrot.lane.b32.xlu0 %v2081, 121
  %v2084 = vpop.permute.xlu0 %2083
  %v2086 = vadd.f32 %v2070, %v2084
  %v2087 = vmul.f32 %v2079, %v1656
  %2089 = vrot.lane.b32.xlu0 %v2087, 121
  %v2090 = vpop.permute.xlu0 %2089
  %v2092 = vadd.f32 %v2076, %v2090
  %2093 = vset.pattern.permute.xlu0 29
  %2094 = vperm.xlu0 %2093, %v1639
  %v2095 = vpop.permute.xlu0 %2094
  %v2097 = vmul.f32 %v2095, %v1663
  %2099 = vrot.lane.b32.xlu0 %v2097, 121
  %v2100 = vpop.permute.xlu0 %2099
  %v2102 = vadd.f32 %v2086, %v2100
  %v2103 = vmul.f32 %v2095, %v1666
  %2105 = vrot.lane.b32.xlu0 %v2103, 121
  %v2106 = vpop.permute.xlu0 %2105
  %v2108 = vadd.f32 %v2092, %v2106
  %2109 = vset.pattern.permute.xlu0 30
  %2110 = vperm.xlu0 %2109, %v1639
  %v2111 = vpop.permute.xlu0 %2110
  %v2113 = vmul.f32 %v2111, %v1656
  %2115 = vrot.lane.b32.xlu0 %v2113, 121
  %v2116 = vpop.permute.xlu0 %2115
  %v2118 = vadd.f32 %v2102, %v2116
  %v2119 = vmul.f32 %v2111, %v1653
  %2121 = vrot.lane.b32.xlu0 %v2119, 120
  %v2122 = vpop.permute.xlu0 %2121
  %v2124 = vadd.f32 %v2108, %v2122
  %2125 = vset.pattern.permute.xlu0 31
  %2126 = vperm.xlu0 %2125, %v1639
  %v2127 = vpop.permute.xlu0 %2126
  %v2129 = vmul.f32 %v2127, %v1666
  %2131 = vrot.lane.b32.xlu0 %v2129, 121
  %v2132 = vpop.permute.xlu0 %2131
  %v2134 = vadd.f32 %v2118, %v2132
  %v2135 = vmul.f32 %v2127, %v1663
  %2137 = vrot.lane.b32.xlu0 %v2135, 120
  %v2138 = vpop.permute.xlu0 %2137
  %v2140 = vadd.f32 %v2124, %v2138
  %v2141 = vmax.f32 %v2134, %v2140
  %v2142 = vmax.f32 %v2141, 0.0
  %v2143 = vld [vmem:[%s3] sm:$0xff]
  %v2144 = vld [vmem:[%s3 + $0x8] sm:$0xff]
  %v2145 = vld [vmem:[%s4] sm:$0xff]
  %v2146 = vld [vmem:[%s4 + $0x8] sm:$0xff]
  %2147 = vst.msk [vmem:[#allocation2] sm:$0xff] %vm563, %v2142
  %2149 = vrot.lane.b32.xlu0 %v2142, 127
  %v2150 = vpop.permute.xlu0 %2149
  %2152 = vst.msk [vmem:[#allocation2 + $0x8] sm:$0xff] %vm563, %v2150
  %2153 = vrot.lane.b32.xlu0 %v2142, 126
  %v2154 = vpop.permute.xlu0 %2153
  %2156 = vst.msk [vmem:[#allocation2 + $0x10] sm:$0xff] %vm563, %v2154
  %2157 = vrot.lane.b32.xlu0 %v2142, 125
  %v2158 = vpop.permute.xlu0 %2157
  %2160 = vst.msk [vmem:[#allocation2 + $0x18] sm:$0xff] %vm563, %v2158
  %2161 = vrot.lane.b32.xlu0 %v2142, 124
  %v2162 = vpop.permute.xlu0 %2161
  %2164 = vst.msk [vmem:[#allocation2 + $0x20] sm:$0xff] %vm563, %v2162
  %2165 = vrot.lane.b32.xlu0 %v2142, 123
  %v2166 = vpop.permute.xlu0 %2165
  %2168 = vst.msk [vmem:[#allocation2 + $0x28] sm:$0xff] %vm563, %v2166
  %2169 = vrot.lane.b32.xlu0 %v2142, 122
  %v2170 = vpop.permute.xlu0 %2169
  %2172 = vst.msk [vmem:[#allocation2 + $0x30] sm:$0xff] %vm563, %v2170
  %2173 = vrot.lane.b32.xlu0 %v2142, 121
  %v2174 = vpop.permute.xlu0 %2173
  %2176 = vst.msk [vmem:[#allocation2 + $0x38] sm:$0xff] %vm563, %v2174
  %2177 = vrot.lane.b32.xlu0 %v2142, 120
  %v2178 = vpop.permute.xlu0 %2177
  %2180 = vst.msk [vmem:[#allocation2 + $0x40] sm:$0xff] %vm563, %v2178
  %2181 = vrot.lane.b32.xlu0 %v2142, 119
  %v2182 = vpop.permute.xlu0 %2181
  %2184 = vst.msk [vmem:[#allocation2 + $0x48] sm:$0xff] %vm563, %v2182
  %2185 = vrot.lane.b32.xlu0 %v2142, 118
  %v2186 = vpop.permute.xlu0 %2185
  %2188 = vst.msk [vmem:[#allocation2 + $0x50] sm:$0xff] %vm563, %v2186
  %2189 = vrot.lane.b32.xlu0 %v2142, 117
  %v2190 = vpop.permute.xlu0 %2189
  %2192 = vst.msk [vmem:[#allocation2 + $0x58] sm:$0xff] %vm563, %v2190
  %2193 = vrot.lane.b32.xlu0 %v2142, 116
  %v2194 = vpop.permute.xlu0 %2193
  %2196 = vst.msk [vmem:[#allocation2 + $0x60] sm:$0xff] %vm563, %v2194
  %2197 = vrot.lane.b32.xlu0 %v2142, 115
  %v2198 = vpop.permute.xlu0 %2197
  %2200 = vst.msk [vmem:[#allocation2 + $0x68] sm:$0xff] %vm563, %v2198
  %2201 = vrot.lane.b32.xlu0 %v2142, 114
  %v2202 = vpop.permute.xlu0 %2201
  %2204 = vst.msk [vmem:[#allocation2 + $0x70] sm:$0xff] %vm563, %v2202
  %2205 = vrot.lane.b32.xlu0 %v2142, 113
  %v2206 = vpop.permute.xlu0 %2205
  %2208 = vst.msk [vmem:[#allocation2 + $0x78] sm:$0xff] %vm563, %v2206
  %v2209 = vld [vmem:[#allocation2] sm:$0xff]
  %v2210 = vld [vmem:[#allocation2 + $0x8] sm:$0xff]
  %v2211 = vld [vmem:[#allocation2 + $0x10] sm:$0xff]
  %v2212 = vld [vmem:[#allocation2 + $0x18] sm:$0xff]
  %v2213 = vld [vmem:[#allocation2 + $0x20] sm:$0xff]
  %v2214 = vld [vmem:[#allocation2 + $0x28] sm:$0xff]
  %v2215 = vld [vmem:[#allocation2 + $0x30] sm:$0xff]
  %v2216 = vld [vmem:[#allocation2 + $0x38] sm:$0xff]
  %v2217 = vld [vmem:[#allocation2 + $0x40] sm:$0xff]
  %v2218 = vld [vmem:[#allocation2 + $0x48] sm:$0xff]
  %v2219 = vld [vmem:[#allocation2 + $0x50] sm:$0xff]
  %v2220 = vld [vmem:[#allocation2 + $0x58] sm:$0xff]
  %v2221 = vld [vmem:[#allocation2 + $0x60] sm:$0xff]
  %v2222 = vld [vmem:[#allocation2 + $0x68] sm:$0xff]
  %v2223 = vld [vmem:[#allocation2 + $0x70] sm:$0xff]
  %v2224 = vld [vmem:[#allocation2 + $0x78] sm:$0xff]
  %2226 = vset.pattern.permute.xlu0 0
  %2227 = vperm.xlu0 %2226, %v2145
  %v2228 = vpop.permute.xlu0 %2227
  %2231 = vset.pattern.permute.xlu0 0
  %2232 = vperm.xlu0 %2231, %v2146
  %v2233 = vpop.permute.xlu0 %2232
  %2235 = vmatpush.msra.mxu0 %v2224
  %2236 = vmatpush.msra.mxu0 %v2223
  %2237 = vmatpush.msra.mxu0 %v2222
  %2238 = vmatpush.msra.mxu0 %v2221
  %2239 = vmatpush.msra.mxu0 %v2220
  %2240 = vmatpush.msra.mxu0 %v2219
  %2241 = vmatpush.msra.mxu0 %v2218
  %2242 = vmatpush.msra.mxu0 %v2217
  %2243 = vmatpush.msra.mxu0 %v2216
  %2244 = vmatpush.msra.mxu0 %v2215
  %2245 = vmatpush.msra.mxu0 %v2214
  %2246 = vmatpush.msra.mxu0 %v2213
  %2247 = vmatpush.msra.mxu0 %v2212
  %2248 = vmatpush.msra.mxu0 %v2211
  %2249 = vmatpush.msra.mxu0 %v2210
  %2250 = vmatpush.msra.mxu0 %v2209
  %2251 = vmatmul.f32.gmra.mxu0 %v2143
  %v2252 = vpop.f32.mrf.mxu0
  %v2253 = vadd.f32 %v2228, %v2252
  %2254 = vmatmul.f32.gmra.mxu0 %v2144
  %v2255 = vpop.f32.mrf.mxu0
  %v2256 = vadd.f32 %v2233, %v2255
  %2257 = vdwg.mxu0
  %v2258 = vmax.f32 %v2253, 0.0
  %v2259 = vmax.f32 %v2256, 0.0
  %2262 = vrot.lane.b32.xlu0 %v2258, 126
  %v2263 = vpop.permute.xlu0 %2262
  %2264 = vrot.lane.b32.xlu0 %v2259, 126
  %v2265 = vpop.permute.xlu0 %2264
  %v2268 = vmax.f32 %v2258, %v2263
  %v2269 = vmax.f32 %v2259, %v2265
  %v2270 = vld [vmem:[%s9] sm:$0xff]
  %v2271 = vld [vmem:[%s9 + $0x8] sm:$0xff]
  %v2272 = vld [vmem:[%s9 + $0x10] sm:$0xff]
  %v2273 = vld [vmem:[%s9 + $0x18] sm:$0xff]
  %v2274 = vld [vmem:[%s9 + $0x20] sm:$0xff]
  %v2275 = vld [vmem:[%s9 + $0x28] sm:$0xff]
  %v2276 = vld [vmem:[%s9 + $0x30] sm:$0xff]
  %v2277 = vld [vmem:[%s9 + $0x38] sm:$0xff]
  %v2278 = vld [vmem:[%s9 + $0x40] sm:$0xff]
  %v2279 = vld [vmem:[%s9 + $0x48] sm:$0xff]
  %v2280 = vld [vmem:[%s9 + $0x50] sm:$0xff]
  %v2281 = vld [vmem:[%s9 + $0x58] sm:$0xff]
  %v2282 = vld [vmem:[%s9 + $0x60] sm:$0x1f]
  %v2284 = vsel %vm700, %v2268, 0
  %v2287 = vsel %vm700, %v2269, 0
  %v2290 = vsel %vm707, %v2282, 0
  %2292 = vmatpush.msra.mxu0 0.0
  %2293 = vmatpush.msra.mxu0 0.0
  %2294 = vmatpush.msra.mxu0 0.0
  %v2295 = vand.u32 %v2290, 4294901760
  %2296 = vmatpush.msra.mxu0 %v2295
  %v2297 = vand.u32 %v2281, 4294901760
  %2298 = vmatpush.msra.mxu0 %v2297
  %v2299 = vand.u32 %v2280, 4294901760
  %2300 = vmatpush.msra.mxu0 %v2299
  %v2301 = vand.u32 %v2279, 4294901760
  %2302 = vmatpush.msra.mxu0 %v2301
  %v2303 = vand.u32 %v2278, 4294901760
  %2304 = vmatpush.msra.mxu0 %v2303
  %v2305 = vand.u32 %v2277, 4294901760
  %2306 = vmatpush.msra.mxu0 %v2305
  %v2307 = vand.u32 %v2276, 4294901760
  %2308 = vmatpush.msra.mxu0 %v2307
  %v2309 = vand.u32 %v2275, 4294901760
  %2310 = vmatpush.msra.mxu0 %v2309
  %v2311 = vand.u32 %v2274, 4294901760
  %2312 = vmatpush.msra.mxu0 %v2311
  %v2313 = vand.u32 %v2273, 4294901760
  %2314 = vmatpush.msra.mxu0 %v2313
  %v2315 = vand.u32 %v2272, 4294901760
  %2316 = vmatpush.msra.mxu0 %v2315
  %v2317 = vand.u32 %v2271, 4294901760
  %2318 = vmatpush.msra.mxu0 %v2317
  %v2319 = vand.u32 %v2270, 4294901760
  %2320 = vmatpush.msra.mxu0 %v2319
  %v2321 = vand.u32 %v2284, 4294901760
  %v2322 = vsub.f32 %v2284, %v2321
  %v2323 = vand.u32 %v2322, 4294901760
  %v2324 = vsub.f32 %v2322, %v2323
  %v2325 = vand.u32 %v2324, 4294901760
  %2326 = vmatmul.f32.gmra.mxu0 %v2325
  %v2327 = vpop.f32.mrf.mxu0
  %v2328 = vadd.f32 0.0, %v2327
  %v2329 = vand.u32 %v2287, 4294901760
  %v2330 = vsub.f32 %v2287, %v2329
  %v2331 = vand.u32 %v2330, 4294901760
  %v2332 = vsub.f32 %v2330, %v2331
  %v2333 = vand.u32 %v2332, 4294901760
  %2334 = vmatmul.f32.gmra.mxu0 %v2333
  %v2335 = vpop.f32.mrf.mxu0
  %v2336 = vadd.f32 0.0, %v2335
  %2337 = vdwg.mxu0
  %2338 = vmatpush.msra.mxu0 0.0
  %2339 = vmatpush.msra.mxu0 0.0
  %2340 = vmatpush.msra.mxu0 0.0
  %v2341 = vand.u32 %v2290, 4294901760
  %v2342 = vsub.f32 %v2290, %v2341
  %v2343 = vand.u32 %v2342, 4294901760
  %v2344 = vsub.f32 %v2342, %v2343
  %v2345 = vand.u32 %v2344, 4294901760
  %2346 = vmatpush.msra.mxu0 %v2345
  %v2347 = vand.u32 %v2281, 4294901760
  %v2348 = vsub.f32 %v2281, %v2347
  %v2349 = vand.u32 %v2348, 4294901760
  %v2350 = vsub.f32 %v2348, %v2349
  %v2351 = vand.u32 %v2350, 4294901760
  %2352 = vmatpush.msra.mxu0 %v2351
  %v2353 = vand.u32 %v2280, 4294901760
  %v2354 = vsub.f32 %v2280, %v2353
  %v2355 = vand.u32 %v2354, 4294901760
  %v2356 = vsub.f32 %v2354, %v2355
  %v2357 = vand.u32 %v2356, 4294901760
  %2358 = vmatpush.msra.mxu0 %v2357
  %v2359 = vand.u32 %v2279, 4294901760
  %v2360 = vsub.f32 %v2279, %v2359
  %v2361 = vand.u32 %v2360, 4294901760
  %v2362 = vsub.f32 %v2360, %v2361
  %v2363 = vand.u32 %v2362, 4294901760
  %2364 = vmatpush.msra.mxu0 %v2363
  %v2365 = vand.u32 %v2278, 4294901760
  %v2366 = vsub.f32 %v2278, %v2365
  %v2367 = vand.u32 %v2366, 4294901760
  %v2368 = vsub.f32 %v2366, %v2367
  %v2369 = vand.u32 %v2368, 4294901760
  %2370 = vmatpush.msra.mxu0 %v2369
  %v2371 = vand.u32 %v2277, 4294901760
  %v2372 = vsub.f32 %v2277, %v2371
  %v2373 = vand.u32 %v2372, 4294901760
  %v2374 = vsub.f32 %v2372, %v2373
  %v2375 = vand.u32 %v2374, 4294901760
  %2376 = vmatpush.msra.mxu0 %v2375
  %v2377 = vand.u32 %v2276, 4294901760
  %v2378 = vsub.f32 %v2276, %v2377
  %v2379 = vand.u32 %v2378, 4294901760
  %v2380 = vsub.f32 %v2378, %v2379
  %v2381 = vand.u32 %v2380, 4294901760
  %2382 = vmatpush.msra.mxu0 %v2381
  %v2383 = vand.u32 %v2275, 4294901760
  %v2384 = vsub.f32 %v2275, %v2383
  %v2385 = vand.u32 %v2384, 4294901760
  %v2386 = vsub.f32 %v2384, %v2385
  %v2387 = vand.u32 %v2386, 4294901760
  %2388 = vmatpush.msra.mxu0 %v2387
  %v2389 = vand.u32 %v2274, 4294901760
  %v2390 = vsub.f32 %v2274, %v2389
  %v2391 = vand.u32 %v2390, 4294901760
  %v2392 = vsub.f32 %v2390, %v2391
  %v2393 = vand.u32 %v2392, 4294901760
  %2394 = vmatpush.msra.mxu0 %v2393
  %v2395 = vand.u32 %v2273, 4294901760
  %v2396 = vsub.f32 %v2273, %v2395
  %v2397 = vand.u32 %v2396, 4294901760
  %v2398 = vsub.f32 %v2396, %v2397
  %v2399 = vand.u32 %v2398, 4294901760
  %2400 = vmatpush.msra.mxu0 %v2399
  %v2401 = vand.u32 %v2272, 4294901760
  %v2402 = vsub.f32 %v2272, %v2401
  %v2403 = vand.u32 %v2402, 4294901760
  %v2404 = vsub.f32 %v2402, %v2403
  %v2405 = vand.u32 %v2404, 4294901760
  %2406 = vmatpush.msra.mxu0 %v2405
  %v2407 = vand.u32 %v2271, 4294901760
  %v2408 = vsub.f32 %v2271, %v2407
  %v2409 = vand.u32 %v2408, 4294901760
  %v2410 = vsub.f32 %v2408, %v2409
  %v2411 = vand.u32 %v2410, 4294901760
  %2412 = vmatpush.msra.mxu0 %v2411
  %v2413 = vand.u32 %v2270, 4294901760
  %v2414 = vsub.f32 %v2270, %v2413
  %v2415 = vand.u32 %v2414, 4294901760
  %v2416 = vsub.f32 %v2414, %v2415
  %v2417 = vand.u32 %v2416, 4294901760
  %2418 = vmatpush.msra.mxu0 %v2417
  %v2419 = vand.u32 %v2284, 4294901760
  %2420 = vmatmul.f32.gmra.mxu0 %v2419
  %v2421 = vpop.f32.mrf.mxu0
  %v2422 = vadd.f32 %v2328, %v2421
  %v2423 = vand.u32 %v2287, 4294901760
  %2424 = vmatmul.f32.gmra.mxu0 %v2423
  %v2425 = vpop.f32.mrf.mxu0
  %v2426 = vadd.f32 %v2336, %v2425
  %2427 = vdwg.mxu0
  %2428 = vmatpush.msra.mxu0 0.0
  %2429 = vmatpush.msra.mxu0 0.0
  %2430 = vmatpush.msra.mxu0 0.0
  %v2431 = vand.u32 %v2290, 4294901760
  %v2432 = vsub.f32 %v2290, %v2431
  %2433 = vmatpush.msra.mxu0 %v2432
  %v2434 = vand.u32 %v2281, 4294901760
  %v2435 = vsub.f32 %v2281, %v2434
  %2436 = vmatpush.msra.mxu0 %v2435
  %v2437 = vand.u32 %v2280, 4294901760
  %v2438 = vsub.f32 %v2280, %v2437
  %2439 = vmatpush.msra.mxu0 %v2438
  %v2440 = vand.u32 %v2279, 4294901760
  %v2441 = vsub.f32 %v2279, %v2440
  %2442 = vmatpush.msra.mxu0 %v2441
  %v2443 = vand.u32 %v2278, 4294901760
  %v2444 = vsub.f32 %v2278, %v2443
  %2445 = vmatpush.msra.mxu0 %v2444
  %v2446 = vand.u32 %v2277, 4294901760
  %v2447 = vsub.f32 %v2277, %v2446
  %2448 = vmatpush.msra.mxu0 %v2447
  %v2449 = vand.u32 %v2276, 4294901760
  %v2450 = vsub.f32 %v2276, %v2449
  %2451 = vmatpush.msra.mxu0 %v2450
  %v2452 = vand.u32 %v2275, 4294901760
  %v2453 = vsub.f32 %v2275, %v2452
  %2454 = vmatpush.msra.mxu0 %v2453
  %v2455 = vand.u32 %v2274, 4294901760
  %v2456 = vsub.f32 %v2274, %v2455
  %2457 = vmatpush.msra.mxu0 %v2456
  %v2458 = vand.u32 %v2273, 4294901760
  %v2459 = vsub.f32 %v2273, %v2458
  %2460 = vmatpush.msra.mxu0 %v2459
  %v2461 = vand.u32 %v2272, 4294901760
  %v2462 = vsub.f32 %v2272, %v2461
  %2463 = vmatpush.msra.mxu0 %v2462
  %v2464 = vand.u32 %v2271, 4294901760
  %v2465 = vsub.f32 %v2271, %v2464
  %2466 = vmatpush.msra.mxu0 %v2465
  %v2467 = vand.u32 %v2270, 4294901760
  %v2468 = vsub.f32 %v2270, %v2467
  %2469 = vmatpush.msra.mxu0 %v2468
  %v2470 = vand.u32 %v2284, 4294901760
  %v2471 = vsub.f32 %v2284, %v2470
  %2472 = vmatmul.f32.gmra.mxu0 %v2471
  %v2473 = vpop.f32.mrf.mxu0
  %v2474 = vadd.f32 %v2422, %v2473
  %v2475 = vand.u32 %v2287, 4294901760
  %v2476 = vsub.f32 %v2287, %v2475
  %2477 = vmatmul.f32.gmra.mxu0 %v2476
  %v2478 = vpop.f32.mrf.mxu0
  %v2479 = vadd.f32 %v2426, %v2478
  %2480 = vdwg.mxu0
  %2481 = vmatpush.msra.mxu0 0.0
  %2482 = vmatpush.msra.mxu0 0.0
  %2483 = vmatpush.msra.mxu0 0.0
  %v2484 = vand.u32 %v2290, 4294901760
  %2485 = vmatpush.msra.mxu0 %v2484
  %v2486 = vand.u32 %v2281, 4294901760
  %2487 = vmatpush.msra.mxu0 %v2486
  %v2488 = vand.u32 %v2280, 4294901760
  %2489 = vmatpush.msra.mxu0 %v2488
  %v2490 = vand.u32 %v2279, 4294901760
  %2491 = vmatpush.msra.mxu0 %v2490
  %v2492 = vand.u32 %v2278, 4294901760
  %2493 = vmatpush.msra.mxu0 %v2492
  %v2494 = vand.u32 %v2277, 4294901760
  %2495 = vmatpush.msra.mxu0 %v2494
  %v2496 = vand.u32 %v2276, 4294901760
  %2497 = vmatpush.msra.mxu0 %v2496
  %v2498 = vand.u32 %v2275, 4294901760
  %2499 = vmatpush.msra.mxu0 %v2498
  %v2500 = vand.u32 %v2274, 4294901760
  %2501 = vmatpush.msra.mxu0 %v2500
  %v2502 = vand.u32 %v2273, 4294901760
  %2503 = vmatpush.msra.mxu0 %v2502
  %v2504 = vand.u32 %v2272, 4294901760
  %2505 = vmatpush.msra.mxu0 %v2504
  %v2506 = vand.u32 %v2271, 4294901760
  %2507 = vmatpush.msra.mxu0 %v2506
  %v2508 = vand.u32 %v2270, 4294901760
  %2509 = vmatpush.msra.mxu0 %v2508
  %v2510 = vand.u32 %v2284, 4294901760
  %v2511 = vsub.f32 %v2284, %v2510
  %v2512 = vand.u32 %v2511, 4294901760
  %2513 = vmatmul.f32.gmra.mxu0 %v2512
  %v2514 = vpop.f32.mrf.mxu0
  %v2515 = vadd.f32 %v2474, %v2514
  %v2516 = vand.u32 %v2287, 4294901760
  %v2517 = vsub.f32 %v2287, %v2516
  %v2518 = vand.u32 %v2517, 4294901760
  %2519 = vmatmul.f32.gmra.mxu0 %v2518
  %v2520 = vpop.f32.mrf.mxu0
  %v2521 = vadd.f32 %v2479, %v2520
  %2522 = vdwg.mxu0
  %2523 = vmatpush.msra.mxu0 0.0
  %2524 = vmatpush.msra.mxu0 0.0
  %2525 = vmatpush.msra.mxu0 0.0
  %v2526 = vand.u32 %v2290, 4294901760
  %v2527 = vsub.f32 %v2290, %v2526
  %v2528 = vand.u32 %v2527, 4294901760
  %2529 = vmatpush.msra.mxu0 %v2528
  %v2530 = vand.u32 %v2281, 4294901760
  %v2531 = vsub.f32 %v2281, %v2530
  %v2532 = vand.u32 %v2531, 4294901760
  %2533 = vmatpush.msra.mxu0 %v2532
  %v2534 = vand.u32 %v2280, 4294901760
  %v2535 = vsub.f32 %v2280, %v2534
  %v2536 = vand.u32 %v2535, 4294901760
  %2537 = vmatpush.msra.mxu0 %v2536
  %v2538 = vand.u32 %v2279, 4294901760
  %v2539 = vsub.f32 %v2279, %v2538
  %v2540 = vand.u32 %v2539, 4294901760
  %2541 = vmatpush.msra.mxu0 %v2540
  %v2542 = vand.u32 %v2278, 4294901760
  %v2543 = vsub.f32 %v2278, %v2542
  %v2544 = vand.u32 %v2543, 4294901760
  %2545 = vmatpush.msra.mxu0 %v2544
  %v2546 = vand.u32 %v2277, 4294901760
  %v2547 = vsub.f32 %v2277, %v2546
  %v2548 = vand.u32 %v2547, 4294901760
  %2549 = vmatpush.msra.mxu0 %v2548
  %v2550 = vand.u32 %v2276, 4294901760
  %v2551 = vsub.f32 %v2276, %v2550
  %v2552 = vand.u32 %v2551, 4294901760
  %2553 = vmatpush.msra.mxu0 %v2552
  %v2554 = vand.u32 %v2275, 4294901760
  %v2555 = vsub.f32 %v2275, %v2554
  %v2556 = vand.u32 %v2555, 4294901760
  %2557 = vmatpush.msra.mxu0 %v2556
  %v2558 = vand.u32 %v2274, 4294901760
  %v2559 = vsub.f32 %v2274, %v2558
  %v2560 = vand.u32 %v2559, 4294901760
  %2561 = vmatpush.msra.mxu0 %v2560
  %v2562 = vand.u32 %v2273, 4294901760
  %v2563 = vsub.f32 %v2273, %v2562
  %v2564 = vand.u32 %v2563, 4294901760
  %2565 = vmatpush.msra.mxu0 %v2564
  %v2566 = vand.u32 %v2272, 4294901760
  %v2567 = vsub.f32 %v2272, %v2566
  %v2568 = vand.u32 %v2567, 4294901760
  %2569 = vmatpush.msra.mxu0 %v2568
  %v2570 = vand.u32 %v2271, 4294901760
  %v2571 = vsub.f32 %v2271, %v2570
  %v2572 = vand.u32 %v2571, 4294901760
  %2573 = vmatpush.msra.mxu0 %v2572
  %v2574 = vand.u32 %v2270, 4294901760
  %v2575 = vsub.f32 %v2270, %v2574
  %v2576 = vand.u32 %v2575, 4294901760
  %2577 = vmatpush.msra.mxu0 %v2576
  %v2578 = vand.u32 %v2284, 4294901760
  %2579 = vmatmul.f32.gmra.mxu0 %v2578
  %v2580 = vpop.f32.mrf.mxu0
  %v2581 = vadd.f32 %v2515, %v2580
  %v2582 = vand.u32 %v2287, 4294901760
  %2583 = vmatmul.f32.gmra.mxu0 %v2582
  %v2584 = vpop.f32.mrf.mxu0
  %v2585 = vadd.f32 %v2521, %v2584
  %2586 = vdwg.mxu0
  %2587 = vmatpush.msra.mxu0 0.0
  %2588 = vmatpush.msra.mxu0 0.0
  %2589 = vmatpush.msra.mxu0 0.0
  %v2590 = vand.u32 %v2290, 4294901760
  %2591 = vmatpush.msra.mxu0 %v2590
  %v2592 = vand.u32 %v2281, 4294901760
  %2593 = vmatpush.msra.mxu0 %v2592
  %v2594 = vand.u32 %v2280, 4294901760
  %2595 = vmatpush.msra.mxu0 %v2594
  %v2596 = vand.u32 %v2279, 4294901760
  %2597 = vmatpush.msra.mxu0 %v2596
  %v2598 = vand.u32 %v2278, 4294901760
  %2599 = vmatpush.msra.mxu0 %v2598
  %v2600 = vand.u32 %v2277, 4294901760
  %2601 = vmatpush.msra.mxu0 %v2600
  %v2602 = vand.u32 %v2276, 4294901760
  %2603 = vmatpush.msra.mxu0 %v2602
  %v2604 = vand.u32 %v2275, 4294901760
  %2605 = vmatpush.msra.mxu0 %v2604
  %v2606 = vand.u32 %v2274, 4294901760
  %2607 = vmatpush.msra.mxu0 %v2606
  %v2608 = vand.u32 %v2273, 4294901760
  %2609 = vmatpush.msra.mxu0 %v2608
  %v2610 = vand.u32 %v2272, 4294901760
  %2611 = vmatpush.msra.mxu0 %v2610
  %v2612 = vand.u32 %v2271, 4294901760
  %2613 = vmatpush.msra.mxu0 %v2612
  %v2614 = vand.u32 %v2270, 4294901760
  %2615 = vmatpush.msra.mxu0 %v2614
  %v2616 = vand.u32 %v2284, 4294901760
  %2617 = vmatmul.f32.gmra.mxu0 %v2616
  %v2618 = vpop.f32.mrf.mxu0
  %v2619 = vadd.f32 %v2581, %v2618
  %v2620 = vand.u32 %v2287, 4294901760
  %2621 = vmatmul.f32.gmra.mxu0 %v2620
  %v2622 = vpop.f32.mrf.mxu0
  %v2623 = vadd.f32 %v2585, %v2622
  %2624 = vdwg.mxu0
  %v2625 = vld [vmem:[%s5] sm:$0xff]
  %v2626 = vld [vmem:[%s5 + $0x8] sm:$0xff]
  %v2627 = vld [vmem:[%s5 + $0x10] sm:$0xff]
  %v2628 = vld [vmem:[%s5 + $0x18] sm:$0xff]
  %v2629 = vld [vmem:[%s6] sm:$0xff]
  %v2630 = vld [vmem:[%s6 + $0x8] sm:$0xff]
  %v2631 = vld [vmem:[%s6 + $0x10] sm:$0xff]
  %v2632 = vld [vmem:[%s6 + $0x18] sm:$0xff]
  %2633 = vst.msk [vmem:[#allocation2] sm:$0xff] %vm1052, %v2619
  %2634 = vst.msk [vmem:[#allocation2 + $0x8] sm:$0xff] %vm1052, %v2623
  %2637 = vrot.lane.b32.xlu0 %v2619, 127
  %v2638 = vpop.permute.xlu0 %2637
  %2639 = vrot.lane.b32.xlu0 %v2623, 127
  %v2640 = vpop.permute.xlu0 %2639
  %2643 = vst.msk [vmem:[#allocation2 + $0x10] sm:$0xff] %vm1052, %v2638
  %2644 = vst.msk [vmem:[#allocation2 + $0x18] sm:$0xff] %vm1052, %v2640
  %2645 = vrot.lane.b32.xlu0 %v2619, 126
  %v2646 = vpop.permute.xlu0 %2645
  %2647 = vrot.lane.b32.xlu0 %v2623, 126
  %v2648 = vpop.permute.xlu0 %2647
  %2651 = vst.msk [vmem:[#allocation2 + $0x20] sm:$0xff] %vm1052, %v2646
  %2652 = vst.msk [vmem:[#allocation2 + $0x28] sm:$0xff] %vm1052, %v2648
  %2653 = vrot.lane.b32.xlu0 %v2619, 125
  %v2654 = vpop.permute.xlu0 %2653
  %2655 = vrot.lane.b32.xlu0 %v2623, 125
  %v2656 = vpop.permute.xlu0 %2655
  %2659 = vst.msk [vmem:[#allocation2 + $0x30] sm:$0xff] %vm1052, %v2654
  %2660 = vst.msk [vmem:[#allocation2 + $0x38] sm:$0xff] %vm1052, %v2656
  %2661 = vrot.lane.b32.xlu0 %v2619, 124
  %v2662 = vpop.permute.xlu0 %2661
  %2663 = vrot.lane.b32.xlu0 %v2623, 124
  %v2664 = vpop.permute.xlu0 %2663
  %2667 = vst.msk [vmem:[#allocation2 + $0x40] sm:$0xff] %vm1052, %v2662
  %2668 = vst.msk [vmem:[#allocation2 + $0x48] sm:$0xff] %vm1052, %v2664
  %2669 = vrot.lane.b32.xlu0 %v2619, 123
  %v2670 = vpop.permute.xlu0 %2669
  %2671 = vrot.lane.b32.xlu0 %v2623, 123
  %v2672 = vpop.permute.xlu0 %2671
  %2675 = vst.msk [vmem:[#allocation2 + $0x50] sm:$0xff] %vm1052, %v2670
  %2676 = vst.msk [vmem:[#allocation2 + $0x58] sm:$0xff] %vm1052, %v2672
  %2677 = vrot.lane.b32.xlu0 %v2619, 122
  %v2678 = vpop.permute.xlu0 %2677
  %2679 = vrot.lane.b32.xlu0 %v2623, 122
  %v2680 = vpop.permute.xlu0 %2679
  %2683 = vst.msk [vmem:[#allocation2 + $0x60] sm:$0xff] %vm1052, %v2678
  %2684 = vst.msk [vmem:[#allocation2 + $0x68] sm:$0xff] %vm1052, %v2680
  %2685 = vrot.lane.b32.xlu0 %v2619, 121
  %v2686 = vpop.permute.xlu0 %2685
  %2687 = vrot.lane.b32.xlu0 %v2623, 121
  %v2688 = vpop.permute.xlu0 %2687
  %2691 = vst.msk [vmem:[#allocation2 + $0x70] sm:$0xff] %vm1052, %v2686
  %2692 = vst.msk [vmem:[#allocation2 + $0x78] sm:$0xff] %vm1052, %v2688
  %v2693 = vld [vmem:[#allocation2] sm:$0xff]
  %v2694 = vld [vmem:[#allocation2 + $0x8] sm:$0xff]
  %v2695 = vld [vmem:[#allocation2 + $0x10] sm:$0xff]
  %v2696 = vld [vmem:[#allocation2 + $0x18] sm:$0xff]
  %v2697 = vld [vmem:[#allocation2 + $0x20] sm:$0xff]
  %v2698 = vld [vmem:[#allocation2 + $0x28] sm:$0xff]
  %v2699 = vld [vmem:[#allocation2 + $0x30] sm:$0xff]
  %v2700 = vld [vmem:[#allocation2 + $0x38] sm:$0xff]
  %v2701 = vld [vmem:[#allocation2 + $0x40] sm:$0xff]
  %v2702 = vld [vmem:[#allocation2 + $0x48] sm:$0xff]
  %v2703 = vld [vmem:[#allocation2 + $0x50] sm:$0xff]
  %v2704 = vld [vmem:[#allocation2 + $0x58] sm:$0xff]
  %v2705 = vld [vmem:[#allocation2 + $0x60] sm:$0xff]
  %v2706 = vld [vmem:[#allocation2 + $0x68] sm:$0xff]
  %v2707 = vld [vmem:[#allocation2 + $0x70] sm:$0xff]
  %v2708 = vld [vmem:[#allocation2 + $0x78] sm:$0xff]
  %2710 = vset.pattern.permute.xlu0 0
  %2711 = vperm.xlu0 %2710, %v2629
  %v2712 = vpop.permute.xlu0 %2711
  %2715 = vset.pattern.permute.xlu0 0
  %2716 = vperm.xlu0 %2715, %v2630
  %v2717 = vpop.permute.xlu0 %2716
  %2720 = vset.pattern.permute.xlu0 0
  %2721 = vperm.xlu0 %2720, %v2631
  %v2722 = vpop.permute.xlu0 %2721
  %2725 = vset.pattern.permute.xlu0 0
  %2726 = vperm.xlu0 %2725, %v2632
  %v2727 = vpop.permute.xlu0 %2726
  %2729 = vmatpush.msra.mxu0 %v2708
  %2730 = vmatpush.msra.mxu0 %v2707
  %2731 = vmatpush.msra.mxu0 %v2706
  %2732 = vmatpush.msra.mxu0 %v2705
  %2733 = vmatpush.msra.mxu0 %v2704
  %2734 = vmatpush.msra.mxu0 %v2703
  %2735 = vmatpush.msra.mxu0 %v2702
  %2736 = vmatpush.msra.mxu0 %v2701
  %2737 = vmatpush.msra.mxu0 %v2700
  %2738 = vmatpush.msra.mxu0 %v2699
  %2739 = vmatpush.msra.mxu0 %v2698
  %2740 = vmatpush.msra.mxu0 %v2697
  %2741 = vmatpush.msra.mxu0 %v2696
  %2742 = vmatpush.msra.mxu0 %v2695
  %2743 = vmatpush.msra.mxu0 %v2694
  %2744 = vmatpush.msra.mxu0 %v2693
  %2745 = vmatmul.f32.gmra.mxu0 %v2625
  %v2746 = vpop.f32.mrf.mxu0
  %v2747 = vadd.f32 %v2712, %v2746
  %2748 = vmatmul.f32.gmra.mxu0 %v2626
  %v2749 = vpop.f32.mrf.mxu0
  %v2750 = vadd.f32 %v2717, %v2749
  %2751 = vmatmul.f32.gmra.mxu0 %v2627
  %v2752 = vpop.f32.mrf.mxu0
  %v2753 = vadd.f32 %v2722, %v2752
  %2754 = vmatmul.f32.gmra.mxu0 %v2628
  %v2755 = vpop.f32.mrf.mxu0
  %v2756 = vadd.f32 %v2727, %v2755
  %2757 = vdwg.mxu0
  %v2758 = vmax.f32 %v2747, 0.0
  %v2759 = vmax.f32 %v2750, 0.0
  %v2760 = vmax.f32 %v2753, 0.0
  %v2761 = vmax.f32 %v2756, 0.0
  %2766 = vrot.lane.b32.xlu0 %v2758, 126
  %v2767 = vpop.permute.xlu0 %2766
  %2768 = vrot.lane.b32.xlu0 %v2759, 126
  %v2769 = vpop.permute.xlu0 %2768
  %2770 = vrot.lane.b32.xlu0 %v2760, 126
  %v2771 = vpop.permute.xlu0 %2770
  %2772 = vrot.lane.b32.xlu0 %v2761, 126
  %v2773 = vpop.permute.xlu0 %2772
  %v2778 = vmax.f32 %v2758, %v2767
  %v2779 = vmax.f32 %v2759, %v2769
  %v2780 = vmax.f32 %v2760, %v2771
  %v2781 = vmax.f32 %v2761, %v2773
  %v2782 = vld [vmem:[%s10] sm:$0xff]
  %v2783 = vld [vmem:[%s10 + $0x8] sm:$0xff]
  %v2784 = vld [vmem:[%s10 + $0x10] sm:$0x1]
  %v2786 = vsel %vm1205, %v2778, 0
  %v2789 = vsel %vm1205, %v2779, 0
  %v2792 = vsel %vm1205, %v2780, 0
  %v2795 = vsel %vm1205, %v2781, 0
  %v2798 = vsel %vm1218, %v2784, 0
  %2800 = vmatpush.msra.mxu0 0.0
  %2801 = vmatpush.msra.mxu0 0.0
  %2802 = vmatpush.msra.mxu0 0.0
  %2803 = vmatpush.msra.mxu0 0.0
  %2804 = vmatpush.msra.mxu0 0.0
  %2805 = vmatpush.msra.mxu0 0.0
  %2806 = vmatpush.msra.mxu0 0.0
  %2807 = vmatpush.msra.mxu0 0.0
  %2808 = vmatpush.msra.mxu0 0.0
  %2809 = vmatpush.msra.mxu0 0.0
  %2810 = vmatpush.msra.mxu0 0.0
  %2811 = vmatpush.msra.mxu0 0.0
  %2812 = vmatpush.msra.mxu0 0.0
  %v2813 = vand.u32 %v2798, 4294901760
  %2814 = vmatpush.msra.mxu0 %v2813
  %v2815 = vand.u32 %v2783, 4294901760
  %2816 = vmatpush.msra.mxu0 %v2815
  %v2817 = vand.u32 %v2782, 4294901760
  %2818 = vmatpush.msra.mxu0 %v2817
  %v2819 = vand.u32 %v2786, 4294901760
  %v2820 = vsub.f32 %v2786, %v2819
  %v2821 = vand.u32 %v2820, 4294901760
  %v2822 = vsub.f32 %v2820, %v2821
  %v2823 = vand.u32 %v2822, 4294901760
  %2824 = vmatmul.f32.gmra.mxu0 %v2823
  %v2825 = vpop.f32.mrf.mxu0
  %v2826 = vadd.f32 0.0, %v2825
  %v2827 = vand.u32 %v2789, 4294901760
  %v2828 = vsub.f32 %v2789, %v2827
  %v2829 = vand.u32 %v2828, 4294901760
  %v2830 = vsub.f32 %v2828, %v2829
  %v2831 = vand.u32 %v2830, 4294901760
  %2832 = vmatmul.f32.gmra.mxu0 %v2831
  %v2833 = vpop.f32.mrf.mxu0
  %v2834 = vadd.f32 0.0, %v2833
  %v2835 = vand.u32 %v2792, 4294901760
  %v2836 = vsub.f32 %v2792, %v2835
  %v2837 = vand.u32 %v2836, 4294901760
  %v2838 = vsub.f32 %v2836, %v2837
  %v2839 = vand.u32 %v2838, 4294901760
  %2840 = vmatmul.f32.gmra.mxu0 %v2839
  %v2841 = vpop.f32.mrf.mxu0
  %v2842 = vadd.f32 0.0, %v2841
  %v2843 = vand.u32 %v2795, 4294901760
  %v2844 = vsub.f32 %v2795, %v2843
  %v2845 = vand.u32 %v2844, 4294901760
  %v2846 = vsub.f32 %v2844, %v2845
  %v2847 = vand.u32 %v2846, 4294901760
  %2848 = vmatmul.f32.gmra.mxu0 %v2847
  %v2849 = vpop.f32.mrf.mxu0
  %v2850 = vadd.f32 0.0, %v2849
  %2851 = vdwg.mxu0
  %2852 = vmatpush.msra.mxu0 0.0
  %2853 = vmatpush.msra.mxu0 0.0
  %2854 = vmatpush.msra.mxu0 0.0
  %2855 = vmatpush.msra.mxu0 0.0
  %2856 = vmatpush.msra.mxu0 0.0
  %2857 = vmatpush.msra.mxu0 0.0
  %2858 = vmatpush.msra.mxu0 0.0
  %2859 = vmatpush.msra.mxu0 0.0
  %2860 = vmatpush.msra.mxu0 0.0
  %2861 = vmatpush.msra.mxu0 0.0
  %2862 = vmatpush.msra.mxu0 0.0
  %2863 = vmatpush.msra.mxu0 0.0
  %2864 = vmatpush.msra.mxu0 0.0
  %v2865 = vand.u32 %v2798, 4294901760
  %v2866 = vsub.f32 %v2798, %v2865
  %v2867 = vand.u32 %v2866, 4294901760
  %v2868 = vsub.f32 %v2866, %v2867
  %v2869 = vand.u32 %v2868, 4294901760
  %2870 = vmatpush.msra.mxu0 %v2869
  %v2871 = vand.u32 %v2783, 4294901760
  %v2872 = vsub.f32 %v2783, %v2871
  %v2873 = vand.u32 %v2872, 4294901760
  %v2874 = vsub.f32 %v2872, %v2873
  %v2875 = vand.u32 %v2874, 4294901760
  %2876 = vmatpush.msra.mxu0 %v2875
  %v2877 = vand.u32 %v2782, 4294901760
  %v2878 = vsub.f32 %v2782, %v2877
  %v2879 = vand.u32 %v2878, 4294901760
  %v2880 = vsub.f32 %v2878, %v2879
  %v2881 = vand.u32 %v2880, 4294901760
  %2882 = vmatpush.msra.mxu0 %v2881
  %v2883 = vand.u32 %v2786, 4294901760
  %2884 = vmatmul.f32.gmra.mxu0 %v2883
  %v2885 = vpop.f32.mrf.mxu0
  %v2886 = vadd.f32 %v2826, %v2885
  %v2887 = vand.u32 %v2789, 4294901760
  %2888 = vmatmul.f32.gmra.mxu0 %v2887
  %v2889 = vpop.f32.mrf.mxu0
  %v2890 = vadd.f32 %v2834, %v2889
  %v2891 = vand.u32 %v2792, 4294901760
  %2892 = vmatmul.f32.gmra.mxu0 %v2891
  %v2893 = vpop.f32.mrf.mxu0
  %v2894 = vadd.f32 %v2842, %v2893
  %v2895 = vand.u32 %v2795, 4294901760
  %2896 = vmatmul.f32.gmra.mxu0 %v2895
  %v2897 = vpop.f32.mrf.mxu0
  %v2898 = vadd.f32 %v2850, %v2897
  %2899 = vdwg.mxu0
  %2900 = vmatpush.msra.mxu0 0.0
  %2901 = vmatpush.msra.mxu0 0.0
  %2902 = vmatpush.msra.mxu0 0.0
  %2903 = vmatpush.msra.mxu0 0.0
  %2904 = vmatpush.msra.mxu0 0.0
  %2905 = vmatpush.msra.mxu0 0.0
  %2906 = vmatpush.msra.mxu0 0.0
  %2907 = vmatpush.msra.mxu0 0.0
  %2908 = vmatpush.msra.mxu0 0.0
  %2909 = vmatpush.msra.mxu0 0.0
  %2910 = vmatpush.msra.mxu0 0.0
  %2911 = vmatpush.msra.mxu0 0.0
  %2912 = vmatpush.msra.mxu0 0.0
  %v2913 = vand.u32 %v2798, 4294901760
  %v2914 = vsub.f32 %v2798, %v2913
  %2915 = vmatpush.msra.mxu0 %v2914
  %v2916 = vand.u32 %v2783, 4294901760
  %v2917 = vsub.f32 %v2783, %v2916
  %2918 = vmatpush.msra.mxu0 %v2917
  %v2919 = vand.u32 %v2782, 4294901760
  %v2920 = vsub.f32 %v2782, %v2919
  %2921 = vmatpush.msra.mxu0 %v2920
  %v2922 = vand.u32 %v2786, 4294901760
  %v2923 = vsub.f32 %v2786, %v2922
  %2924 = vmatmul.f32.gmra.mxu0 %v2923
  %v2925 = vpop.f32.mrf.mxu0
  %v2926 = vadd.f32 %v2886, %v2925
  %v2927 = vand.u32 %v2789, 4294901760
  %v2928 = vsub.f32 %v2789, %v2927
  %2929 = vmatmul.f32.gmra.mxu0 %v2928
  %v2930 = vpop.f32.mrf.mxu0
  %v2931 = vadd.f32 %v2890, %v2930
  %v2932 = vand.u32 %v2792, 4294901760
  %v2933 = vsub.f32 %v2792, %v2932
  %2934 = vmatmul.f32.gmra.mxu0 %v2933
  %v2935 = vpop.f32.mrf.mxu0
  %v2936 = vadd.f32 %v2894, %v2935
  %v2937 = vand.u32 %v2795, 4294901760
  %v2938 = vsub.f32 %v2795, %v2937
  %2939 = vmatmul.f32.gmra.mxu0 %v2938
  %v2940 = vpop.f32.mrf.mxu0
  %v2941 = vadd.f32 %v2898, %v2940
  %2942 = vdwg.mxu0
  %2943 = vmatpush.msra.mxu0 0.0
  %2944 = vmatpush.msra.mxu0 0.0
  %2945 = vmatpush.msra.mxu0 0.0
  %2946 = vmatpush.msra.mxu0 0.0
  %2947 = vmatpush.msra.mxu0 0.0
  %2948 = vmatpush.msra.mxu0 0.0
  %2949 = vmatpush.msra.mxu0 0.0
  %2950 = vmatpush.msra.mxu0 0.0
  %2951 = vmatpush.msra.mxu0 0.0
  %2952 = vmatpush.msra.mxu0 0.0
  %2953 = vmatpush.msra.mxu0 0.0
  %2954 = vmatpush.msra.mxu0 0.0
  %2955 = vmatpush.msra.mxu0 0.0
  %v2956 = vand.u32 %v2798, 4294901760
  %2957 = vmatpush.msra.mxu0 %v2956
  %v2958 = vand.u32 %v2783, 4294901760
  %2959 = vmatpush.msra.mxu0 %v2958
  %v2960 = vand.u32 %v2782, 4294901760
  %2961 = vmatpush.msra.mxu0 %v2960
  %v2962 = vand.u32 %v2786, 4294901760
  %v2963 = vsub.f32 %v2786, %v2962
  %v2964 = vand.u32 %v2963, 4294901760
  %2965 = vmatmul.f32.gmra.mxu0 %v2964
  %v2966 = vpop.f32.mrf.mxu0
  %v2967 = vadd.f32 %v2926, %v2966
  %v2968 = vand.u32 %v2789, 4294901760
  %v2969 = vsub.f32 %v2789, %v2968
  %v2970 = vand.u32 %v2969, 4294901760
  %2971 = vmatmul.f32.gmra.mxu0 %v2970
  %v2972 = vpop.f32.mrf.mxu0
  %v2973 = vadd.f32 %v2931, %v2972
  %v2974 = vand.u32 %v2792, 4294901760
  %v2975 = vsub.f32 %v2792, %v2974
  %v2976 = vand.u32 %v2975, 4294901760
  %2977 = vmatmul.f32.gmra.mxu0 %v2976
  %v2978 = vpop.f32.mrf.mxu0
  %v2979 = vadd.f32 %v2936, %v2978
  %v2980 = vand.u32 %v2795, 4294901760
  %v2981 = vsub.f32 %v2795, %v2980
  %v2982 = vand.u32 %v2981, 4294901760
  %2983 = vmatmul.f32.gmra.mxu0 %v2982
  %v2984 = vpop.f32.mrf.mxu0
  %v2985 = vadd.f32 %v2941, %v2984
  %2986 = vdwg.mxu0
  %2987 = vmatpush.msra.mxu0 0.0
  %2988 = vmatpush.msra.mxu0 0.0
  %2989 = vmatpush.msra.mxu0 0.0
  %2990 = vmatpush.msra.mxu0 0.0
  %2991 = vmatpush.msra.mxu0 0.0
  %2992 = vmatpush.msra.mxu0 0.0
  %2993 = vmatpush.msra.mxu0 0.0
  %2994 = vmatpush.msra.mxu0 0.0
  %2995 = vmatpush.msra.mxu0 0.0
  %2996 = vmatpush.msra.mxu0 0.0
  %2997 = vmatpush.msra.mxu0 0.0
  %2998 = vmatpush.msra.mxu0 0.0
  %2999 = vmatpush.msra.mxu0 0.0
  %v3000 = vand.u32 %v2798, 4294901760
  %v3001 = vsub.f32 %v2798, %v3000
  %v3002 = vand.u32 %v3001, 4294901760
  %3003 = vmatpush.msra.mxu0 %v3002
  %v3004 = vand.u32 %v2783, 4294901760
  %v3005 = vsub.f32 %v2783, %v3004
  %v3006 = vand.u32 %v3005, 4294901760
  %3007 = vmatpush.msra.mxu0 %v3006
  %v3008 = vand.u32 %v2782, 4294901760
  %v3009 = vsub.f32 %v2782, %v3008
  %v3010 = vand.u32 %v3009, 4294901760
  %3011 = vmatpush.msra.mxu0 %v3010
  %v3012 = vand.u32 %v2786, 4294901760
  %3013 = vmatmul.f32.gmra.mxu0 %v3012
  %v3014 = vpop.f32.mrf.mxu0
  %v3015 = vadd.f32 %v2967, %v3014
  %v3016 = vand.u32 %v2789, 4294901760
  %3017 = vmatmul.f32.gmra.mxu0 %v3016
  %v3018 = vpop.f32.mrf.mxu0
  %v3019 = vadd.f32 %v2973, %v3018
  %v3020 = vand.u32 %v2792, 4294901760
  %3021 = vmatmul.f32.gmra.mxu0 %v3020
  %v3022 = vpop.f32.mrf.mxu0
  %v3023 = vadd.f32 %v2979, %v3022
  %v3024 = vand.u32 %v2795, 4294901760
  %3025 = vmatmul.f32.gmra.mxu0 %v3024
  %v3026 = vpop.f32.mrf.mxu0
  %v3027 = vadd.f32 %v2985, %v3026
  %3028 = vdwg.mxu0
  %3029 = vmatpush.msra.mxu0 0.0
  %3030 = vmatpush.msra.mxu0 0.0
  %3031 = vmatpush.msra.mxu0 0.0
  %3032 = vmatpush.msra.mxu0 0.0
  %3033 = vmatpush.msra.mxu0 0.0
  %3034 = vmatpush.msra.mxu0 0.0
  %3035 = vmatpush.msra.mxu0 0.0
  %3036 = vmatpush.msra.mxu0 0.0
  %3037 = vmatpush.msra.mxu0 0.0
  %3038 = vmatpush.msra.mxu0 0.0
  %3039 = vmatpush.msra.mxu0 0.0
  %3040 = vmatpush.msra.mxu0 0.0
  %3041 = vmatpush.msra.mxu0 0.0
  %v3042 = vand.u32 %v2798, 4294901760
  %3043 = vmatpush.msra.mxu0 %v3042
  %v3044 = vand.u32 %v2783, 4294901760
  %3045 = vmatpush.msra.mxu0 %v3044
  %v3046 = vand.u32 %v2782, 4294901760
  %3047 = vmatpush.msra.mxu0 %v3046
  %v3048 = vand.u32 %v2786, 4294901760
  %3049 = vmatmul.f32.gmra.mxu0 %v3048
  %v3050 = vpop.f32.mrf.mxu0
  %v3051 = vadd.f32 %v3015, %v3050
  %v3052 = vand.u32 %v2789, 4294901760
  %3053 = vmatmul.f32.gmra.mxu0 %v3052
  %v3054 = vpop.f32.mrf.mxu0
  %v3055 = vadd.f32 %v3019, %v3054
  %v3056 = vand.u32 %v2792, 4294901760
  %3057 = vmatmul.f32.gmra.mxu0 %v3056
  %v3058 = vpop.f32.mrf.mxu0
  %v3059 = vadd.f32 %v3023, %v3058
  %v3060 = vand.u32 %v2795, 4294901760
  %3061 = vmatmul.f32.gmra.mxu0 %v3060
  %v3062 = vpop.f32.mrf.mxu0
  %v3063 = vadd.f32 %v3027, %v3062
  %3064 = vdwg.mxu0
  %v3065 = vld [vmem:[%s7] sm:$0xff]
  %v3066 = vld [vmem:[%s7 + $0x8] sm:$0xff]
  %v3067 = vld [vmem:[%s7 + $0x10] sm:$0xff]
  %v3068 = vld [vmem:[%s7 + $0x18] sm:$0xff]
  %v3069 = vld [vmem:[%s8] sm:$0xff]
  %v3070 = vld [vmem:[%s8 + $0x8] sm:$0xff]
  %v3071 = vld [vmem:[%s8 + $0x10] sm:$0xff]
  %v3072 = vld [vmem:[%s8 + $0x18] sm:$0xff]
  %3073 = vst.msk [vmem:[#allocation2] sm:$0xff] %vm1495, %v3051
  %3074 = vst.msk [vmem:[#allocation2 + $0x8] sm:$0xff] %vm1495, %v3055
  %3075 = vst.msk [vmem:[#allocation2 + $0x10] sm:$0xff] %vm1495, %v3059
  %3076 = vst.msk [vmem:[#allocation2 + $0x18] sm:$0xff] %vm1495, %v3063
  %3081 = vrot.lane.b32.xlu0 %v3051, 127
  %v3082 = vpop.permute.xlu0 %3081
  %3083 = vrot.lane.b32.xlu0 %v3055, 127
  %v3084 = vpop.permute.xlu0 %3083
  %3085 = vrot.lane.b32.xlu0 %v3059, 127
  %v3086 = vpop.permute.xlu0 %3085
  %3087 = vrot.lane.b32.xlu0 %v3063, 127
  %v3088 = vpop.permute.xlu0 %3087
  %3093 = vst.msk [vmem:[#allocation2 + $0x20] sm:$0xff] %vm1495, %v3082
  %3094 = vst.msk [vmem:[#allocation2 + $0x28] sm:$0xff] %vm1495, %v3084
  %3095 = vst.msk [vmem:[#allocation2 + $0x30] sm:$0xff] %vm1495, %v3086
  %3096 = vst.msk [vmem:[#allocation2 + $0x38] sm:$0xff] %vm1495, %v3088
  %3097 = vrot.lane.b32.xlu0 %v3051, 126
  %v3098 = vpop.permute.xlu0 %3097
  %3099 = vrot.lane.b32.xlu0 %v3055, 126
  %v3100 = vpop.permute.xlu0 %3099
  %3101 = vrot.lane.b32.xlu0 %v3059, 126
  %v3102 = vpop.permute.xlu0 %3101
  %3103 = vrot.lane.b32.xlu0 %v3063, 126
  %v3104 = vpop.permute.xlu0 %3103
  %3109 = vst.msk [vmem:[#allocation2 + $0x40] sm:$0xff] %vm1495, %v3098
  %3110 = vst.msk [vmem:[#allocation2 + $0x48] sm:$0xff] %vm1495, %v3100
  %3111 = vst.msk [vmem:[#allocation2 + $0x50] sm:$0xff] %vm1495, %v3102
  %3112 = vst.msk [vmem:[#allocation2 + $0x58] sm:$0xff] %vm1495, %v3104
  %v3113 = vld [vmem:[#allocation2] sm:$0xff]
  %v3114 = vld [vmem:[#allocation2 + $0x8] sm:$0xff]
  %v3115 = vld [vmem:[#allocation2 + $0x10] sm:$0xff]
  %v3116 = vld [vmem:[#allocation2 + $0x18] sm:$0xff]
  %v3117 = vld [vmem:[#allocation2 + $0x20] sm:$0xff]
  %v3118 = vld [vmem:[#allocation2 + $0x28] sm:$0xff]
  %v3119 = vld [vmem:[#allocation2 + $0x30] sm:$0xff]
  %v3120 = vld [vmem:[#allocation2 + $0x38] sm:$0xff]
  %v3121 = vld [vmem:[#allocation2 + $0x40] sm:$0xff]
  %v3122 = vld [vmem:[#allocation2 + $0x48] sm:$0xff]
  %v3123 = vld [vmem:[#allocation2 + $0x50] sm:$0xff]
  %v3124 = vld [vmem:[#allocation2 + $0x58] sm:$0xff]
  %3126 = vset.pattern.permute.xlu0 0
  %3127 = vperm.xlu0 %3126, %v3069
  %v3128 = vpop.permute.xlu0 %3127
  %3131 = vset.pattern.permute.xlu0 0
  %3132 = vperm.xlu0 %3131, %v3070
  %v3133 = vpop.permute.xlu0 %3132
  %3136 = vset.pattern.permute.xlu0 0
  %3137 = vperm.xlu0 %3136, %v3071
  %v3138 = vpop.permute.xlu0 %3137
  %3141 = vset.pattern.permute.xlu0 0
  %3142 = vperm.xlu0 %3141, %v3072
  %v3143 = vpop.permute.xlu0 %3142
  %v3146 = vsel %vm1568, %v3065, 0
  %v3149 = vsel %vm1568, %v3066, 0
  %v3152 = vsel %vm1568, %v3067, 0
  %v3155 = vsel %vm1568, %v3068, 0
  %3157 = vmatpush.msra.mxu0 0.0
  %3158 = vmatpush.msra.mxu0 0.0
  %3159 = vmatpush.msra.mxu0 0.0
  %3160 = vmatpush.msra.mxu0 0.0
  %3161 = vmatpush.msra.mxu0 %v3124
  %3162 = vmatpush.msra.mxu0 %v3123
  %3163 = vmatpush.msra.mxu0 %v3122
  %3164 = vmatpush.msra.mxu0 %v3121
  %3165 = vmatpush.msra.mxu0 %v3120
  %3166 = vmatpush.msra.mxu0 %v3119
  %3167 = vmatpush.msra.mxu0 %v3118
  %3168 = vmatpush.msra.mxu0 %v3117
  %3169 = vmatpush.msra.mxu0 %v3116
  %3170 = vmatpush.msra.mxu0 %v3115
  %3171 = vmatpush.msra.mxu0 %v3114
  %3172 = vmatpush.msra.mxu0 %v3113
  %3173 = vmatmul.f32.gmra.mxu0 %v3146
  %v3174 = vpop.f32.mrf.mxu0
  %v3175 = vadd.f32 %v3128, %v3174
  %3176 = vmatmul.f32.gmra.mxu0 %v3149
  %v3177 = vpop.f32.mrf.mxu0
  %v3178 = vadd.f32 %v3133, %v3177
  %3179 = vmatmul.f32.gmra.mxu0 %v3152
  %v3180 = vpop.f32.mrf.mxu0
  %v3181 = vadd.f32 %v3138, %v3180
  %3182 = vmatmul.f32.gmra.mxu0 %v3155
  %v3183 = vpop.f32.mrf.mxu0
  %v3184 = vadd.f32 %v3143, %v3183
  %3185 = vdwg.mxu0
  %v3186 = vmax.f32 %v3175, 0.0
  %v3187 = vmax.f32 %v3178, 0.0
  %v3188 = vmax.f32 %v3181, 0.0
  %v3189 = vmax.f32 %v3184, 0.0
  %3194 = vrot.lane.b32.xlu0 %v3186, 126
  %v3195 = vpop.permute.xlu0 %3194
  %3196 = vrot.lane.b32.xlu0 %v3187, 126
  %v3197 = vpop.permute.xlu0 %3196
  %3198 = vrot.lane.b32.xlu0 %v3188, 126
  %v3199 = vpop.permute.xlu0 %3198
  %3200 = vrot.lane.b32.xlu0 %v3189, 126
  %v3201 = vpop.permute.xlu0 %3200
  %v3206 = vmax.f32 %v3186, %v3195
  %v3207 = vmax.f32 %v3187, %v3197
  %v3208 = vmax.f32 %v3188, %v3199
  %v3209 = vmax.f32 %v3189, %v3201
  %3214 = vrot.lane.b32.xlu0 %v3206, 1
  %v3215 = vpop.permute.xlu0 %3214
  %3216 = vrot.lane.b32.xlu0 %v3207, 1
  %v3217 = vpop.permute.xlu0 %3216
  %3218 = vrot.lane.b32.xlu0 %v3208, 1
  %v3219 = vpop.permute.xlu0 %3218
  %3220 = vrot.lane.b32.xlu0 %v3209, 1
  %v3221 = vpop.permute.xlu0 %3220
  %vm3226 = vcmask 15368
  %3227 = vst.msk [vmem:[#allocation3] sm:$0xff] %vm3226, %v3215
  %3228 = vst.msk [vmem:[#allocation3 + $0x8] sm:$0xff] %vm3226, %v3217
  %3229 = vst.msk [vmem:[#allocation3 + $0x10] sm:$0xff] %vm3226, %v3219
  %3230 = vst.msk [vmem:[#allocation3 + $0x18] sm:$0xff] %vm3226, %v3221
  %v3231 = vld [vmem:[%s11] sm:$0xff]
  %v3232 = vld [vmem:[%s11 + $0x8] sm:$0xff]
  %v3233 = vld [vmem:[%s11 + $0x10] sm:$0xff]
  %v3234 = vld [vmem:[%s11 + $0x18] sm:$0xff]
  %v3235 = vld [vmem:[%s12] sm:$0xff]
  %v3236 = vld [vmem:[%s12 + $0x8] sm:$0xff]
  %v3237 = vld [vmem:[%s12 + $0x10] sm:$0xff]
  %v3238 = vld [vmem:[%s12 + $0x18] sm:$0xff]
  %v3239 = vld [vmem:[%s13] sm:$0xff]
  %v3240 = vld [vmem:[%s13 + $0x8] sm:$0xff]
  %v3241 = vld [vmem:[%s13 + $0x10] sm:$0xff]
  %v3242 = vld [vmem:[%s13 + $0x18] sm:$0xff]
  %v3243 = vld [vmem:[%s14] sm:$0xff]
  %v3244 = vld [vmem:[%s14 + $0x8] sm:$0xff]
  %v3245 = vld [vmem:[%s14 + $0x10] sm:$0xff]
  %v3246 = vld [vmem:[%s14 + $0x18] sm:$0xff]
  %v3247 = vld [vmem:[%s15] sm:$0xf]
  %v3248 = vld [vmem:[%s16] sm:$0xf]
  %v3249 = vld [vmem:[#allocation3] sm:$0xff]
  %v3250 = vld [vmem:[#allocation3 + $0x8] sm:$0xff]
  %v3251 = vld [vmem:[#allocation3 + $0x10] sm:$0xff]
  %v3252 = vld [vmem:[#allocation3 + $0x18] sm:$0xff]
  %3254 = vset.pattern.permute.xlu0 0
  %3255 = vperm.xlu0 %3254, %v3235
  %v3256 = vpop.permute.xlu0 %3255
  %3259 = vset.pattern.permute.xlu0 0
  %3260 = vperm.xlu0 %3259, %v3236
  %v3261 = vpop.permute.xlu0 %3260
  %3264 = vset.pattern.permute.xlu0 0
  %3265 = vperm.xlu0 %3264, %v3237
  %v3266 = vpop.permute.xlu0 %3265
  %3269 = vset.pattern.permute.xlu0 0
  %3270 = vperm.xlu0 %3269, %v3238
  %v3271 = vpop.permute.xlu0 %3270
  %vm3273 = vcmask 261120
  %v3275 = vsel %vm3273, %v3231, 0
  %v3278 = vsel %vm3273, %v3232, 0
  %v3281 = vsel %vm3273, %v3233, 0
  %v3284 = vsel %vm3273, %v3234, 0
  %3286 = vmatpush.msra.mxu0 0.0
  %3287 = vmatpush.msra.mxu0 0.0
  %3288 = vmatpush.msra.mxu0 0.0
  %3289 = vmatpush.msra.mxu0 0.0
  %3290 = vmatpush.msra.mxu0 0.0
  %3291 = vmatpush.msra.mxu0 0.0
  %3292 = vmatpush.msra.mxu0 0.0
  %3293 = vmatpush.msra.mxu0 0.0
  %3294 = vmatpush.msra.mxu0 0.0
  %3295 = vmatpush.msra.mxu0 0.0
  %3296 = vmatpush.msra.mxu0 0.0
  %3297 = vmatpush.msra.mxu0 0.0
  %3298 = vmatpush.msra.mxu0 %v3252
  %3299 = vmatpush.msra.mxu0 %v3251
  %3300 = vmatpush.msra.mxu0 %v3250
  %3301 = vmatpush.msra.mxu0 %v3249
  %3302 = vmatmul.f32.gmra.mxu0 %v3275
  %v3303 = vpop.f32.mrf.mxu0
  %v3304 = vadd.f32 %v3256, %v3303
  %3305 = vmatmul.f32.gmra.mxu0 %v3278
  %v3306 = vpop.f32.mrf.mxu0
  %v3307 = vadd.f32 %v3261, %v3306
  %3308 = vmatmul.f32.gmra.mxu0 %v3281
  %v3309 = vpop.f32.mrf.mxu0
  %v3310 = vadd.f32 %v3266, %v3309
  %3311 = vmatmul.f32.gmra.mxu0 %v3284
  %v3312 = vpop.f32.mrf.mxu0
  %v3313 = vadd.f32 %v3271, %v3312
  %3314 = vdwg.mxu0
  %v3315 = vmax.f32 %v3304, 0.0
  %v3316 = vmax.f32 %v3307, 0.0
  %v3317 = vmax.f32 %v3310, 0.0
  %v3318 = vmax.f32 %v3313, 0.0
  %3320 = vset.pattern.permute.xlu0 0
  %3321 = vperm.xlu0 %3320, %v3243
  %v3322 = vpop.permute.xlu0 %3321
  %3325 = vset.pattern.permute.xlu0 0
  %3326 = vperm.xlu0 %3325, %v3244
  %v3327 = vpop.permute.xlu0 %3326
  %3330 = vset.pattern.permute.xlu0 0
  %3331 = vperm.xlu0 %3330, %v3245
  %v3332 = vpop.permute.xlu0 %3331
  %3335 = vset.pattern.permute.xlu0 0
  %3336 = vperm.xlu0 %3335, %v3246
  %v3337 = vpop.permute.xlu0 %3336
  %v3340 = vsel %vm3273, %v3239, 0
  %v3343 = vsel %vm3273, %v3240, 0
  %v3346 = vsel %vm3273, %v3241, 0
  %v3349 = vsel %vm3273, %v3242, 0
  %3351 = vmatpush.msra.mxu0 0.0
  %3352 = vmatpush.msra.mxu0 0.0
  %3353 = vmatpush.msra.mxu0 0.0
  %3354 = vmatpush.msra.mxu0 0.0
  %3355 = vmatpush.msra.mxu0 0.0
  %3356 = vmatpush.msra.mxu0 0.0
  %3357 = vmatpush.msra.mxu0 0.0
  %3358 = vmatpush.msra.mxu0 0.0
  %3359 = vmatpush.msra.mxu0 0.0
  %3360 = vmatpush.msra.mxu0 0.0
  %3361 = vmatpush.msra.mxu0 0.0
  %3362 = vmatpush.msra.mxu0 0.0
  %3363 = vmatpush.msra.mxu0 %v3318
  %3364 = vmatpush.msra.mxu0 %v3317
  %3365 = vmatpush.msra.mxu0 %v3316
  %3366 = vmatpush.msra.mxu0 %v3315
  %3367 = vmatmul.f32.gmra.mxu0 %v3340
  %v3368 = vpop.f32.mrf.mxu0
  %v3369 = vadd.f32 %v3322, %v3368
  %3370 = vmatmul.f32.gmra.mxu0 %v3343
  %v3371 = vpop.f32.mrf.mxu0
  %v3372 = vadd.f32 %v3327, %v3371
  %3373 = vmatmul.f32.gmra.mxu0 %v3346
  %v3374 = vpop.f32.mrf.mxu0
  %v3375 = vadd.f32 %v3332, %v3374
  %3376 = vmatmul.f32.gmra.mxu0 %v3349
  %v3377 = vpop.f32.mrf.mxu0
  %v3378 = vadd.f32 %v3337, %v3377
  %3379 = vdwg.mxu0
  %v3380 = vmax.f32 %v3369, 0.0
  %v3381 = vmax.f32 %v3372, 0.0
  %v3382 = vmax.f32 %v3375, 0.0
  %v3383 = vmax.f32 %v3378, 0.0
  %3385 = vset.pattern.permute.xlu0 0
  %3386 = vperm.xlu0 %3385, %v3248
  %v3387 = vpop.permute.xlu0 %3386
  %v3390 = vsel %vm3273, %v3247, 0
  %3392 = vmatpush.msra.mxu0 0.0
  %3393 = vmatpush.msra.mxu0 0.0
  %3394 = vmatpush.msra.mxu0 0.0
  %3395 = vmatpush.msra.mxu0 0.0
  %3396 = vmatpush.msra.mxu0 0.0
  %3397 = vmatpush.msra.mxu0 0.0
  %3398 = vmatpush.msra.mxu0 0.0
  %3399 = vmatpush.msra.mxu0 0.0
  %3400 = vmatpush.msra.mxu0 0.0
  %3401 = vmatpush.msra.mxu0 0.0
  %3402 = vmatpush.msra.mxu0 0.0
  %3403 = vmatpush.msra.mxu0 0.0
  %3404 = vmatpush.msra.mxu0 %v3383
  %3405 = vmatpush.msra.mxu0 %v3382
  %3406 = vmatpush.msra.mxu0 %v3381
  %3407 = vmatpush.msra.mxu0 %v3380
  %3408 = vmatmul.f32.gmra.mxu0 %v3390
  %v3409 = vpop.f32.mrf.mxu0
  %v3410 = vadd.f32 %v3387, %v3409
  %3411 = vdwg.mxu0
  %vm3412 = vcmask 11264
  %3413 = vst.msk [vmem:[%s17] sm:$0xf] %vm3412, %v3410
  // Predicated region
  $region70: #{uda_forward.1} parent=0 // pred_check
    _
  $region71: #{uda_forward.1} parent=0 // pred_check_branch
    %3415 = sbr.rel (0) target = $region73
  $region72: #{uda_forward.1} parent=0 // pred_region
    _
  $region73: #{uda_forward.1} parent=0 // pred_fallthru
    _
  // Predicated region
  $region74: #{uda_forward.1} parent=0 // pred_check
    _
  $region75: #{uda_forward.1} parent=0 // pred_check_branch
    %3417 = sbr.rel (0) target = $region77
  $region76: #{uda_forward.1} parent=0 // pred_region
    _
  $region77: #{uda_forward.1} parent=0 // pred_fallthru
    _

</llo_original>
